<compile_context>
chip_gen: v5e
topology: v5e:2x2
jax: 0.10.0
libtpu: 0.0.40
codegen_flags: <defaults>
</compile_context>

<pallas_src>
import functools

import jax
import jax.numpy as jnp
import numpy as np
from jax.experimental import pallas as pl
from jax.experimental.pallas import tpu as pltpu

KH = KW = 3
STRIDE = 2
HEAD_N = 128          # lane-dense head / output width: lanes 0/1/2 = mu / logvar / z


def _conv_out(n):
    return (n - KH) // STRIDE + 1


# ----------------------------------------------------------------------------
# Trace-time constants: per-tap 0/1 row-gather matrices that express the stride-2
# 3x3 im2col of a (H_in, W_in) -> (H_out, W_out) conv as MXU matmuls.
# They are per-image (shared across the batch).
# ----------------------------------------------------------------------------
@functools.lru_cache(maxsize=None)
def _gather_mats(h_in, w_in):
    h_out, w_out = _conv_out(h_in), _conv_out(w_in)
    g = np.zeros((KH * KW, h_out * w_out, h_in * w_in), np.float32)
    for i in range(KH):
        for j in range(KW):
            t = i * KW + j
            for ho in range(h_out):
                for wo in range(w_out):
                    g[t, ho * w_out + wo,
                      (STRIDE * ho + i) * w_in + (STRIDE * wo + j)] = 1.0
    return g


# ----------------------------------------------------------------------------
# Fused forward kernel: conv1 (patch GEMM) -> conv2 -> conv3 (gather-matmul taps)
# -> mu/logvar heads (one lane-dense GEMM) -> reparameterize.  One grid step per
# batch element; all intermediates live in vregs/VMEM.
# ----------------------------------------------------------------------------
def _fused_forward_kernel(p1_ref, w1_ref, b1_ref,
                          g2_ref, w2_ref, b2_ref,
                          g3_ref, w3_ref, b3_ref,
                          hw_ref, hb_ref, eps_ref, o_ref):
    f32, bf16 = jnp.float32, jnp.bfloat16

    # conv1: precomputed im2col patches (M1, 9*Cin) @ (9*Cin, 8) + bias
    a = jnp.dot(p1_ref[0], w1_ref[...], preferred_element_type=f32) + b1_ref[...]
    a = a.astype(bf16)                                                # (M1, 8)

    # conv2 / conv3: 3x3 stride-2 conv = sum over 9 taps of (gather @ act) @ w_tap
    for g_ref, w_ref, b_ref in ((g2_ref, w2_ref, b2_ref),
                                (g3_ref, w3_ref, b3_ref)):
        acc = None
        for t in range(KH * KW):
            rows = jnp.dot(g_ref[t], a, preferred_element_type=f32)   # (M_out, C_in)
            term = jnp.dot(rows.astype(bf16), w_ref[t],
                           preferred_element_type=f32)                # (M_out, C_out)
            acc = term if acc is None else acc + term
        a = (acc + b_ref[...]).astype(bf16)                           # (M_out, C_out)

    # mu / logvar heads in one lane-dense matmul: lanes 0/1 hold the two heads,
    # lanes >= 2 of the head weights/bias are exactly zero.
    heads = jnp.dot(a, hw_ref[...], preferred_element_type=f32) + hb_ref[...]  # (M3,128)
    mu = heads[:, 0:1]
    logvar = heads[:, 1:2]
    z = mu + eps_ref[0] * jnp.exp(0.5 * logvar)                       # (M3, 1) f32

    # Pack z into lane 2 -> one dense (M3, 128) store.
    lane = jax.lax.broadcasted_iota(jnp.int32, heads.shape, 1)
    o_ref[0] = heads + jnp.where(lane == 2, z, 0.0)


def _fused_forward(p1, g2, g3, eps, params):
    B, M1, K1 = p1.shape
    _, M3, _ = g3.shape

    def whole(shape):
        n = len(shape)
        return pl.BlockSpec(shape, lambda *_: (0,) * n)

    return pl.pallas_call(
        _fused_forward_kernel,
        out_shape=jax.ShapeDtypeStruct((B, M3, HEAD_N), jnp.float32),
        grid=(B,),
        in_specs=[
            pl.BlockSpec((1, M1, K1), lambda b: (b, 0, 0)),           # conv1 patches
            whole(params["w1"].shape), whole(params["b1"].shape),
            whole(g2.shape), whole(params["w2"].shape), whole(params["b2"].shape),
            whole(g3.shape), whole(params["w3"].shape), whole(params["b3"].shape),
            whole(params["head_w"].shape), whole(params["head_b"].shape),
            pl.BlockSpec((1, M3, 1), lambda b: (b, 0, 0)),            # eps
        ],
        out_specs=pl.BlockSpec((1, M3, HEAD_N), lambda b: (b, 0, 0)),
        compiler_params=pltpu.CompilerParams(dimension_semantics=("parallel",)),
    )(p1, params["w1"], params["b1"],
      g2, params["w2"], params["b2"],
      g3, params["w3"], params["b3"],
      params["head_w"], params["head_b"], eps)


# ----------------------------------------------------------------------------
# Boundary plumbing (layer-1 im2col only; everything downstream is in-kernel)
# ----------------------------------------------------------------------------
def _im2col_stride2(x):
    """3x3 / stride-2 im2col on an NHWC activation -> (B, Ho*Wo, 9*C) patches."""
    B, H, W, C = x.shape
    Ho, Wo = _conv_out(H), _conv_out(W)
    taps = [x[:, i:i + STRIDE * Ho:STRIDE, j:j + STRIDE * Wo:STRIDE, :]
            for i in range(KH) for j in range(KW)]
    p = jnp.concatenate(taps, axis=-1)                  # (B, Ho, Wo, 9*C)
    return p.reshape(B, Ho * Wo, KH * KW * C), Ho, Wo


def stochastic_inference_forward(params, X, key):
    """X: (B, Cin, H, W) NCHW at the module boundary.  Returns (z, mu, logvar),
    each (B, Ho3, Wo3, 1): the Linear(32,1) heads over the 32-channel feature axis."""
    B, Cin, H, W = X.shape
    x = jnp.transpose(X, (0, 2, 3, 1))                  # single boundary layout change
    p1, H1, W1 = _im2col_stride2(x)                     # reads X once at the boundary
    p1 = p1.astype(jnp.bfloat16)
    H2, W2 = _conv_out(H1), _conv_out(W1)
    H3, W3 = _conv_out(H2), _conv_out(W2)
    g2 = jnp.asarray(_gather_mats(H1, W1), jnp.bfloat16)   # trace-time 0/1 constants
    g3 = jnp.asarray(_gather_mats(H2, W2), jnp.bfloat16)

    # torch.randn_like(sigma): eps shape is derived here from X's spatial dims.
    # TODO(synk): could be drawn in-kernel via pltpu.prng_seed/stateful_normal to drop
    # this host-side op; kept as an explicit jax.random draw for determinism/clarity.
    eps = jax.random.normal(key, (B, H3 * W3, 1), jnp.float32)

    heads = _fused_forward(p1, g2, g3, eps, params)     # (B, H3*W3, 128)
    shp = (B, H3, W3, 1)
    mu = heads[..., 0].reshape(shp)
    logvar = heads[..., 1].reshape(shp)
    z = heads[..., 2].reshape(shp)
    return z, mu, logvar


# ----------------------------------------------------------------------------
# Deterministic parameter init (synthetic; shapes match the nn.Module)
# ----------------------------------------------------------------------------
def init_params(key, n_states_in, n_states_out=None):
    # n_states_out is unused by the reference forward path; kept for signature parity.
    ks = jax.random.split(key, 7)

    def conv(k, cin, cout):
        k1, k2 = jax.random.split(k)
        bound = 1.0 / (cin * KH * KW) ** 0.5
        w = jax.random.uniform(k1, (cout, cin, KH, KW), jnp.float32, -bound, bound)
        b = jax.random.uniform(k2, (cout,), jnp.float32, -bound, bound)
        # torch (Cout, Cin, kh, kw) -> tap-major (kh, kw, Cin, Cout) GEMM layout
        return jnp.transpose(w, (2, 3, 1, 0)), b

    w1, b1 = conv(ks[0], n_states_in, 8)
    w2, b2 = conv(ks[1], 8, 16)
    w3, b3 = conv(ks[2], 16, 32)

    # Linear(32, 1) heads (mu / logvar), normal init per the reference, packed into one
    # lane-dense (32, 128) weight: lane 0 = mu, lane 1 = logvar, remaining lanes zero.
    w_mu = jax.random.normal(ks[3], (32,), jnp.float32)
    b_mu = jax.random.normal(ks[4], (), jnp.float32)
    w_lv = jax.random.normal(ks[5], (32,), jnp.float32)
    b_lv = jax.random.normal(ks[6], (), jnp.float32)
    head_w = jnp.zeros((32, HEAD_N), jnp.float32).at[:, 0].set(w_mu).at[:, 1].set(w_lv)
    head_b = jnp.zeros((1, HEAD_N), jnp.float32).at[0, 0].set(b_mu).at[0, 1].set(b_lv)

    return {
        "w1": w1.reshape(KH * KW * n_states_in, 8).astype(jnp.bfloat16),
        "b1": b1.reshape(1, 8).astype(jnp.float32),
        "w2": w2.reshape(KH * KW, 8, 16).astype(jnp.bfloat16),
        "b2": b2.reshape(1, 16).astype(jnp.float32),
        "w3": w3.reshape(KH * KW, 16, 32).astype(jnp.bfloat16),
        "b3": b3.reshape(1, 32).astype(jnp.float32),
        "head_w": head_w.astype(jnp.bfloat16),
        "head_b": head_b,
    }


# ----------------------------------------------------------------------------
# Pure-JAX/XLA reference with the same bf16 rounding points (numerical cross-check)
# ----------------------------------------------------------------------------
def _reference_forward(params, X, key):
    f32 = jnp.float32
    cin = X.shape[1]

    def conv(x, w_gemm, b, cin_l, cout_l):
        w = w_gemm.astype(f32).reshape(KH, KW, cin_l, cout_l)        # HWIO
        y = jax.lax.conv_general_dilated(
            x, w, window_strides=(STRIDE, STRIDE), padding="VALID",
            dimension_numbers=("NHWC", "HWIO", "NHWC"),
            precision=jax.lax.Precision.HIGHEST)
        return (y + b.reshape(1, 1, 1, -1)).astype(jnp.bfloat16).astype(f32)

    x = jnp.transpose(X, (0, 2, 3, 1)).astype(jnp.bfloat16).astype(f32)
    h = conv(x, params["w1"], params["b1"], cin, 8)
    h = conv(h, params["w2"], params["b2"], 8, 16)
    h = conv(h, params["w3"], params["b3"], 16, 32)
    heads = jnp.einsum("bhwc,cn->bhwn", h, params["head_w"].astype(f32),
                       precision=jax.lax.Precision.HIGHEST)
    heads = heads + params["head_b"].reshape(1, 1, 1, -1)
    mu, logvar = heads[..., 0:1], heads[..., 1:2]
    B, H3, W3 = h.shape[0], h.shape[1], h.shape[2]
    eps = jax.random.normal(key, (B, H3 * W3, 1), jnp.float32).reshape(B, H3, W3, 1)
    z = mu + eps * jnp.exp(0.5 * logvar)
    return z, mu, logvar


# ----------------------------------------------------------------------------
if __name__ == "__main__":
    root = jax.random.PRNGKey(0)
    kp, kx, ke = jax.random.split(root, 3)

    B, CIN, H, W = 2, 5, 31, 31             # spatial: 31 -> 15 -> 7 -> 3
    params = init_params(kp, n_states_in=CIN, n_states_out=10)
    X = jax.random.normal(kx, (B, CIN, H, W), jnp.float32)

    fwd = jax.jit(stochastic_inference_forward)
    z, mu, logvar = fwd(params, X, ke)
    jax.block_until_ready((z, mu, logvar))

    assert z.shape == (B, 3, 3, 1), z.shape
    assert mu.shape == (B, 3, 3, 1) and logvar.shape == (B, 3, 3, 1)
    assert bool(jnp.isfinite(z).all()) and bool(jnp.isfinite(mu).all())
    assert bool(jnp.isfinite(logvar).all())

    # loose cross-check against a pure-JAX/XLA reference (bf16 matmul inputs, f32 accum)
    z_r, mu_r, lv_r = _reference_forward(params, X, ke)
    np.testing.assert_allclose(np.asarray(mu), np.asarray(mu_r), rtol=2e-2, atol=2e-2)
    np.testing.assert_allclose(np.asarray(logvar), np.asarray(lv_r), rtol=2e-2, atol=2e-2)
    np.testing.assert_allclose(np.asarray(z), np.asarray(z_r), rtol=5e-2, atol=5e-2)

    print("KERNEL_OK")
</pallas_src>

<mosaic_0001>
module attributes {stable_mosaic.version = 11 : i64} {
  func.func @_fused_forward_kernel(%arg0: i32, %arg1: memref<1x225x45xbf16, #tpu.memory_space<vmem>>, %arg2: memref<45x8xbf16, #tpu.memory_space<vmem>>, %arg3: memref<1x8xf32, #tpu.memory_space<vmem>>, %arg4: memref<9x49x225xbf16, #tpu.memory_space<vmem>>, %arg5: memref<9x8x16xbf16, #tpu.memory_space<vmem>>, %arg6: memref<1x16xf32, #tpu.memory_space<vmem>>, %arg7: memref<9x9x49xbf16, #tpu.memory_space<vmem>>, %arg8: memref<9x16x32xbf16, #tpu.memory_space<vmem>>, %arg9: memref<1x32xf32, #tpu.memory_space<vmem>>, %arg10: memref<32x128xbf16, #tpu.memory_space<vmem>>, %arg11: memref<1x128xf32, #tpu.memory_space<vmem>>, %arg12: memref<1x9x1xf32, #tpu.memory_space<vmem>>, %arg13: memref<1x9x128xf32, #tpu.memory_space<vmem>>) attributes {dimension_semantics = [#tpu.dimension_semantics<parallel>], iteration_bounds = array<i64: 2>, scalar_prefetch = 0 : i64, scratch_operands = 0 : i64, tpu.core_type = #tpu.core_type<tc>, window_params = [{transform_indices = @transform_0, window_bounds = array<i64: 1, 225, 45>}, {pipeline_mode = #tpu.pipeline_mode<synchronous>, transform_indices = @transform_1, window_bounds = array<i64: 45, 8>}, {pipeline_mode = #tpu.pipeline_mode<synchronous>, transform_indices = @transform_2, window_bounds = array<i64: 1, 8>}, {pipeline_mode = #tpu.pipeline_mode<synchronous>, transform_indices = @transform_3, window_bounds = array<i64: 9, 49, 225>}, {pipeline_mode = #tpu.pipeline_mode<synchronous>, transform_indices = @transform_4, window_bounds = array<i64: 9, 8, 16>}, {pipeline_mode = #tpu.pipeline_mode<synchronous>, transform_indices = @transform_5, window_bounds = array<i64: 1, 16>}, {pipeline_mode = #tpu.pipeline_mode<synchronous>, transform_indices = @transform_6, window_bounds = array<i64: 9, 9, 49>}, {pipeline_mode = #tpu.pipeline_mode<synchronous>, transform_indices = @transform_7, window_bounds = array<i64: 9, 16, 32>}, {pipeline_mode = #tpu.pipeline_mode<synchronous>, transform_indices = @transform_8, window_bounds = array<i64: 1, 32>}, {pipeline_mode = #tpu.pipeline_mode<synchronous>, transform_indices = @transform_9, window_bounds = array<i64: 32, 128>}, {pipeline_mode = #tpu.pipeline_mode<synchronous>, transform_indices = @transform_10, window_bounds = array<i64: 1, 128>}, {transform_indices = @transform_11, window_bounds = array<i64: 1, 9, 1>}, {transform_indices = @transform_12, window_bounds = array<i64: 1, 9, 128>}]} {
    %c0 = arith.constant 0 : index
    %c0_0 = arith.constant 0 : index
    %c0_1 = arith.constant 0 : index
    %0 = vector.load %arg1[%c0, %c0_0, %c0_1] : memref<1x225x45xbf16, #tpu.memory_space<vmem>>, vector<1x225x45xbf16>
    %1 = vector.shape_cast %0 : vector<1x225x45xbf16> to vector<225x45xbf16>
    %c0_2 = arith.constant 0 : index
    %c0_3 = arith.constant 0 : index
    %2 = vector.load %arg2[%c0_2, %c0_3] : memref<45x8xbf16, #tpu.memory_space<vmem>>, vector<45x8xbf16>
    %cst = arith.constant dense<0.000000e+00> : vector<225x8xf32>
    %3 = tpu.matmul %1, %2, %cst {dimension_numbers = #tpu.dot_dimension_numbers<[1], [0], [0], [1], [0, 0, 1, 1], [], []>} : vector<225x45xbf16>, vector<45x8xbf16>, vector<225x8xf32> -> vector<225x8xf32>
    %c0_4 = arith.constant 0 : index
    %c0_5 = arith.constant 0 : index
    %4 = vector.load %arg3[%c0_4, %c0_5] : memref<1x8xf32, #tpu.memory_space<vmem>>, vector<1x8xf32>
    %5 = vector.broadcast %4 : vector<1x8xf32> to vector<225x8xf32>
    %6 = arith.addf %3, %5 : vector<225x8xf32>
    %7 = arith.truncf %6 : vector<225x8xf32> to vector<225x8xbf16>
    %c0_6 = arith.constant 0 : index
    %c0_7 = arith.constant 0 : index
    %c0_8 = arith.constant 0 : index
    %8 = vector.load %arg4[%c0_6, %c0_7, %c0_8] : memref<9x49x225xbf16, #tpu.memory_space<vmem>>, vector<1x49x225xbf16>
    %9 = vector.shape_cast %8 : vector<1x49x225xbf16> to vector<49x225xbf16>
    %cst_9 = arith.constant dense<0.000000e+00> : vector<49x8xf32>
    %10 = tpu.matmul %9, %7, %cst_9 {dimension_numbers = #tpu.dot_dimension_numbers<[1], [0], [0], [1], [0, 0, 1, 1], [], []>} : vector<49x225xbf16>, vector<225x8xbf16>, vector<49x8xf32> -> vector<49x8xf32>
    %11 = arith.truncf %10 : vector<49x8xf32> to vector<49x8xbf16>
    %c0_10 = arith.constant 0 : index
    %c0_11 = arith.constant 0 : index
    %c0_12 = arith.constant 0 : index
    %12 = vector.load %arg5[%c0_10, %c0_11, %c0_12] : memref<9x8x16xbf16, #tpu.memory_space<vmem>>, vector<1x8x16xbf16>
    %13 = vector.shape_cast %12 : vector<1x8x16xbf16> to vector<8x16xbf16>
    %cst_13 = arith.constant dense<0.000000e+00> : vector<49x16xf32>
    %14 = tpu.matmul %11, %13, %cst_13 {dimension_numbers = #tpu.dot_dimension_numbers<[1], [0], [0], [1], [0, 0, 1, 1], [], []>} : vector<49x8xbf16>, vector<8x16xbf16>, vector<49x16xf32> -> vector<49x16xf32>
    %c1 = arith.constant 1 : index
    %c0_14 = arith.constant 0 : index
    %c0_15 = arith.constant 0 : index
    %15 = vector.load %arg4[%c1, %c0_14, %c0_15] : memref<9x49x225xbf16, #tpu.memory_space<vmem>>, vector<1x49x225xbf16>
    %16 = vector.shape_cast %15 : vector<1x49x225xbf16> to vector<49x225xbf16>
    %cst_16 = arith.constant dense<0.000000e+00> : vector<49x8xf32>
    %17 = tpu.matmul %16, %7, %cst_16 {dimension_numbers = #tpu.dot_dimension_numbers<[1], [0], [0], [1], [0, 0, 1, 1], [], []>} : vector<49x225xbf16>, vector<225x8xbf16>, vector<49x8xf32> -> vector<49x8xf32>
    %18 = arith.truncf %17 : vector<49x8xf32> to vector<49x8xbf16>
    %c1_17 = arith.constant 1 : index
    %c0_18 = arith.constant 0 : index
    %c0_19 = arith.constant 0 : index
    %19 = vector.load %arg5[%c1_17, %c0_18, %c0_19] : memref<9x8x16xbf16, #tpu.memory_space<vmem>>, vector<1x8x16xbf16>
    %20 = vector.shape_cast %19 : vector<1x8x16xbf16> to vector<8x16xbf16>
    %cst_20 = arith.constant dense<0.000000e+00> : vector<49x16xf32>
    %21 = tpu.matmul %18, %20, %cst_20 {dimension_numbers = #tpu.dot_dimension_numbers<[1], [0], [0], [1], [0, 0, 1, 1], [], []>} : vector<49x8xbf16>, vector<8x16xbf16>, vector<49x16xf32> -> vector<49x16xf32>
    %22 = arith.addf %14, %21 : vector<49x16xf32>
    %c2 = arith.constant 2 : index
    %c0_21 = arith.constant 0 : index
    %c0_22 = arith.constant 0 : index
    %23 = vector.load %arg4[%c2, %c0_21, %c0_22] : memref<9x49x225xbf16, #tpu.memory_space<vmem>>, vector<1x49x225xbf16>
    %24 = vector.shape_cast %23 : vector<1x49x225xbf16> to vector<49x225xbf16>
    %cst_23 = arith.constant dense<0.000000e+00> : vector<49x8xf32>
    %25 = tpu.matmul %24, %7, %cst_23 {dimension_numbers = #tpu.dot_dimension_numbers<[1], [0], [0], [1], [0, 0, 1, 1], [], []>} : vector<49x225xbf16>, vector<225x8xbf16>, vector<49x8xf32> -> vector<49x8xf32>
    %26 = arith.truncf %25 : vector<49x8xf32> to vector<49x8xbf16>
    %c2_24 = arith.constant 2 : index
    %c0_25 = arith.constant 0 : index
    %c0_26 = arith.constant 0 : index
    %27 = vector.load %arg5[%c2_24, %c0_25, %c0_26] : memref<9x8x16xbf16, #tpu.memory_space<vmem>>, vector<1x8x16xbf16>
    %28 = vector.shape_cast %27 : vector<1x8x16xbf16> to vector<8x16xbf16>
    %cst_27 = arith.constant dense<0.000000e+00> : vector<49x16xf32>
    %29 = tpu.matmul %26, %28, %cst_27 {dimension_numbers = #tpu.dot_dimension_numbers<[1], [0], [0], [1], [0, 0, 1, 1], [], []>} : vector<49x8xbf16>, vector<8x16xbf16>, vector<49x16xf32> -> vector<49x16xf32>
    %30 = arith.addf %22, %29 : vector<49x16xf32>
    %c3 = arith.constant 3 : index
    %c0_28 = arith.constant 0 : index
    %c0_29 = arith.constant 0 : index
    %31 = vector.load %arg4[%c3, %c0_28, %c0_29] : memref<9x49x225xbf16, #tpu.memory_space<vmem>>, vector<1x49x225xbf16>
    %32 = vector.shape_cast %31 : vector<1x49x225xbf16> to vector<49x225xbf16>
    %cst_30 = arith.constant dense<0.000000e+00> : vector<49x8xf32>
    %33 = tpu.matmul %32, %7, %cst_30 {dimension_numbers = #tpu.dot_dimension_numbers<[1], [0], [0], [1], [0, 0, 1, 1], [], []>} : vector<49x225xbf16>, vector<225x8xbf16>, vector<49x8xf32> -> vector<49x8xf32>
    %34 = arith.truncf %33 : vector<49x8xf32> to vector<49x8xbf16>
    %c3_31 = arith.constant 3 : index
    %c0_32 = arith.constant 0 : index
    %c0_33 = arith.constant 0 : index
    %35 = vector.load %arg5[%c3_31, %c0_32, %c0_33] : memref<9x8x16xbf16, #tpu.memory_space<vmem>>, vector<1x8x16xbf16>
    %36 = vector.shape_cast %35 : vector<1x8x16xbf16> to vector<8x16xbf16>
    %cst_34 = arith.constant dense<0.000000e+00> : vector<49x16xf32>
    %37 = tpu.matmul %34, %36, %cst_34 {dimension_numbers = #tpu.dot_dimension_numbers<[1], [0], [0], [1], [0, 0, 1, 1], [], []>} : vector<49x8xbf16>, vector<8x16xbf16>, vector<49x16xf32> -> vector<49x16xf32>
    %38 = arith.addf %30, %37 : vector<49x16xf32>
    %c4 = arith.constant 4 : index
    %c0_35 = arith.constant 0 : index
    %c0_36 = arith.constant 0 : index
    %39 = vector.load %arg4[%c4, %c0_35, %c0_36] : memref<9x49x225xbf16, #tpu.memory_space<vmem>>, vector<1x49x225xbf16>
    %40 = vector.shape_cast %39 : vector<1x49x225xbf16> to vector<49x225xbf16>
    %cst_37 = arith.constant dense<0.000000e+00> : vector<49x8xf32>
    %41 = tpu.matmul %40, %7, %cst_37 {dimension_numbers = #tpu.dot_dimension_numbers<[1], [0], [0], [1], [0, 0, 1, 1], [], []>} : vector<49x225xbf16>, vector<225x8xbf16>, vector<49x8xf32> -> vector<49x8xf32>
    %42 = arith.truncf %41 : vector<49x8xf32> to vector<49x8xbf16>
    %c4_38 = arith.constant 4 : index
    %c0_39 = arith.constant 0 : index
    %c0_40 = arith.constant 0 : index
    %43 = vector.load %arg5[%c4_38, %c0_39, %c0_40] : memref<9x8x16xbf16, #tpu.memory_space<vmem>>, vector<1x8x16xbf16>
    %44 = vector.shape_cast %43 : vector<1x8x16xbf16> to vector<8x16xbf16>
    %cst_41 = arith.constant dense<0.000000e+00> : vector<49x16xf32>
    %45 = tpu.matmul %42, %44, %cst_41 {dimension_numbers = #tpu.dot_dimension_numbers<[1], [0], [0], [1], [0, 0, 1, 1], [], []>} : vector<49x8xbf16>, vector<8x16xbf16>, vector<49x16xf32> -> vector<49x16xf32>
    %46 = arith.addf %38, %45 : vector<49x16xf32>
    %c5 = arith.constant 5 : index
    %c0_42 = arith.constant 0 : index
    %c0_43 = arith.constant 0 : index
    %47 = vector.load %arg4[%c5, %c0_42, %c0_43] : memref<9x49x225xbf16, #tpu.memory_space<vmem>>, vector<1x49x225xbf16>
    %48 = vector.shape_cast %47 : vector<1x49x225xbf16> to vector<49x225xbf16>
    %cst_44 = arith.constant dense<0.000000e+00> : vector<49x8xf32>
    %49 = tpu.matmul %48, %7, %cst_44 {dimension_numbers = #tpu.dot_dimension_numbers<[1], [0], [0], [1], [0, 0, 1, 1], [], []>} : vector<49x225xbf16>, vector<225x8xbf16>, vector<49x8xf32> -> vector<49x8xf32>
    %50 = arith.truncf %49 : vector<49x8xf32> to vector<49x8xbf16>
    %c5_45 = arith.constant 5 : index
    %c0_46 = arith.constant 0 : index
    %c0_47 = arith.constant 0 : index
    %51 = vector.load %arg5[%c5_45, %c0_46, %c0_47] : memref<9x8x16xbf16, #tpu.memory_space<vmem>>, vector<1x8x16xbf16>
    %52 = vector.shape_cast %51 : vector<1x8x16xbf16> to vector<8x16xbf16>
    %cst_48 = arith.constant dense<0.000000e+00> : vector<49x16xf32>
    %53 = tpu.matmul %50, %52, %cst_48 {dimension_numbers = #tpu.dot_dimension_numbers<[1], [0], [0], [1], [0, 0, 1, 1], [], []>} : vector<49x8xbf16>, vector<8x16xbf16>, vector<49x16xf32> -> vector<49x16xf32>
    %54 = arith.addf %46, %53 : vector<49x16xf32>
    %c6 = arith.constant 6 : index
    %c0_49 = arith.constant 0 : index
    %c0_50 = arith.constant 0 : index
    %55 = vector.load %arg4[%c6, %c0_49, %c0_50] : memref<9x49x225xbf16, #tpu.memory_space<vmem>>, vector<1x49x225xbf16>
    %56 = vector.shape_cast %55 : vector<1x49x225xbf16> to vector<49x225xbf16>
    %cst_51 = arith.constant dense<0.000000e+00> : vector<49x8xf32>
    %57 = tpu.matmul %56, %7, %cst_51 {dimension_numbers = #tpu.dot_dimension_numbers<[1], [0], [0], [1], [0, 0, 1, 1], [], []>} : vector<49x225xbf16>, vector<225x8xbf16>, vector<49x8xf32> -> vector<49x8xf32>
    %58 = arith.truncf %57 : vector<49x8xf32> to vector<49x8xbf16>
    %c6_52 = arith.constant 6 : index
    %c0_53 = arith.constant 0 : index
    %c0_54 = arith.constant 0 : index
    %59 = vector.load %arg5[%c6_52, %c0_53, %c0_54] : memref<9x8x16xbf16, #tpu.memory_space<vmem>>, vector<1x8x16xbf16>
    %60 = vector.shape_cast %59 : vector<1x8x16xbf16> to vector<8x16xbf16>
    %cst_55 = arith.constant dense<0.000000e+00> : vector<49x16xf32>
    %61 = tpu.matmul %58, %60, %cst_55 {dimension_numbers = #tpu.dot_dimension_numbers<[1], [0], [0], [1], [0, 0, 1, 1], [], []>} : vector<49x8xbf16>, vector<8x16xbf16>, vector<49x16xf32> -> vector<49x16xf32>
    %62 = arith.addf %54, %61 : vector<49x16xf32>
    %c7 = arith.constant 7 : index
    %c0_56 = arith.constant 0 : index
    %c0_57 = arith.constant 0 : index
    %63 = vector.load %arg4[%c7, %c0_56, %c0_57] : memref<9x49x225xbf16, #tpu.memory_space<vmem>>, vector<1x49x225xbf16>
    %64 = vector.shape_cast %63 : vector<1x49x225xbf16> to vector<49x225xbf16>
    %cst_58 = arith.constant dense<0.000000e+00> : vector<49x8xf32>
    %65 = tpu.matmul %64, %7, %cst_58 {dimension_numbers = #tpu.dot_dimension_numbers<[1], [0], [0], [1], [0, 0, 1, 1], [], []>} : vector<49x225xbf16>, vector<225x8xbf16>, vector<49x8xf32> -> vector<49x8xf32>
    %66 = arith.truncf %65 : vector<49x8xf32> to vector<49x8xbf16>
    %c7_59 = arith.constant 7 : index
    %c0_60 = arith.constant 0 : index
    %c0_61 = arith.constant 0 : index
    %67 = vector.load %arg5[%c7_59, %c0_60, %c0_61] : memref<9x8x16xbf16, #tpu.memory_space<vmem>>, vector<1x8x16xbf16>
    %68 = vector.shape_cast %67 : vector<1x8x16xbf16> to vector<8x16xbf16>
    %cst_62 = arith.constant dense<0.000000e+00> : vector<49x16xf32>
    %69 = tpu.matmul %66, %68, %cst_62 {dimension_numbers = #tpu.dot_dimension_numbers<[1], [0], [0], [1], [0, 0, 1, 1], [], []>} : vector<49x8xbf16>, vector<8x16xbf16>, vector<49x16xf32> -> vector<49x16xf32>
    %70 = arith.addf %62, %69 : vector<49x16xf32>
    %c8 = arith.constant 8 : index
    %c0_63 = arith.constant 0 : index
    %c0_64 = arith.constant 0 : index
    %71 = vector.load %arg4[%c8, %c0_63, %c0_64] : memref<9x49x225xbf16, #tpu.memory_space<vmem>>, vector<1x49x225xbf16>
    %72 = vector.shape_cast %71 : vector<1x49x225xbf16> to vector<49x225xbf16>
    %cst_65 = arith.constant dense<0.000000e+00> : vector<49x8xf32>
    %73 = tpu.matmul %72, %7, %cst_65 {dimension_numbers = #tpu.dot_dimension_numbers<[1], [0], [0], [1], [0, 0, 1, 1], [], []>} : vector<49x225xbf16>, vector<225x8xbf16>, vector<49x8xf32> -> vector<49x8xf32>
    %74 = arith.truncf %73 : vector<49x8xf32> to vector<49x8xbf16>
    %c8_66 = arith.constant 8 : index
    %c0_67 = arith.constant 0 : index
    %c0_68 = arith.constant 0 : index
    %75 = vector.load %arg5[%c8_66, %c0_67, %c0_68] : memref<9x8x16xbf16, #tpu.memory_space<vmem>>, vector<1x8x16xbf16>
    %76 = vector.shape_cast %75 : vector<1x8x16xbf16> to vector<8x16xbf16>
    %cst_69 = arith.constant dense<0.000000e+00> : vector<49x16xf32>
    %77 = tpu.matmul %74, %76, %cst_69 {dimension_numbers = #tpu.dot_dimension_numbers<[1], [0], [0], [1], [0, 0, 1, 1], [], []>} : vector<49x8xbf16>, vector<8x16xbf16>, vector<49x16xf32> -> vector<49x16xf32>
    %78 = arith.addf %70, %77 : vector<49x16xf32>
    %c0_70 = arith.constant 0 : index
    %c0_71 = arith.constant 0 : index
    %79 = vector.load %arg6[%c0_70, %c0_71] : memref<1x16xf32, #tpu.memory_space<vmem>>, vector<1x16xf32>
    %80 = vector.broadcast %79 : vector<1x16xf32> to vector<49x16xf32>
    %81 = arith.addf %78, %80 : vector<49x16xf32>
    %82 = arith.truncf %81 : vector<49x16xf32> to vector<49x16xbf16>
    %c0_72 = arith.constant 0 : index
    %c0_73 = arith.constant 0 : index
    %c0_74 = arith.constant 0 : index
    %83 = vector.load %arg7[%c0_72, %c0_73, %c0_74] : memref<9x9x49xbf16, #tpu.memory_space<vmem>>, vector<1x9x49xbf16>
    %84 = vector.shape_cast %83 : vector<1x9x49xbf16> to vector<9x49xbf16>
    %cst_75 = arith.constant dense<0.000000e+00> : vector<9x16xf32>
    %85 = tpu.matmul %84, %82, %cst_75 {dimension_numbers = #tpu.dot_dimension_numbers<[1], [0], [0], [1], [0, 0, 1, 1], [], []>} : vector<9x49xbf16>, vector<49x16xbf16>, vector<9x16xf32> -> vector<9x16xf32>
    %86 = arith.truncf %85 : vector<9x16xf32> to vector<9x16xbf16>
    %c0_76 = arith.constant 0 : index
    %c0_77 = arith.constant 0 : index
    %c0_78 = arith.constant 0 : index
    %87 = vector.load %arg8[%c0_76, %c0_77, %c0_78] : memref<9x16x32xbf16, #tpu.memory_space<vmem>>, vector<1x16x32xbf16>
    %88 = vector.shape_cast %87 : vector<1x16x32xbf16> to vector<16x32xbf16>
    %cst_79 = arith.constant dense<0.000000e+00> : vector<9x32xf32>
    %89 = tpu.matmul %86, %88, %cst_79 {dimension_numbers = #tpu.dot_dimension_numbers<[1], [0], [0], [1], [0, 0, 1, 1], [], []>} : vector<9x16xbf16>, vector<16x32xbf16>, vector<9x32xf32> -> vector<9x32xf32>
    %c1_80 = arith.constant 1 : index
    %c0_81 = arith.constant 0 : index
    %c0_82 = arith.constant 0 : index
    %90 = vector.load %arg7[%c1_80, %c0_81, %c0_82] : memref<9x9x49xbf16, #tpu.memory_space<vmem>>, vector<1x9x49xbf16>
    %91 = vector.shape_cast %90 : vector<1x9x49xbf16> to vector<9x49xbf16>
    %cst_83 = arith.constant dense<0.000000e+00> : vector<9x16xf32>
    %92 = tpu.matmul %91, %82, %cst_83 {dimension_numbers = #tpu.dot_dimension_numbers<[1], [0], [0], [1], [0, 0, 1, 1], [], []>} : vector<9x49xbf16>, vector<49x16xbf16>, vector<9x16xf32> -> vector<9x16xf32>
    %93 = arith.truncf %92 : vector<9x16xf32> to vector<9x16xbf16>
    %c1_84 = arith.constant 1 : index
    %c0_85 = arith.constant 0 : index
    %c0_86 = arith.constant 0 : index
    %94 = vector.load %arg8[%c1_84, %c0_85, %c0_86] : memref<9x16x32xbf16, #tpu.memory_space<vmem>>, vector<1x16x32xbf16>
    %95 = vector.shape_cast %94 : vector<1x16x32xbf16> to vector<16x32xbf16>
    %cst_87 = arith.constant dense<0.000000e+00> : vector<9x32xf32>
    %96 = tpu.matmul %93, %95, %cst_87 {dimension_numbers = #tpu.dot_dimension_numbers<[1], [0], [0], [1], [0, 0, 1, 1], [], []>} : vector<9x16xbf16>, vector<16x32xbf16>, vector<9x32xf32> -> vector<9x32xf32>
    %97 = arith.addf %89, %96 : vector<9x32xf32>
    %c2_88 = arith.constant 2 : index
    %c0_89 = arith.constant 0 : index
    %c0_90 = arith.constant 0 : index
    %98 = vector.load %arg7[%c2_88, %c0_89, %c0_90] : memref<9x9x49xbf16, #tpu.memory_space<vmem>>, vector<1x9x49xbf16>
    %99 = vector.shape_cast %98 : vector<1x9x49xbf16> to vector<9x49xbf16>
    %cst_91 = arith.constant dense<0.000000e+00> : vector<9x16xf32>
    %100 = tpu.matmul %99, %82, %cst_91 {dimension_numbers = #tpu.dot_dimension_numbers<[1], [0], [0], [1], [0, 0, 1, 1], [], []>} : vector<9x49xbf16>, vector<49x16xbf16>, vector<9x16xf32> -> vector<9x16xf32>
    %101 = arith.truncf %100 : vector<9x16xf32> to vector<9x16xbf16>
    %c2_92 = arith.constant 2 : index
    %c0_93 = arith.constant 0 : index
    %c0_94 = arith.constant 0 : index
    %102 = vector.load %arg8[%c2_92, %c0_93, %c0_94] : memref<9x16x32xbf16, #tpu.memory_space<vmem>>, vector<1x16x32xbf16>
    %103 = vector.shape_cast %102 : vector<1x16x32xbf16> to vector<16x32xbf16>
    %cst_95 = arith.constant dense<0.000000e+00> : vector<9x32xf32>
    %104 = tpu.matmul %101, %103, %cst_95 {dimension_numbers = #tpu.dot_dimension_numbers<[1], [0], [0], [1], [0, 0, 1, 1], [], []>} : vector<9x16xbf16>, vector<16x32xbf16>, vector<9x32xf32> -> vector<9x32xf32>
    %105 = arith.addf %97, %104 : vector<9x32xf32>
    %c3_96 = arith.constant 3 : index
    %c0_97 = arith.constant 0 : index
    %c0_98 = arith.constant 0 : index
    %106 = vector.load %arg7[%c3_96, %c0_97, %c0_98] : memref<9x9x49xbf16, #tpu.memory_space<vmem>>, vector<1x9x49xbf16>
    %107 = vector.shape_cast %106 : vector<1x9x49xbf16> to vector<9x49xbf16>
    %cst_99 = arith.constant dense<0.000000e+00> : vector<9x16xf32>
    %108 = tpu.matmul %107, %82, %cst_99 {dimension_numbers = #tpu.dot_dimension_numbers<[1], [0], [0], [1], [0, 0, 1, 1], [], []>} : vector<9x49xbf16>, vector<49x16xbf16>, vector<9x16xf32> -> vector<9x16xf32>
    %109 = arith.truncf %108 : vector<9x16xf32> to vector<9x16xbf16>
    %c3_100 = arith.constant 3 : index
    %c0_101 = arith.constant 0 : index
    %c0_102 = arith.constant 0 : index
    %110 = vector.load %arg8[%c3_100, %c0_101, %c0_102] : memref<9x16x32xbf16, #tpu.memory_space<vmem>>, vector<1x16x32xbf16>
    %111 = vector.shape_cast %110 : vector<1x16x32xbf16> to vector<16x32xbf16>
    %cst_103 = arith.constant dense<0.000000e+00> : vector<9x32xf32>
    %112 = tpu.matmul %109, %111, %cst_103 {dimension_numbers = #tpu.dot_dimension_numbers<[1], [0], [0], [1], [0, 0, 1, 1], [], []>} : vector<9x16xbf16>, vector<16x32xbf16>, vector<9x32xf32> -> vector<9x32xf32>
    %113 = arith.addf %105, %112 : vector<9x32xf32>
    %c4_104 = arith.constant 4 : index
    %c0_105 = arith.constant 0 : index
    %c0_106 = arith.constant 0 : index
    %114 = vector.load %arg7[%c4_104, %c0_105, %c0_106] : memref<9x9x49xbf16, #tpu.memory_space<vmem>>, vector<1x9x49xbf16>
    %115 = vector.shape_cast %114 : vector<1x9x49xbf16> to vector<9x49xbf16>
    %cst_107 = arith.constant dense<0.000000e+00> : vector<9x16xf32>
    %116 = tpu.matmul %115, %82, %cst_107 {dimension_numbers = #tpu.dot_dimension_numbers<[1], [0], [0], [1], [0, 0, 1, 1], [], []>} : vector<9x49xbf16>, vector<49x16xbf16>, vector<9x16xf32> -> vector<9x16xf32>
    %117 = arith.truncf %116 : vector<9x16xf32> to vector<9x16xbf16>
    %c4_108 = arith.constant 4 : index
    %c0_109 = arith.constant 0 : index
    %c0_110 = arith.constant 0 : index
    %118 = vector.load %arg8[%c4_108, %c0_109, %c0_110] : memref<9x16x32xbf16, #tpu.memory_space<vmem>>, vector<1x16x32xbf16>
    %119 = vector.shape_cast %118 : vector<1x16x32xbf16> to vector<16x32xbf16>
    %cst_111 = arith.constant dense<0.000000e+00> : vector<9x32xf32>
    %120 = tpu.matmul %117, %119, %cst_111 {dimension_numbers = #tpu.dot_dimension_numbers<[1], [0], [0], [1], [0, 0, 1, 1], [], []>} : vector<9x16xbf16>, vector<16x32xbf16>, vector<9x32xf32> -> vector<9x32xf32>
    %121 = arith.addf %113, %120 : vector<9x32xf32>
    %c5_112 = arith.constant 5 : index
    %c0_113 = arith.constant 0 : index
    %c0_114 = arith.constant 0 : index
    %122 = vector.load %arg7[%c5_112, %c0_113, %c0_114] : memref<9x9x49xbf16, #tpu.memory_space<vmem>>, vector<1x9x49xbf16>
    %123 = vector.shape_cast %122 : vector<1x9x49xbf16> to vector<9x49xbf16>
    %cst_115 = arith.constant dense<0.000000e+00> : vector<9x16xf32>
    %124 = tpu.matmul %123, %82, %cst_115 {dimension_numbers = #tpu.dot_dimension_numbers<[1], [0], [0], [1], [0, 0, 1, 1], [], []>} : vector<9x49xbf16>, vector<49x16xbf16>, vector<9x16xf32> -> vector<9x16xf32>
    %125 = arith.truncf %124 : vector<9x16xf32> to vector<9x16xbf16>
    %c5_116 = arith.constant 5 : index
    %c0_117 = arith.constant 0 : index
    %c0_118 = arith.constant 0 : index
    %126 = vector.load %arg8[%c5_116, %c0_117, %c0_118] : memref<9x16x32xbf16, #tpu.memory_space<vmem>>, vector<1x16x32xbf16>
    %127 = vector.shape_cast %126 : vector<1x16x32xbf16> to vector<16x32xbf16>
    %cst_119 = arith.constant dense<0.000000e+00> : vector<9x32xf32>
    %128 = tpu.matmul %125, %127, %cst_119 {dimension_numbers = #tpu.dot_dimension_numbers<[1], [0], [0], [1], [0, 0, 1, 1], [], []>} : vector<9x16xbf16>, vector<16x32xbf16>, vector<9x32xf32> -> vector<9x32xf32>
    %129 = arith.addf %121, %128 : vector<9x32xf32>
    %c6_120 = arith.constant 6 : index
    %c0_121 = arith.constant 0 : index
    %c0_122 = arith.constant 0 : index
    %130 = vector.load %arg7[%c6_120, %c0_121, %c0_122] : memref<9x9x49xbf16, #tpu.memory_space<vmem>>, vector<1x9x49xbf16>
    %131 = vector.shape_cast %130 : vector<1x9x49xbf16> to vector<9x49xbf16>
    %cst_123 = arith.constant dense<0.000000e+00> : vector<9x16xf32>
    %132 = tpu.matmul %131, %82, %cst_123 {dimension_numbers = #tpu.dot_dimension_numbers<[1], [0], [0], [1], [0, 0, 1, 1], [], []>} : vector<9x49xbf16>, vector<49x16xbf16>, vector<9x16xf32> -> vector<9x16xf32>
    %133 = arith.truncf %132 : vector<9x16xf32> to vector<9x16xbf16>
    %c6_124 = arith.constant 6 : index
    %c0_125 = arith.constant 0 : index
    %c0_126 = arith.constant 0 : index
    %134 = vector.load %arg8[%c6_124, %c0_125, %c0_126] : memref<9x16x32xbf16, #tpu.memory_space<vmem>>, vector<1x16x32xbf16>
    %135 = vector.shape_cast %134 : vector<1x16x32xbf16> to vector<16x32xbf16>
    %cst_127 = arith.constant dense<0.000000e+00> : vector<9x32xf32>
    %136 = tpu.matmul %133, %135, %cst_127 {dimension_numbers = #tpu.dot_dimension_numbers<[1], [0], [0], [1], [0, 0, 1, 1], [], []>} : vector<9x16xbf16>, vector<16x32xbf16>, vector<9x32xf32> -> vector<9x32xf32>
    %137 = arith.addf %129, %136 : vector<9x32xf32>
    %c7_128 = arith.constant 7 : index
    %c0_129 = arith.constant 0 : index
    %c0_130 = arith.constant 0 : index
    %138 = vector.load %arg7[%c7_128, %c0_129, %c0_130] : memref<9x9x49xbf16, #tpu.memory_space<vmem>>, vector<1x9x49xbf16>
    %139 = vector.shape_cast %138 : vector<1x9x49xbf16> to vector<9x49xbf16>
    %cst_131 = arith.constant dense<0.000000e+00> : vector<9x16xf32>
    %140 = tpu.matmul %139, %82, %cst_131 {dimension_numbers = #tpu.dot_dimension_numbers<[1], [0], [0], [1], [0, 0, 1, 1], [], []>} : vector<9x49xbf16>, vector<49x16xbf16>, vector<9x16xf32> -> vector<9x16xf32>
    %141 = arith.truncf %140 : vector<9x16xf32> to vector<9x16xbf16>
    %c7_132 = arith.constant 7 : index
    %c0_133 = arith.constant 0 : index
    %c0_134 = arith.constant 0 : index
    %142 = vector.load %arg8[%c7_132, %c0_133, %c0_134] : memref<9x16x32xbf16, #tpu.memory_space<vmem>>, vector<1x16x32xbf16>
    %143 = vector.shape_cast %142 : vector<1x16x32xbf16> to vector<16x32xbf16>
    %cst_135 = arith.constant dense<0.000000e+00> : vector<9x32xf32>
    %144 = tpu.matmul %141, %143, %cst_135 {dimension_numbers = #tpu.dot_dimension_numbers<[1], [0], [0], [1], [0, 0, 1, 1], [], []>} : vector<9x16xbf16>, vector<16x32xbf16>, vector<9x32xf32> -> vector<9x32xf32>
    %145 = arith.addf %137, %144 : vector<9x32xf32>
    %c8_136 = arith.constant 8 : index
    %c0_137 = arith.constant 0 : index
    %c0_138 = arith.constant 0 : index
    %146 = vector.load %arg7[%c8_136, %c0_137, %c0_138] : memref<9x9x49xbf16, #tpu.memory_space<vmem>>, vector<1x9x49xbf16>
    %147 = vector.shape_cast %146 : vector<1x9x49xbf16> to vector<9x49xbf16>
    %cst_139 = arith.constant dense<0.000000e+00> : vector<9x16xf32>
    %148 = tpu.matmul %147, %82, %cst_139 {dimension_numbers = #tpu.dot_dimension_numbers<[1], [0], [0], [1], [0, 0, 1, 1], [], []>} : vector<9x49xbf16>, vector<49x16xbf16>, vector<9x16xf32> -> vector<9x16xf32>
    %149 = arith.truncf %148 : vector<9x16xf32> to vector<9x16xbf16>
    %c8_140 = arith.constant 8 : index
    %c0_141 = arith.constant 0 : index
    %c0_142 = arith.constant 0 : index
    %150 = vector.load %arg8[%c8_140, %c0_141, %c0_142] : memref<9x16x32xbf16, #tpu.memory_space<vmem>>, vector<1x16x32xbf16>
    %151 = vector.shape_cast %150 : vector<1x16x32xbf16> to vector<16x32xbf16>
    %cst_143 = arith.constant dense<0.000000e+00> : vector<9x32xf32>
    %152 = tpu.matmul %149, %151, %cst_143 {dimension_numbers = #tpu.dot_dimension_numbers<[1], [0], [0], [1], [0, 0, 1, 1], [], []>} : vector<9x16xbf16>, vector<16x32xbf16>, vector<9x32xf32> -> vector<9x32xf32>
    %153 = arith.addf %145, %152 : vector<9x32xf32>
    %c0_144 = arith.constant 0 : index
    %c0_145 = arith.constant 0 : index
    %154 = vector.load %arg9[%c0_144, %c0_145] : memref<1x32xf32, #tpu.memory_space<vmem>>, vector<1x32xf32>
    %155 = vector.broadcast %154 : vector<1x32xf32> to vector<9x32xf32>
    %156 = arith.addf %153, %155 : vector<9x32xf32>
    %157 = arith.truncf %156 : vector<9x32xf32> to vector<9x32xbf16>
    %c0_146 = arith.constant 0 : index
    %c0_147 = arith.constant 0 : index
    %158 = vector.load %arg10[%c0_146, %c0_147] : memref<32x128xbf16, #tpu.memory_space<vmem>>, vector<32x128xbf16>
    %cst_148 = arith.constant dense<0.000000e+00> : vector<9x128xf32>
    %159 = tpu.matmul %157, %158, %cst_148 {dimension_numbers = #tpu.dot_dimension_numbers<[1], [0], [0], [1], [0, 0, 1, 1], [], []>} : vector<9x32xbf16>, vector<32x128xbf16>, vector<9x128xf32> -> vector<9x128xf32>
    %c0_149 = arith.constant 0 : index
    %c0_150 = arith.constant 0 : index
    %160 = vector.load %arg11[%c0_149, %c0_150] : memref<1x128xf32, #tpu.memory_space<vmem>>, vector<1x128xf32>
    %161 = vector.broadcast %160 : vector<1x128xf32> to vector<9x128xf32>
    %162 = arith.addf %159, %161 : vector<9x128xf32>
    %163 = vector.extract_strided_slice %162 {offsets = [0, 0], sizes = [9, 1], strides = [1, 1]} : vector<9x128xf32> to vector<9x1xf32>
    %164 = vector.extract_strided_slice %162 {offsets = [0, 1], sizes = [9, 1], strides = [1, 1]} : vector<9x128xf32> to vector<9x1xf32>
    %c0_151 = arith.constant 0 : index
    %c0_152 = arith.constant 0 : index
    %c0_153 = arith.constant 0 : index
    %165 = vector.load %arg12[%c0_151, %c0_152, %c0_153] : memref<1x9x1xf32, #tpu.memory_space<vmem>>, vector<1x9x1xf32>
    %166 = vector.shape_cast %165 : vector<1x9x1xf32> to vector<9x1xf32>
    %cst_154 = arith.constant 5.000000e-01 : f32
    %167 = vector.broadcast %cst_154 : f32 to vector<9x1xf32>
    %168 = arith.mulf %167, %164 : vector<9x1xf32>
    %169 = math.exp %168 : vector<9x1xf32>
    %170 = arith.mulf %166, %169 : vector<9x1xf32>
    %171 = arith.addf %163, %170 : vector<9x1xf32>
    %172 = tpu.iota {dimensions = array<i32: 1>} : vector<9x128xi32>
    %c2_i32 = arith.constant 2 : i32
    %173 = vector.broadcast %c2_i32 : i32 to vector<9x128xi32>
    %174 = arith.cmpi eq, %172, %173 : vector<9x128xi32>
    %cst_155 = arith.constant 0.000000e+00 : f32
    %175 = vector.shape_cast %171 : vector<9x1xf32> to vector<9x1xf32>
    %176 = vector.broadcast %175 : vector<9x1xf32> to vector<9x128xf32>
    %177 = vector.broadcast %cst_155 : f32 to vector<9x128xf32>
    %178 = arith.select %174, %176, %177 : vector<9x128xi1>, vector<9x128xf32>
    %179 = arith.addf %162, %178 : vector<9x128xf32>
    %c0_156 = arith.constant 0 : index
    %c0_157 = arith.constant 0 : index
    %c0_158 = arith.constant 0 : index
    %180 = vector.load %arg13[%c0_156, %c0_157, %c0_158] : memref<1x9x128xf32, #tpu.memory_space<vmem>>, vector<1x9x128xf32>
    %181 = vector.shape_cast %180 : vector<1x9x128xf32> to vector<9x128xf32>
    %182 = vector.shape_cast %179 : vector<9x128xf32> to vector<1x9x128xf32>
    tpu.vector_store %arg13[%c0_156, %c0_157, %c0_158], %182 {strides = array<i32>} : memref<1x9x128xf32, #tpu.memory_space<vmem>>, vector<1x9x128xf32>,
    return
  }
  func.func @transform_0(%arg0: i32) -> (i32, i32, i32) {
    %c0_i32 = arith.constant 0 : i32
    %c0_i32_0 = arith.constant 0 : i32
    %c0_i32_1 = arith.constant 0 : i32
    return %arg0, %c0_i32, %c0_i32_0 : i32, i32, i32
  }
  func.func @transform_1(%arg0: i32) -> (i32, i32) {
    %c0_i32 = arith.constant 0 : i32
    %c0_i32_0 = arith.constant 0 : i32
    %c0_i32_1 = arith.constant 0 : i32
    return %c0_i32, %c0_i32_0 : i32, i32
  }
  func.func @transform_2(%arg0: i32) -> (i32, i32) {
    %c0_i32 = arith.constant 0 : i32
    %c0_i32_0 = arith.constant 0 : i32
    %c0_i32_1 = arith.constant 0 : i32
    return %c0_i32, %c0_i32_0 : i32, i32
  }
  func.func @transform_3(%arg0: i32) -> (i32, i32, i32) {
    %c0_i32 = arith.constant 0 : i32
    %c0_i32_0 = arith.constant 0 : i32
    %c0_i32_1 = arith.constant 0 : i32
    %c0_i32_2 = arith.constant 0 : i32
    return %c0_i32, %c0_i32_0, %c0_i32_1 : i32, i32, i32
  }
  func.func @transform_4(%arg0: i32) -> (i32, i32, i32) {
    %c0_i32 = arith.constant 0 : i32
    %c0_i32_0 = arith.constant 0 : i32
    %c0_i32_1 = arith.constant 0 : i32
    %c0_i32_2 = arith.constant 0 : i32
    return %c0_i32, %c0_i32_0, %c0_i32_1 : i32, i32, i32
  }
  func.func @transform_5(%arg0: i32) -> (i32, i32) {
    %c0_i32 = arith.constant 0 : i32
    %c0_i32_0 = arith.constant 0 : i32
    %c0_i32_1 = arith.constant 0 : i32
    return %c0_i32, %c0_i32_0 : i32, i32
  }
  func.func @transform_6(%arg0: i32) -> (i32, i32, i32) {
    %c0_i32 = arith.constant 0 : i32
    %c0_i32_0 = arith.constant 0 : i32
    %c0_i32_1 = arith.constant 0 : i32
    %c0_i32_2 = arith.constant 0 : i32
    return %c0_i32, %c0_i32_0, %c0_i32_1 : i32, i32, i32
  }
  func.func @transform_7(%arg0: i32) -> (i32, i32, i32) {
    %c0_i32 = arith.constant 0 : i32
    %c0_i32_0 = arith.constant 0 : i32
    %c0_i32_1 = arith.constant 0 : i32
    %c0_i32_2 = arith.constant 0 : i32
    return %c0_i32, %c0_i32_0, %c0_i32_1 : i32, i32, i32
  }
  func.func @transform_8(%arg0: i32) -> (i32, i32) {
    %c0_i32 = arith.constant 0 : i32
    %c0_i32_0 = arith.constant 0 : i32
    %c0_i32_1 = arith.constant 0 : i32
    return %c0_i32, %c0_i32_0 : i32, i32
  }
  func.func @transform_9(%arg0: i32) -> (i32, i32) {
    %c0_i32 = arith.constant 0 : i32
    %c0_i32_0 = arith.constant 0 : i32
    %c0_i32_1 = arith.constant 0 : i32
    return %c0_i32, %c0_i32_0 : i32, i32
  }
  func.func @transform_10(%arg0: i32) -> (i32, i32) {
    %c0_i32 = arith.constant 0 : i32
    %c0_i32_0 = arith.constant 0 : i32
    %c0_i32_1 = arith.constant 0 : i32
    return %c0_i32, %c0_i32_0 : i32, i32
  }
  func.func @transform_11(%arg0: i32) -> (i32, i32, i32) {
    %c0_i32 = arith.constant 0 : i32
    %c0_i32_0 = arith.constant 0 : i32
    %c0_i32_1 = arith.constant 0 : i32
    return %arg0, %c0_i32, %c0_i32_0 : i32, i32, i32
  }
  func.func @transform_12(%arg0: i32) -> (i32, i32, i32) {
    %c0_i32 = arith.constant 0 : i32
    %c0_i32_0 = arith.constant 0 : i32
    %c0_i32_1 = arith.constant 0 : i32
    return %arg0, %c0_i32, %c0_i32_0 : i32, i32, i32
  }
}

</mosaic_0001>

<llo_original>
// kernel: squeeze.0
$region0: #{squeeze.0}
  %s0 = inlined_call_operand.vmem [shape: f32[2,9], index: 0, kind: input, shape index: {}]
  %s1 = inlined_call_operand.hbm [shape: f32[2,3,3,1], index: 1, kind: output, shape index: {}]
  $region1: #{squeeze.0} parent=0
    #allocation0 [shape = 'u8[3072]{0}', space=vmem, size = 0xc00, scoped, tag = 'operand span for operand 1']
    #allocation1 [shape = 's32[1]{0}', space=sflag, size = 0x4, scoped, tag = 'scoped memory for squeeze.0']
    #allocation2 [shape = 'u8[24576]{0}', space=vmem, size = 0x6000, scoped, tag = 'scoped mem for output reshape']
    #allocation3 [shape = 'u8[4096]{0}', space=vmem, size = 0x1000, scoped, tag = 'scoped mem for input reshape']
    %2 = vsyncpa [#allocation1], 0
    %s4 = ssub.s32 4, 1
    %v5 = vld [vmem:[%s0] sm:%s4]
    %6 = vst [vmem:[#allocation3] sm:%s4] %v5
    %v7 = vld [vmem:[#allocation3] sm:$0x3]
    %vm8 = vcmask 23552
    %9 = vst.msk [vmem:[#allocation2] ss:$24 sm:$0x3] %vm8, %v7
    %s10 = scalar_lea.vmem [#allocation3], 1
    %s11 = smov 3
    %v12 = vld [vmem:[%s10] ss:$-1 sm:%s11]
    %13 = vrot.lane.b32.xlu0 %v12, 125
    %v14 = vpop.permute.xlu0 %13
    %vm15 = vcmask 23552
    %s16 = scalar_lea.vmem [#allocation2], 32
    %17 = vst.msk [vmem:[%s16] ss:$-24 sm:$0x3] %vm15, %v14
    %s18 = scalar_lea.vmem [#allocation3], 1
    %s19 = smov 3
    %v20 = vld [vmem:[%s18] ss:$-1 sm:%s19]
    %21 = vrot.lane.b32.xlu0 %v20, 122
    %v22 = vpop.permute.xlu0 %21
    %vm23 = vcmask 23552
    %s24 = scalar_lea.vmem [#allocation2], 40
    %25 = vst.msk [vmem:[%s24] ss:$-24 sm:$0x3] %vm23, %v22
    %s27 = ssub.s32 2, 1
    %v28 = vld [vmem:[#allocation2] sm:%s27]
    %s30 = ssub.s32 2, 1
    %31 = vst [vmem:[#allocation0] sm:%s30] %v28
    %s32 = scalar_lea.vmem [#allocation2], 8
    %v33 = vld [vmem:[%s32] sm:%s27]
    %s35 = ssub.s32 2, 1
    %s36 = scalar_lea.vmem [#allocation0], 1
    %37 = vst [vmem:[%s36] sm:%s35] %v33
    %s38 = scalar_lea.vmem [#allocation2], 16
    %v39 = vld [vmem:[%s38] sm:%s27]
    %s41 = ssub.s32 2, 1
    %s42 = scalar_lea.vmem [#allocation0], 2
    %43 = vst [vmem:[%s42] sm:%s41] %v39
    %s44 = scalar_lea.vmem [#allocation2], 24
    %v45 = vld [vmem:[%s44] sm:%s27]
    %s47 = ssub.s32 2, 1
    %s48 = scalar_lea.vmem [#allocation0], 3
    %49 = vst [vmem:[%s48] sm:%s47] %v45
    %s50 = scalar_lea.vmem [#allocation2], 32
    %v51 = vld [vmem:[%s50] sm:%s27]
    %s53 = ssub.s32 2, 1
    %s54 = scalar_lea.vmem [#allocation0], 4
    %55 = vst [vmem:[%s54] sm:%s53] %v51
    %s56 = scalar_lea.vmem [#allocation2], 40
    %v57 = vld [vmem:[%s56] sm:%s27]
    %s59 = ssub.s32 2, 1
    %s60 = scalar_lea.vmem [#allocation0], 5
    %61 = vst [vmem:[%s60] sm:%s59] %v57
    %63 = vsyncadd [#allocation1], 0
    %s65 = sshll.u32 [#allocation0], 4
    %s66 = int_to_ptr.vmem [resolvable:$true] %s65
    %s67 = sshll.u32 %s1, 4
    %s68 = int_to_ptr.hbm [resolvable:$true] %s67
    %70 = dma.vmem_to_hbm [thread:$0]  %s66, 96, %s68, [#allocation1]
    %72 = dma.done [#allocation1], 96
    %73 = vsyncpa [#allocation1], 1

// kernel: stochastic_inference_forward.1
$region0: #{stochastic_inference_forward.1}
  #allocation0 [shape = 'u32[]', space=smem, size = 0x4, offset = 0x4, fixed_abs, tag = 'smem constant byte address 0x4 - core index']
  #allocation1 [shape = 'u32[72,128]{1,0:T(1,128)}', space=vmem, size = 0x9000, scoped, tag = 'internal scratch']
  %s0 = inlined_call_operand.vmem [shape: bf16[2,225,45], index: 0, kind: input, shape index: {}]
  %s1 = inlined_call_operand.vmem [shape: bf16[45,8], index: 1, kind: input, shape index: {}]
  %s2 = inlined_call_operand.vmem [shape: f32[1,8], index: 2, kind: input, shape index: {}]
  %s3 = inlined_call_operand.vmem [shape: bf16[9,49,225], index: 3, kind: input, shape index: {}]
  %s4 = inlined_call_operand.vmem [shape: bf16[9,8,16], index: 4, kind: input, shape index: {}]
  %s5 = inlined_call_operand.vmem [shape: f32[1,16], index: 5, kind: input, shape index: {}]
  %s6 = inlined_call_operand.vmem [shape: bf16[9,9,49], index: 6, kind: input, shape index: {}]
  %s7 = inlined_call_operand.vmem [shape: bf16[9,16,32], index: 7, kind: input, shape index: {}]
  %s8 = inlined_call_operand.vmem [shape: f32[1,32], index: 8, kind: input, shape index: {}]
  %s9 = inlined_call_operand.vmem [shape: bf16[32,128], index: 9, kind: input, shape index: {}]
  %s10 = inlined_call_operand.vmem [shape: f32[1,128], index: 10, kind: input, shape index: {}]
  %s11 = inlined_call_operand.vmem [shape: f32[2,9,1], index: 11, kind: input, shape index: {}]
  %s12 = inlined_call_operand.vmem [shape: f32[2,9,128], index: 12, kind: output, shape index: {}]
  %s13 = sld [smem:[#allocation0]]
  $region81: #{stochastic_inference_forward.1} parent=0
    _
  %s15 = ssub.s32 1, %s13
  %s16 = scalar_select 0, %s15, %s13
  loop: start=0, step=1, limit=4
  $region2: #{stochastic_inference_forward.1} parent=0 // loop_pre_header
    _
  $region3: #{stochastic_inference_forward.1} parent=0 // loop_header
    %s18 = sphi 0, %s22
    %p19 = scmp.ge.s32.totalorder %s18, 4
    %s28 = sphi 0, %s30
    %s31 = sphi 0, %s28
    %s32 = sphi 0, %s31
    %s48 = sphi 0, %s32
    %s52 = sphi 0, %s52
    %s54 = sphi 0, %s52
    %s55 = sphi 0, %s54
    %s69 = sphi 0, %s55
    %s73 = sphi 0, %s73
    %s75 = sphi 0, %s73
    %s76 = sphi 0, %s75
    %s90 = sphi 0, %s76
    %s94 = sphi 0, %s94
    %s96 = sphi 0, %s94
    %s97 = sphi 0, %s96
    %s111 = sphi 0, %s97
    %s115 = sphi 0, %s115
    %s117 = sphi 0, %s115
    %s118 = sphi 0, %s117
    %s132 = sphi 0, %s118
    %s136 = sphi 0, %s136
    %s138 = sphi 0, %s136
    %s139 = sphi 0, %s138
    %s153 = sphi 0, %s139
    %s157 = sphi 0, %s157
    %s159 = sphi 0, %s157
    %s160 = sphi 0, %s159
    %s174 = sphi 0, %s160
    %s178 = sphi 0, %s178
    %s180 = sphi 0, %s178
    %s181 = sphi 0, %s180
    %s195 = sphi 0, %s181
    %s199 = sphi 0, %s199
    %s201 = sphi 0, %s199
    %s202 = sphi 0, %s201
    %s216 = sphi 0, %s202
    %s220 = sphi 0, %s220
    %s222 = sphi 0, %s220
    %s223 = sphi 0, %s222
    %s237 = sphi 0, %s223
    %s241 = sphi 0, %s241
    %s243 = sphi 0, %s241
    %s244 = sphi 0, %s243
    %s258 = sphi 0, %s244
    %s264 = sphi 0, %s266
    %s267 = sphi 0, %s264
    %s268 = sphi 0, %s267
    %s284 = sphi 0, %s268
    %s290 = sphi 0, %s292
    %s293 = sphi 0, %s290
    %s294 = sphi 0, %s293
    %s310 = sphi 0, %s294
  $region4: #{stochastic_inference_forward.1} parent=0 // loop_header_branch
    %21 = sbr.rel (%p19) target = $region8
  $region5: #{stochastic_inference_forward.1} parent=0 // loop_body
    %s23 = ssub.s32 %s18, 1
    %s24 = ssub.s32 %s18, 2
    %s25 = sadd.s32 %s18, 1
    %s26 = ssub.s32 %s18, %s25
    %p27 = scmp.eq.s32.totalorder %s26, 0
    %s29 = sadd.s32 %s28, 1
    %s30 = scalar_select %p27, %s28, %s29
    %p33 = pneg %p27
    %p34 = scmp.eq.s32.totalorder %s18, 1
    %p35 = por %p33, %p34
    %p36 = scmp.ne.s32.totalorder %s28, %s31
    %p37 = scmp.eq.s32.totalorder %s18, 0
    %p38 = por %p36, %p37
    %p39 = scmp.ne.s32.totalorder %s28, %s31
    %p40 = scmp.eq.s32.totalorder %s23, 1
    %p41 = por %p39, %p40
    %p42 = scmp.ne.s32.totalorder %s31, %s32
    %p43 = scmp.eq.s32.totalorder %s23, 0
    %p44 = por %p42, %p43
    %p45 = scmp.ne.s32.totalorder %s31, %s32
    %p46 = scmp.eq.s32.totalorder %s24, 1
    %p47 = por %p45, %p46
    %p49 = scmp.ne.s32.totalorder %s32, %s48
    %p50 = scmp.eq.s32.totalorder %s24, 0
    %p51 = por %p49, %p50
    %s53 = sadd.s32 %s52, 1
    %p56 = scmp.eq.s32.totalorder %s18, 1
    %p57 = scmp.ne.s32.totalorder %s52, %s54
    %p58 = scmp.eq.s32.totalorder %s18, 0
    %p59 = por %p57, %p58
    %p60 = scmp.ne.s32.totalorder %s52, %s54
    %p61 = scmp.eq.s32.totalorder %s23, 1
    %p62 = por %p60, %p61
    %p63 = scmp.ne.s32.totalorder %s54, %s55
    %p64 = scmp.eq.s32.totalorder %s23, 0
    %p65 = por %p63, %p64
    %p66 = scmp.ne.s32.totalorder %s54, %s55
    %p67 = scmp.eq.s32.totalorder %s24, 1
    %p68 = por %p66, %p67
    %p70 = scmp.ne.s32.totalorder %s55, %s69
    %p71 = scmp.eq.s32.totalorder %s24, 0
    %p72 = por %p70, %p71
    %s74 = sadd.s32 %s73, 1
    %p77 = scmp.eq.s32.totalorder %s18, 1
    %p78 = scmp.ne.s32.totalorder %s73, %s75
    %p79 = scmp.eq.s32.totalorder %s18, 0
    %p80 = por %p78, %p79
    %p81 = scmp.ne.s32.totalorder %s73, %s75
    %p82 = scmp.eq.s32.totalorder %s23, 1
    %p83 = por %p81, %p82
    %p84 = scmp.ne.s32.totalorder %s75, %s76
    %p85 = scmp.eq.s32.totalorder %s23, 0
    %p86 = por %p84, %p85
    %p87 = scmp.ne.s32.totalorder %s75, %s76
    %p88 = scmp.eq.s32.totalorder %s24, 1
    %p89 = por %p87, %p88
    %p91 = scmp.ne.s32.totalorder %s76, %s90
    %p92 = scmp.eq.s32.totalorder %s24, 0
    %p93 = por %p91, %p92
    %s95 = sadd.s32 %s94, 1
    %p98 = scmp.eq.s32.totalorder %s18, 1
    %p99 = scmp.ne.s32.totalorder %s94, %s96
    %p100 = scmp.eq.s32.totalorder %s18, 0
    %p101 = por %p99, %p100
    %p102 = scmp.ne.s32.totalorder %s94, %s96
    %p103 = scmp.eq.s32.totalorder %s23, 1
    %p104 = por %p102, %p103
    %p105 = scmp.ne.s32.totalorder %s96, %s97
    %p106 = scmp.eq.s32.totalorder %s23, 0
    %p107 = por %p105, %p106
    %p108 = scmp.ne.s32.totalorder %s96, %s97
    %p109 = scmp.eq.s32.totalorder %s24, 1
    %p110 = por %p108, %p109
    %p112 = scmp.ne.s32.totalorder %s97, %s111
    %p113 = scmp.eq.s32.totalorder %s24, 0
    %p114 = por %p112, %p113
    %s116 = sadd.s32 %s115, 1
    %p119 = scmp.eq.s32.totalorder %s18, 1
    %p120 = scmp.ne.s32.totalorder %s115, %s117
    %p121 = scmp.eq.s32.totalorder %s18, 0
    %p122 = por %p120, %p121
    %p123 = scmp.ne.s32.totalorder %s115, %s117
    %p124 = scmp.eq.s32.totalorder %s23, 1
    %p125 = por %p123, %p124
    %p126 = scmp.ne.s32.totalorder %s117, %s118
    %p127 = scmp.eq.s32.totalorder %s23, 0
    %p128 = por %p126, %p127
    %p129 = scmp.ne.s32.totalorder %s117, %s118
    %p130 = scmp.eq.s32.totalorder %s24, 1
    %p131 = por %p129, %p130
    %p133 = scmp.ne.s32.totalorder %s118, %s132
    %p134 = scmp.eq.s32.totalorder %s24, 0
    %p135 = por %p133, %p134
    %s137 = sadd.s32 %s136, 1
    %p140 = scmp.eq.s32.totalorder %s18, 1
    %p141 = scmp.ne.s32.totalorder %s136, %s138
    %p142 = scmp.eq.s32.totalorder %s18, 0
    %p143 = por %p141, %p142
    %p144 = scmp.ne.s32.totalorder %s136, %s138
    %p145 = scmp.eq.s32.totalorder %s23, 1
    %p146 = por %p144, %p145
    %p147 = scmp.ne.s32.totalorder %s138, %s139
    %p148 = scmp.eq.s32.totalorder %s23, 0
    %p149 = por %p147, %p148
    %p150 = scmp.ne.s32.totalorder %s138, %s139
    %p151 = scmp.eq.s32.totalorder %s24, 1
    %p152 = por %p150, %p151
    %p154 = scmp.ne.s32.totalorder %s139, %s153
    %p155 = scmp.eq.s32.totalorder %s24, 0
    %p156 = por %p154, %p155
    %s158 = sadd.s32 %s157, 1
    %p161 = scmp.eq.s32.totalorder %s18, 1
    %p162 = scmp.ne.s32.totalorder %s157, %s159
    %p163 = scmp.eq.s32.totalorder %s18, 0
    %p164 = por %p162, %p163
    %p165 = scmp.ne.s32.totalorder %s157, %s159
    %p166 = scmp.eq.s32.totalorder %s23, 1
    %p167 = por %p165, %p166
    %p168 = scmp.ne.s32.totalorder %s159, %s160
    %p169 = scmp.eq.s32.totalorder %s23, 0
    %p170 = por %p168, %p169
    %p171 = scmp.ne.s32.totalorder %s159, %s160
    %p172 = scmp.eq.s32.totalorder %s24, 1
    %p173 = por %p171, %p172
    %p175 = scmp.ne.s32.totalorder %s160, %s174
    %p176 = scmp.eq.s32.totalorder %s24, 0
    %p177 = por %p175, %p176
    %s179 = sadd.s32 %s178, 1
    %p182 = scmp.eq.s32.totalorder %s18, 1
    %p183 = scmp.ne.s32.totalorder %s178, %s180
    %p184 = scmp.eq.s32.totalorder %s18, 0
    %p185 = por %p183, %p184
    %p186 = scmp.ne.s32.totalorder %s178, %s180
    %p187 = scmp.eq.s32.totalorder %s23, 1
    %p188 = por %p186, %p187
    %p189 = scmp.ne.s32.totalorder %s180, %s181
    %p190 = scmp.eq.s32.totalorder %s23, 0
    %p191 = por %p189, %p190
    %p192 = scmp.ne.s32.totalorder %s180, %s181
    %p193 = scmp.eq.s32.totalorder %s24, 1
    %p194 = por %p192, %p193
    %p196 = scmp.ne.s32.totalorder %s181, %s195
    %p197 = scmp.eq.s32.totalorder %s24, 0
    %p198 = por %p196, %p197
    %s200 = sadd.s32 %s199, 1
    %p203 = scmp.eq.s32.totalorder %s18, 1
    %p204 = scmp.ne.s32.totalorder %s199, %s201
    %p205 = scmp.eq.s32.totalorder %s18, 0
    %p206 = por %p204, %p205
    %p207 = scmp.ne.s32.totalorder %s199, %s201
    %p208 = scmp.eq.s32.totalorder %s23, 1
    %p209 = por %p207, %p208
    %p210 = scmp.ne.s32.totalorder %s201, %s202
    %p211 = scmp.eq.s32.totalorder %s23, 0
    %p212 = por %p210, %p211
    %p213 = scmp.ne.s32.totalorder %s201, %s202
    %p214 = scmp.eq.s32.totalorder %s24, 1
    %p215 = por %p213, %p214
    %p217 = scmp.ne.s32.totalorder %s202, %s216
    %p218 = scmp.eq.s32.totalorder %s24, 0
    %p219 = por %p217, %p218
    %s221 = sadd.s32 %s220, 1
    %p224 = scmp.eq.s32.totalorder %s18, 1
    %p225 = scmp.ne.s32.totalorder %s220, %s222
    %p226 = scmp.eq.s32.totalorder %s18, 0
    %p227 = por %p225, %p226
    %p228 = scmp.ne.s32.totalorder %s220, %s222
    %p229 = scmp.eq.s32.totalorder %s23, 1
    %p230 = por %p228, %p229
    %p231 = scmp.ne.s32.totalorder %s222, %s223
    %p232 = scmp.eq.s32.totalorder %s23, 0
    %p233 = por %p231, %p232
    %p234 = scmp.ne.s32.totalorder %s222, %s223
    %p235 = scmp.eq.s32.totalorder %s24, 1
    %p236 = por %p234, %p235
    %p238 = scmp.ne.s32.totalorder %s223, %s237
    %p239 = scmp.eq.s32.totalorder %s24, 0
    %p240 = por %p238, %p239
    %s242 = sadd.s32 %s241, 1
    %p245 = scmp.eq.s32.totalorder %s18, 1
    %p246 = scmp.ne.s32.totalorder %s241, %s243
    %p247 = scmp.eq.s32.totalorder %s18, 0
    %p248 = por %p246, %p247
    %p249 = scmp.ne.s32.totalorder %s241, %s243
    %p250 = scmp.eq.s32.totalorder %s23, 1
    %p251 = por %p249, %p250
    %p252 = scmp.ne.s32.totalorder %s243, %s244
    %p253 = scmp.eq.s32.totalorder %s23, 0
    %p254 = por %p252, %p253
    %p255 = scmp.ne.s32.totalorder %s243, %s244
    %p256 = scmp.eq.s32.totalorder %s24, 1
    %p257 = por %p255, %p256
    %p259 = scmp.ne.s32.totalorder %s244, %s258
    %p260 = scmp.eq.s32.totalorder %s24, 0
    %p261 = por %p259, %p260
    %s262 = ssub.s32 %s18, %s25
    %p263 = scmp.eq.s32.totalorder %s262, 0
    %s265 = sadd.s32 %s264, 1
    %s266 = scalar_select %p263, %s264, %s265
    %p269 = pneg %p263
    %p270 = scmp.eq.s32.totalorder %s18, 1
    %p271 = por %p269, %p270
    %p272 = scmp.ne.s32.totalorder %s264, %s267
    %p273 = scmp.eq.s32.totalorder %s18, 0
    %p274 = por %p272, %p273
    %p275 = scmp.ne.s32.totalorder %s264, %s267
    %p276 = scmp.eq.s32.totalorder %s23, 1
    %p277 = por %p275, %p276
    %p278 = scmp.ne.s32.totalorder %s267, %s268
    %p279 = scmp.eq.s32.totalorder %s23, 0
    %p280 = por %p278, %p279
    %p281 = scmp.ne.s32.totalorder %s267, %s268
    %p282 = scmp.eq.s32.totalorder %s24, 1
    %p283 = por %p281, %p282
    %p285 = scmp.ne.s32.totalorder %s268, %s284
    %p286 = scmp.eq.s32.totalorder %s24, 0
    %p287 = por %p285, %p286
    %s288 = ssub.s32 %s18, %s25
    %p289 = scmp.eq.s32.totalorder %s288, 0
    %s291 = sadd.s32 %s290, 1
    %s292 = scalar_select %p289, %s290, %s291
    %p295 = pneg %p289
    %p296 = scmp.eq.s32.totalorder %s18, 1
    %p297 = por %p295, %p296
    %p298 = scmp.ne.s32.totalorder %s290, %s293
    %p299 = scmp.eq.s32.totalorder %s18, 0
    %p300 = por %p298, %p299
    %p301 = scmp.ne.s32.totalorder %s290, %s293
    %p302 = scmp.eq.s32.totalorder %s23, 1
    %p303 = por %p301, %p302
    %p304 = scmp.ne.s32.totalorder %s293, %s294
    %p305 = scmp.eq.s32.totalorder %s23, 0
    %p306 = por %p304, %p305
    %p307 = scmp.ne.s32.totalorder %s293, %s294
    %p308 = scmp.eq.s32.totalorder %s24, 1
    %p309 = por %p307, %p308
    %p311 = scmp.ne.s32.totalorder %s294, %s310
    %p312 = scmp.eq.s32.totalorder %s24, 0
    %p313 = por %p311, %p312
    %p314 = scmp.le.s32.totalorder 1, %s18
    %p315 = scmp.lt.s32.totalorder %s18, 3
    %p316 = pnand %p314, %p315
    %p317 = pneg %p316
    // Predicated region
    $region9: #{stochastic_inference_forward.1} parent=5 // pred_check
      _
    $region10: #{stochastic_inference_forward.1} parent=5 // pred_check_branch
      %319 = sbr.rel (%p316) target = $region12
    $region11: #{stochastic_inference_forward.1} parent=5 // pred_region
      %s320 = ssub.s32 %s18, 1
      // Predicated region
      $region13: #{stochastic_inference_forward.1} parent=11 // pred_check
        %p321 = pneg %p65
      $region14: #{stochastic_inference_forward.1} parent=11 // pred_check_branch
        %323 = sbr.rel (%p321) target = $region16
      $region15: #{stochastic_inference_forward.1} parent=11 // pred_region
        _
      $region16: #{stochastic_inference_forward.1} parent=11 // pred_fallthru
        _
      // Predicated region
      $region17: #{stochastic_inference_forward.1} parent=11 // pred_check
        %p324 = pneg %p86
      $region18: #{stochastic_inference_forward.1} parent=11 // pred_check_branch
        %326 = sbr.rel (%p324) target = $region20
      $region19: #{stochastic_inference_forward.1} parent=11 // pred_region
        _
      $region20: #{stochastic_inference_forward.1} parent=11 // pred_fallthru
        _
      // Predicated region
      $region21: #{stochastic_inference_forward.1} parent=11 // pred_check
        %p327 = pneg %p107
      $region22: #{stochastic_inference_forward.1} parent=11 // pred_check_branch
        %329 = sbr.rel (%p327) target = $region24
      $region23: #{stochastic_inference_forward.1} parent=11 // pred_region
        _
      $region24: #{stochastic_inference_forward.1} parent=11 // pred_fallthru
        _
      // Predicated region
      $region25: #{stochastic_inference_forward.1} parent=11 // pred_check
        %p330 = pneg %p128
      $region26: #{stochastic_inference_forward.1} parent=11 // pred_check_branch
        %332 = sbr.rel (%p330) target = $region28
      $region27: #{stochastic_inference_forward.1} parent=11 // pred_region
        _
      $region28: #{stochastic_inference_forward.1} parent=11 // pred_fallthru
        _
      // Predicated region
      $region29: #{stochastic_inference_forward.1} parent=11 // pred_check
        %p333 = pneg %p149
      $region30: #{stochastic_inference_forward.1} parent=11 // pred_check_branch
        %335 = sbr.rel (%p333) target = $region32
      $region31: #{stochastic_inference_forward.1} parent=11 // pred_region
        _
      $region32: #{stochastic_inference_forward.1} parent=11 // pred_fallthru
        _
      // Predicated region
      $region33: #{stochastic_inference_forward.1} parent=11 // pred_check
        %p336 = pneg %p170
      $region34: #{stochastic_inference_forward.1} parent=11 // pred_check_branch
        %338 = sbr.rel (%p336) target = $region36
      $region35: #{stochastic_inference_forward.1} parent=11 // pred_region
        _
      $region36: #{stochastic_inference_forward.1} parent=11 // pred_fallthru
        _
      // Predicated region
      $region37: #{stochastic_inference_forward.1} parent=11 // pred_check
        %p339 = pneg %p191
      $region38: #{stochastic_inference_forward.1} parent=11 // pred_check_branch
        %341 = sbr.rel (%p339) target = $region40
      $region39: #{stochastic_inference_forward.1} parent=11 // pred_region
        _
      $region40: #{stochastic_inference_forward.1} parent=11 // pred_fallthru
        _
      // Predicated region
      $region41: #{stochastic_inference_forward.1} parent=11 // pred_check
        %p342 = pneg %p212
      $region42: #{stochastic_inference_forward.1} parent=11 // pred_check_branch
        %344 = sbr.rel (%p342) target = $region44
      $region43: #{stochastic_inference_forward.1} parent=11 // pred_region
        _
      $region44: #{stochastic_inference_forward.1} parent=11 // pred_fallthru
        _
      // Predicated region
      $region45: #{stochastic_inference_forward.1} parent=11 // pred_check
        %p345 = pneg %p233
      $region46: #{stochastic_inference_forward.1} parent=11 // pred_check_branch
        %347 = sbr.rel (%p345) target = $region48
      $region47: #{stochastic_inference_forward.1} parent=11 // pred_region
        _
      $region48: #{stochastic_inference_forward.1} parent=11 // pred_fallthru
        _
      // Predicated region
      $region49: #{stochastic_inference_forward.1} parent=11 // pred_check
        %p348 = pneg %p254
      $region50: #{stochastic_inference_forward.1} parent=11 // pred_check_branch
        %350 = sbr.rel (%p348) target = $region52
      $region51: #{stochastic_inference_forward.1} parent=11 // pred_region
        _
      $region52: #{stochastic_inference_forward.1} parent=11 // pred_fallthru
        _
    $region12: #{stochastic_inference_forward.1} parent=5 // pred_fallthru
      _
    %p351 = scmp.lt.s32.totalorder %s18, 2
    // Predicated region
    $region53: #{stochastic_inference_forward.1} parent=5 // pred_check
      %p352 = pneg %p351
    $region54: #{stochastic_inference_forward.1} parent=5 // pred_check_branch
      %354 = sbr.rel (%p352) target = $region56
    $region55: #{stochastic_inference_forward.1} parent=5 // pred_region
      // Predicated region
      $region57: #{stochastic_inference_forward.1} parent=55 // pred_check
        %p355 = pneg %p38
      $region58: #{stochastic_inference_forward.1} parent=55 // pred_check_branch
        %357 = sbr.rel (%p355) target = $region60
      $region59: #{stochastic_inference_forward.1} parent=55 // pred_region
        %p358 = scmp.lt.s32.totalorder %s18, 1
        %s359 = scalar_select %p358, %s18, 1
        %s360 = smul.addr %s359, 29
        %s361 = smul.addr %s360, 4
        %s362 = scalar_lea.vmem %s0, %s361
      $region60: #{stochastic_inference_forward.1} parent=55 // pred_fallthru
        _
      // Predicated region
      $region61: #{stochastic_inference_forward.1} parent=55 // pred_check
        %p363 = pneg %p274
      $region62: #{stochastic_inference_forward.1} parent=55 // pred_check_branch
        %365 = sbr.rel (%p363) target = $region64
      $region63: #{stochastic_inference_forward.1} parent=55 // pred_region
        %p366 = scmp.lt.s32.totalorder %s18, 1
        %s367 = scalar_select %p366, %s18, 1
        %s368 = smul.addr %s367, 2
        %s369 = smul.addr %s368, 8
        %s370 = scalar_lea.vmem %s11, %s369
      $region64: #{stochastic_inference_forward.1} parent=55 // pred_fallthru
        _
    $region56: #{stochastic_inference_forward.1} parent=5 // pred_fallthru
      _
    %p371 = scmp.le.s32.totalorder 1, %s18
    %p372 = scmp.lt.s32.totalorder %s18, 3
    %p373 = pnand %p371, %p372
    %p374 = pneg %p373
    // Predicated region
    $region65: #{stochastic_inference_forward.1} parent=5 // pred_check
      _
    $region66: #{stochastic_inference_forward.1} parent=5 // pred_check_branch
      %376 = sbr.rel (%p373) target = $region68
    $region67: #{stochastic_inference_forward.1} parent=5 // pred_region
      %s377 = ssub.s32 %s18, 1
      %p378 = scmp.lt.s32.totalorder %s23, 1
      %s379 = scalar_select %p378, %s23, 1
      %s380 = smul.addr %s379, 29
      %s381 = smul.addr %s380, 4
      %s382 = scalar_lea.vmem %s0, %s381
      %p383 = pneg %p44
      %p384 = pneg %p41
      %p385 = pneg %p65
      %p386 = pneg %p62
      %p387 = pneg %p86
      %p388 = pneg %p83
      %p389 = pneg %p107
      %p390 = pneg %p104
      %p391 = pneg %p128
      %p392 = pneg %p125
      %p393 = pneg %p149
      %p394 = pneg %p146
      %p395 = pneg %p170
      %p396 = pneg %p167
      %p397 = pneg %p191
      %p398 = pneg %p188
      %p399 = pneg %p212
      %p400 = pneg %p209
      %p401 = pneg %p233
      %p402 = pneg %p230
      %p403 = pneg %p254
      %p404 = pneg %p251
      %p405 = scmp.lt.s32.totalorder %s23, 1
      %s406 = scalar_select %p405, %s23, 1
      %s407 = smul.addr %s406, 2
      %s408 = smul.addr %s407, 8
      %s409 = scalar_lea.vmem %s11, %s408
      %p410 = pneg %p280
      %p411 = pneg %p277
      %p412 = pneg %p306
      %p413 = pneg %p303
      %p414 = scmp.lt.s32.totalorder %s23, 1
      %s415 = scalar_select %p414, %s23, 1
      %s416 = smul.addr %s415, 2
      %s417 = smul.addr %s416, 8
      %s418 = scalar_lea.vmem %s12, %s417
      %p419 = scmp.lt.s32.totalorder %s23, 1
      %s420 = scalar_select %p419, %s23, 1
      %s421 = smul.addr %s420, 29
      %s422 = smul.addr %s421, 4
      %s423 = scalar_lea.vmem %s0, %s422
      %p424 = scmp.lt.s32.totalorder %s23, 1
      %s425 = scalar_select %p424, %s23, 1
      %s426 = smul.addr %s425, 2
      %s427 = smul.addr %s426, 8
      %s428 = scalar_lea.vmem %s11, %s427
      %p429 = scmp.lt.s32.totalorder %s23, 1
      %s430 = scalar_select %p429, %s23, 1
      %s431 = smul.addr %s430, 2
      %s432 = smul.addr %s431, 8
      %s433 = scalar_lea.vmem %s12, %s432
      %v435 = vld [vmem:[%s423] sm:$0xf]
      %v436 = vld [vmem:[%s423 + $0x4] sm:$0xf]
      %v437 = vld [vmem:[%s423 + $0x8] sm:$0xf]
      %v438 = vld [vmem:[%s423 + $0xc] sm:$0xf]
      %v439 = vld [vmem:[%s423 + $0x10] sm:$0xf]
      %v440 = vld [vmem:[%s423 + $0x14] sm:$0xf]
      %v441 = vld [vmem:[%s423 + $0x18] sm:$0xf]
      %v442 = vld [vmem:[%s423 + $0x1c] sm:$0xf]
      %v443 = vld [vmem:[%s423 + $0x20] sm:$0xf]
      %v444 = vld [vmem:[%s423 + $0x24] sm:$0xf]
      %v445 = vld [vmem:[%s423 + $0x28] sm:$0xf]
      %v446 = vld [vmem:[%s423 + $0x2c] sm:$0xf]
      %v447 = vld [vmem:[%s423 + $0x30] sm:$0xf]
      %v448 = vld [vmem:[%s423 + $0x34] sm:$0xf]
      %v449 = vld [vmem:[%s423 + $0x38] sm:$0xf]
      %v450 = vld [vmem:[%s423 + $0x3c] sm:$0xf]
      %v451 = vld [vmem:[%s423 + $0x40] sm:$0xf]
      %v452 = vld [vmem:[%s423 + $0x44] sm:$0xf]
      %v453 = vld [vmem:[%s423 + $0x48] sm:$0xf]
      %v454 = vld [vmem:[%s423 + $0x4c] sm:$0xf]
      %v455 = vld [vmem:[%s423 + $0x50] sm:$0xf]
      %v456 = vld [vmem:[%s423 + $0x54] sm:$0xf]
      %v457 = vld [vmem:[%s423 + $0x58] sm:$0xf]
      %v458 = vld [vmem:[%s423 + $0x5c] sm:$0xf]
      %v459 = vld [vmem:[%s423 + $0x60] sm:$0xf]
      %v460 = vld [vmem:[%s423 + $0x64] sm:$0xf]
      %v461 = vld [vmem:[%s423 + $0x68] sm:$0xf]
      %v462 = vld [vmem:[%s423 + $0x6c] sm:$0xf]
      %v463 = vld [vmem:[%s423 + $0x70] sm:$0x1]
      %v464 = vld [vmem:[%s1] sm:$0xf]
      %v465 = vld [vmem:[%s1 + $0x4] sm:$0xf]
      %v466 = vld [vmem:[%s1 + $0x8] sm:$0xf]
      %v467 = vld [vmem:[%s1 + $0xc] sm:$0xf]
      %v468 = vld [vmem:[%s1 + $0x10] sm:$0xf]
      %v469 = vld [vmem:[%s1 + $0x14] sm:$0x7]
      %v470 = vld [vmem:[%s2] sm:$0x1]
      %v472 = vperm.slane %v470, 0
      %v503 = vunpack.c.l.b16 %v435
      %v504 = vunpack.c.l.b16 %v436
      %v505 = vunpack.c.l.b16 %v437
      %v506 = vunpack.c.l.b16 %v438
      %v507 = vunpack.c.l.b16 %v439
      %v508 = vunpack.c.l.b16 %v440
      %v509 = vunpack.c.l.b16 %v441
      %v510 = vunpack.c.l.b16 %v442
      %v511 = vunpack.c.l.b16 %v443
      %v512 = vunpack.c.l.b16 %v444
      %v513 = vunpack.c.l.b16 %v445
      %v514 = vunpack.c.l.b16 %v446
      %v515 = vunpack.c.l.b16 %v447
      %v516 = vunpack.c.l.b16 %v448
      %v517 = vunpack.c.l.b16 %v449
      %v518 = vunpack.c.l.b16 %v450
      %v519 = vunpack.c.l.b16 %v451
      %v520 = vunpack.c.l.b16 %v452
      %v521 = vunpack.c.l.b16 %v453
      %v522 = vunpack.c.l.b16 %v454
      %v523 = vunpack.c.l.b16 %v455
      %v524 = vunpack.c.l.b16 %v456
      %v525 = vunpack.c.l.b16 %v457
      %v526 = vunpack.c.l.b16 %v458
      %v527 = vunpack.c.l.b16 %v459
      %v528 = vunpack.c.l.b16 %v460
      %v529 = vunpack.c.l.b16 %v461
      %v530 = vunpack.c.l.b16 %v462
      %v531 = vunpack.c.l.b16 %v463
      %v532 = vpack.c.b16 %v504, %v503
      %v533 = vpack.c.b16 %v506, %v505
      %v534 = vpack.c.b16 %v508, %v507
      %v535 = vpack.c.b16 %v510, %v509
      %v536 = vpack.c.b16 %v512, %v511
      %v537 = vpack.c.b16 %v514, %v513
      %v538 = vpack.c.b16 %v516, %v515
      %v539 = vpack.c.b16 %v518, %v517
      %v540 = vpack.c.b16 %v520, %v519
      %v541 = vpack.c.b16 %v522, %v521
      %v542 = vpack.c.b16 %v524, %v523
      %v543 = vpack.c.b16 %v526, %v525
      %v544 = vpack.c.b16 %v528, %v527
      %v545 = vpack.c.b16 %v530, %v529
      %v546 = vpack.c.b16 %v531, %v531
      %v553 = vunpack.c.l.b16 %v464
      %v554 = vunpack.c.l.b16 %v465
      %v555 = vunpack.c.l.b16 %v466
      %v556 = vunpack.c.l.b16 %v467
      %v557 = vunpack.c.l.b16 %v468
      %v558 = vunpack.c.l.b16 %v469
      %v559 = vpack.c.b16 %v554, %v553
      %v560 = vpack.c.b16 %v556, %v555
      %v561 = vpack.c.b16 %v558, %v557
      %vm564 = vcmask 367616
      %v566 = vsel %vm564, %v532, 0
      %v569 = vsel %vm564, %v533, 0
      %v572 = vsel %vm564, %v534, 0
      %v575 = vsel %vm564, %v535, 0
      %v578 = vsel %vm564, %v536, 0
      %v581 = vsel %vm564, %v537, 0
      %v584 = vsel %vm564, %v538, 0
      %v587 = vsel %vm564, %v539, 0
      %v590 = vsel %vm564, %v540, 0
      %v593 = vsel %vm564, %v541, 0
      %v596 = vsel %vm564, %v542, 0
      %v599 = vsel %vm564, %v543, 0
      %v602 = vsel %vm564, %v544, 0
      %v605 = vsel %vm564, %v545, 0
      %v608 = vsel %vm564, %v546, 0
      %vm610 = vcmask 1045504
      %vm611 = vcmask 1046528
      %v612 = vsel %vm610, 4294967295, 65535
      %v613 = vsel %vm611, %v612, 0
      %v615 = vand.u32 %v561, %v613
      %617 = vmatpush.bf16.msra.mxu0 0
      %618 = vmatpush.bf16.msra.mxu0 0
      %619 = vmatpush.bf16.msra.mxu0 0
      %620 = vmatpush.bf16.msra.mxu0 0
      %621 = vmatpush.bf16.msra.mxu0 0
      %622 = vmatpush.bf16.msra.mxu0 %v615
      %623 = vmatpush.bf16.msra.mxu0 %v560
      %624 = vmatpush.bf16.msra.mxu0 %v559
      %625 = vmatmul.bf16.gmra.mxu0 %v566
      %v626 = vpop.f32.mrf.mxu0
      %v627 = vadd.f32 %v472, %v626
      %v628 = vpop.f32.mrf.mxu0
      %v629 = vadd.f32 %v472, %v628
      %630 = vmatmul.bf16.gmra.mxu0 %v569
      %v631 = vpop.f32.mrf.mxu0
      %v632 = vadd.f32 %v472, %v631
      %v633 = vpop.f32.mrf.mxu0
      %v634 = vadd.f32 %v472, %v633
      %635 = vmatmul.bf16.gmra.mxu0 %v572
      %v636 = vpop.f32.mrf.mxu0
      %v637 = vadd.f32 %v472, %v636
      %v638 = vpop.f32.mrf.mxu0
      %v639 = vadd.f32 %v472, %v638
      %640 = vmatmul.bf16.gmra.mxu0 %v575
      %v641 = vpop.f32.mrf.mxu0
      %v642 = vadd.f32 %v472, %v641
      %v643 = vpop.f32.mrf.mxu0
      %v644 = vadd.f32 %v472, %v643
      %645 = vmatmul.bf16.gmra.mxu0 %v578
      %v646 = vpop.f32.mrf.mxu0
      %v647 = vadd.f32 %v472, %v646
      %v648 = vpop.f32.mrf.mxu0
      %v649 = vadd.f32 %v472, %v648
      %650 = vmatmul.bf16.gmra.mxu0 %v581
      %v651 = vpop.f32.mrf.mxu0
      %v652 = vadd.f32 %v472, %v651
      %v653 = vpop.f32.mrf.mxu0
      %v654 = vadd.f32 %v472, %v653
      %655 = vmatmul.bf16.gmra.mxu0 %v584
      %v656 = vpop.f32.mrf.mxu0
      %v657 = vadd.f32 %v472, %v656
      %v658 = vpop.f32.mrf.mxu0
      %v659 = vadd.f32 %v472, %v658
      %660 = vmatmul.bf16.gmra.mxu0 %v587
      %v661 = vpop.f32.mrf.mxu0
      %v662 = vadd.f32 %v472, %v661
      %v663 = vpop.f32.mrf.mxu0
      %v664 = vadd.f32 %v472, %v663
      %665 = vmatmul.bf16.gmra.mxu0 %v590
      %v666 = vpop.f32.mrf.mxu0
      %v667 = vadd.f32 %v472, %v666
      %v668 = vpop.f32.mrf.mxu0
      %v669 = vadd.f32 %v472, %v668
      %670 = vmatmul.bf16.gmra.mxu0 %v593
      %v671 = vpop.f32.mrf.mxu0
      %v672 = vadd.f32 %v472, %v671
      %v673 = vpop.f32.mrf.mxu0
      %v674 = vadd.f32 %v472, %v673
      %675 = vmatmul.bf16.gmra.mxu0 %v596
      %v676 = vpop.f32.mrf.mxu0
      %v677 = vadd.f32 %v472, %v676
      %v678 = vpop.f32.mrf.mxu0
      %v679 = vadd.f32 %v472, %v678
      %680 = vmatmul.bf16.gmra.mxu0 %v599
      %v681 = vpop.f32.mrf.mxu0
      %v682 = vadd.f32 %v472, %v681
      %v683 = vpop.f32.mrf.mxu0
      %v684 = vadd.f32 %v472, %v683
      %685 = vmatmul.bf16.gmra.mxu0 %v602
      %v686 = vpop.f32.mrf.mxu0
      %v687 = vadd.f32 %v472, %v686
      %v688 = vpop.f32.mrf.mxu0
      %v689 = vadd.f32 %v472, %v688
      %690 = vmatmul.bf16.gmra.mxu0 %v605
      %v691 = vpop.f32.mrf.mxu0
      %v692 = vadd.f32 %v472, %v691
      %v693 = vpop.f32.mrf.mxu0
      %v694 = vadd.f32 %v472, %v693
      %695 = vmatmul.bf16.gmra.mxu0 %v608
      %v696 = vpop.f32.mrf.mxu0
      %v697 = vadd.f32 %v472, %v696
      %v698 = vpop.f32.mrf.mxu0
      %699 = vdwg.mxu0
      %v700 = vpack.c.bf16 %v629, %v627
      %v701 = vpack.c.bf16 %v634, %v632
      %v702 = vpack.c.bf16 %v639, %v637
      %v703 = vpack.c.bf16 %v644, %v642
      %v704 = vpack.c.bf16 %v649, %v647
      %v705 = vpack.c.bf16 %v654, %v652
      %v706 = vpack.c.bf16 %v659, %v657
      %v707 = vpack.c.bf16 %v664, %v662
      %v708 = vpack.c.bf16 %v669, %v667
      %v709 = vpack.c.bf16 %v674, %v672
      %v710 = vpack.c.bf16 %v679, %v677
      %v711 = vpack.c.bf16 %v684, %v682
      %v712 = vpack.c.bf16 %v689, %v687
      %v713 = vpack.c.bf16 %v694, %v692
      %v714 = vpack.c.bf16 %v697, %v697
      %v715 = vld [vmem:[%s3] sm:$0xff]
      %v716 = vld [vmem:[%s3 + $0x8] sm:$0xff]
      %v717 = vld [vmem:[%s3 + $0x10] sm:$0xff]
      %v718 = vld [vmem:[%s3 + $0x18] sm:$0xff]
      %v719 = vld [vmem:[%s3 + $0x20] sm:$0xff]
      %v720 = vld [vmem:[%s3 + $0x28] sm:$0xff]
      %v721 = vld [vmem:[%s3 + $0x30] sm:$0x11]
      %v729 = vunpack.c.l.b16 %v715
      %v730 = vunpack.c.h.b16 %v715
      %v731 = vunpack.c.l.b16 %v716
      %v732 = vunpack.c.h.b16 %v716
      %v733 = vunpack.c.l.b16 %v717
      %v734 = vunpack.c.h.b16 %v717
      %v735 = vunpack.c.l.b16 %v718
      %v736 = vunpack.c.h.b16 %v718
      %v737 = vunpack.c.l.b16 %v719
      %v738 = vunpack.c.h.b16 %v719
      %v739 = vunpack.c.l.b16 %v720
      %v740 = vunpack.c.h.b16 %v720
      %v741 = vunpack.c.l.b16 %v721
      %v742 = vunpack.c.h.b16 %v721
      %v743 = vpack.c.b16 %v731, %v729
      %v744 = vpack.c.b16 %v732, %v730
      %v745 = vpack.c.b16 %v735, %v733
      %v746 = vpack.c.b16 %v736, %v734
      %v747 = vpack.c.b16 %v739, %v737
      %v748 = vpack.c.b16 %v740, %v738
      %v749 = vpack.c.b16 %v741, %v741
      %v750 = vpack.c.b16 %v742, %v742
      %vm755 = vcmask 793600
      %v757 = vsel %vm755, %v744, 0
      %v760 = vsel %vm755, %v746, 0
      %v763 = vsel %vm755, %v748, 0
      %v766 = vsel %vm755, %v750, 0
      %vm768 = vcmask 1040384
      %v769 = vsel 0, 4294967295, 65535
      %v770 = vsel %vm768, %v769, 0
      %v772 = vand.u32 %v714, %v770
      %774 = vmatpush.bf16.msra.mxu0 %v707
      %775 = vmatpush.bf16.msra.mxu0 %v706
      %776 = vmatpush.bf16.msra.mxu0 %v705
      %777 = vmatpush.bf16.msra.mxu0 %v704
      %778 = vmatpush.bf16.msra.mxu0 %v703
      %779 = vmatpush.bf16.msra.mxu0 %v702
      %780 = vmatpush.bf16.msra.mxu0 %v701
      %781 = vmatpush.bf16.msra.mxu0 %v700
      %782 = vmatmul.bf16.gmra.mxu0 %v743
      %v783 = vpop.f32.mrf.mxu0
      %v784 = vadd.f32 0.0, %v783
      %v785 = vpop.f32.mrf.mxu0
      %v786 = vadd.f32 0.0, %v785
      %787 = vmatmul.bf16.gmra.mxu0 %v745
      %v788 = vpop.f32.mrf.mxu0
      %v789 = vadd.f32 0.0, %v788
      %v790 = vpop.f32.mrf.mxu0
      %v791 = vadd.f32 0.0, %v790
      %792 = vmatmul.bf16.gmra.mxu0 %v747
      %v793 = vpop.f32.mrf.mxu0
      %v794 = vadd.f32 0.0, %v793
      %v795 = vpop.f32.mrf.mxu0
      %v796 = vadd.f32 0.0, %v795
      %797 = vmatmul.bf16.gmra.mxu0 %v749
      %v798 = vpop.f32.mrf.mxu0
      %v799 = vadd.f32 0.0, %v798
      %v800 = vpop.f32.mrf.mxu0
      %801 = vdwg.mxu0
      %802 = vmatpush.bf16.msra.mxu0 0
      %803 = vmatpush.bf16.msra.mxu0 %v772
      %804 = vmatpush.bf16.msra.mxu0 %v713
      %805 = vmatpush.bf16.msra.mxu0 %v712
      %806 = vmatpush.bf16.msra.mxu0 %v711
      %807 = vmatpush.bf16.msra.mxu0 %v710
      %808 = vmatpush.bf16.msra.mxu0 %v709
      %809 = vmatpush.bf16.msra.mxu0 %v708
      %810 = vmatmul.bf16.gmra.mxu0 %v757
      %v811 = vpop.f32.mrf.mxu0
      %v812 = vadd.f32 %v784, %v811
      %v813 = vpop.f32.mrf.mxu0
      %v814 = vadd.f32 %v786, %v813
      %815 = vmatmul.bf16.gmra.mxu0 %v760
      %v816 = vpop.f32.mrf.mxu0
      %v817 = vadd.f32 %v789, %v816
      %v818 = vpop.f32.mrf.mxu0
      %v819 = vadd.f32 %v791, %v818
      %820 = vmatmul.bf16.gmra.mxu0 %v763
      %v821 = vpop.f32.mrf.mxu0
      %v822 = vadd.f32 %v794, %v821
      %v823 = vpop.f32.mrf.mxu0
      %v824 = vadd.f32 %v796, %v823
      %825 = vmatmul.bf16.gmra.mxu0 %v766
      %v826 = vpop.f32.mrf.mxu0
      %v827 = vadd.f32 %v799, %v826
      %v828 = vpop.f32.mrf.mxu0
      %829 = vdwg.mxu0
      %v830 = vpack.c.bf16 %v814, %v812
      %v831 = vpack.c.bf16 %v819, %v817
      %v832 = vpack.c.bf16 %v824, %v822
      %v833 = vpack.c.bf16 %v827, %v827
      %v834 = vld [vmem:[%s4] sm:$0xf]
      %s835 = scalar_lea.vmem %s3, 56
      %v836 = vld [vmem:[%s835] sm:$0xff]
      %v837 = vld [vmem:[%s835 + $0x8] sm:$0xff]
      %v838 = vld [vmem:[%s835 + $0x10] sm:$0xff]
      %v839 = vld [vmem:[%s835 + $0x18] sm:$0xff]
      %v840 = vld [vmem:[%s835 + $0x20] sm:$0xff]
      %v841 = vld [vmem:[%s835 + $0x28] sm:$0xff]
      %v842 = vld [vmem:[%s835 + $0x30] sm:$0x11]
      %v850 = vunpack.c.l.b16 %v836
      %v851 = vunpack.c.h.b16 %v836
      %v852 = vunpack.c.l.b16 %v837
      %v853 = vunpack.c.h.b16 %v837
      %v854 = vunpack.c.l.b16 %v838
      %v855 = vunpack.c.h.b16 %v838
      %v856 = vunpack.c.l.b16 %v839
      %v857 = vunpack.c.h.b16 %v839
      %v858 = vunpack.c.l.b16 %v840
      %v859 = vunpack.c.h.b16 %v840
      %v860 = vunpack.c.l.b16 %v841
      %v861 = vunpack.c.h.b16 %v841
      %v862 = vunpack.c.l.b16 %v842
      %v863 = vunpack.c.h.b16 %v842
      %v864 = vpack.c.b16 %v852, %v850
      %v865 = vpack.c.b16 %v853, %v851
      %v866 = vpack.c.b16 %v856, %v854
      %v867 = vpack.c.b16 %v857, %v855
      %v868 = vpack.c.b16 %v860, %v858
      %v869 = vpack.c.b16 %v861, %v859
      %v870 = vpack.c.b16 %v862, %v862
      %v871 = vpack.c.b16 %v863, %v863
      %v877 = vsel %vm755, %v865, 0
      %v880 = vsel %vm755, %v867, 0
      %v883 = vsel %vm755, %v869, 0
      %v886 = vsel %vm755, %v871, 0
      %888 = vmatpush.bf16.msra.mxu0 %v707
      %889 = vmatpush.bf16.msra.mxu0 %v706
      %890 = vmatpush.bf16.msra.mxu0 %v705
      %891 = vmatpush.bf16.msra.mxu0 %v704
      %892 = vmatpush.bf16.msra.mxu0 %v703
      %893 = vmatpush.bf16.msra.mxu0 %v702
      %894 = vmatpush.bf16.msra.mxu0 %v701
      %895 = vmatpush.bf16.msra.mxu0 %v700
      %896 = vmatmul.bf16.gmra.mxu0 %v864
      %v897 = vpop.f32.mrf.mxu0
      %v898 = vadd.f32 0.0, %v897
      %v899 = vpop.f32.mrf.mxu0
      %v900 = vadd.f32 0.0, %v899
      %901 = vmatmul.bf16.gmra.mxu0 %v866
      %v902 = vpop.f32.mrf.mxu0
      %v903 = vadd.f32 0.0, %v902
      %v904 = vpop.f32.mrf.mxu0
      %v905 = vadd.f32 0.0, %v904
      %906 = vmatmul.bf16.gmra.mxu0 %v868
      %v907 = vpop.f32.mrf.mxu0
      %v908 = vadd.f32 0.0, %v907
      %v909 = vpop.f32.mrf.mxu0
      %v910 = vadd.f32 0.0, %v909
      %911 = vmatmul.bf16.gmra.mxu0 %v870
      %v912 = vpop.f32.mrf.mxu0
      %v913 = vadd.f32 0.0, %v912
      %v914 = vpop.f32.mrf.mxu0
      %915 = vdwg.mxu0
      %916 = vmatpush.bf16.msra.mxu0 0
      %917 = vmatpush.bf16.msra.mxu0 %v772
      %918 = vmatpush.bf16.msra.mxu0 %v713
      %919 = vmatpush.bf16.msra.mxu0 %v712
      %920 = vmatpush.bf16.msra.mxu0 %v711
      %921 = vmatpush.bf16.msra.mxu0 %v710
      %922 = vmatpush.bf16.msra.mxu0 %v709
      %923 = vmatpush.bf16.msra.mxu0 %v708
      %924 = vmatmul.bf16.gmra.mxu0 %v877
      %v925 = vpop.f32.mrf.mxu0
      %v926 = vadd.f32 %v898, %v925
      %v927 = vpop.f32.mrf.mxu0
      %v928 = vadd.f32 %v900, %v927
      %929 = vmatmul.bf16.gmra.mxu0 %v880
      %v930 = vpop.f32.mrf.mxu0
      %v931 = vadd.f32 %v903, %v930
      %v932 = vpop.f32.mrf.mxu0
      %v933 = vadd.f32 %v905, %v932
      %934 = vmatmul.bf16.gmra.mxu0 %v883
      %v935 = vpop.f32.mrf.mxu0
      %v936 = vadd.f32 %v908, %v935
      %v937 = vpop.f32.mrf.mxu0
      %v938 = vadd.f32 %v910, %v937
      %939 = vmatmul.bf16.gmra.mxu0 %v886
      %v940 = vpop.f32.mrf.mxu0
      %v941 = vadd.f32 %v913, %v940
      %v942 = vpop.f32.mrf.mxu0
      %943 = vdwg.mxu0
      %v944 = vpack.c.bf16 %v928, %v926
      %v945 = vpack.c.bf16 %v933, %v931
      %v946 = vpack.c.bf16 %v938, %v936
      %v947 = vpack.c.bf16 %v941, %v941
      %s948 = scalar_lea.vmem %s4, 4
      %v949 = vld [vmem:[%s948] sm:$0xf]
      %vm950 = vcmask 64512
      %v952 = vsel %vm950, %v944, 0
      %v955 = vsel %vm950, %v945, 0
      %v958 = vsel %vm950, %v946, 0
      %v961 = vsel %vm950, %v947, 0
      %vm963 = vcmask 1043456
      %v965 = vsel %vm963, %v949, 0
      %967 = vmatpush.bf16.msra.mxu0 0
      %968 = vmatpush.bf16.msra.mxu0 0
      %969 = vmatpush.bf16.msra.mxu0 0
      %970 = vmatpush.bf16.msra.mxu0 0
      %971 = vmatpush.bf16.msra.mxu0 0
      %972 = vmatpush.bf16.msra.mxu0 0
      %973 = vmatpush.bf16.msra.mxu0 0
      %974 = vmatpush.bf16.msra.mxu0 %v965
      %975 = vmatmul.bf16.gmra.mxu0 %v952
      %v976 = vpop.f32.mrf.mxu0
      %v977 = vadd.f32 0.0, %v976
      %v978 = vpop.f32.mrf.mxu0
      %v979 = vadd.f32 0.0, %v978
      %980 = vmatmul.bf16.gmra.mxu0 %v955
      %v981 = vpop.f32.mrf.mxu0
      %v982 = vadd.f32 0.0, %v981
      %v983 = vpop.f32.mrf.mxu0
      %v984 = vadd.f32 0.0, %v983
      %985 = vmatmul.bf16.gmra.mxu0 %v958
      %v986 = vpop.f32.mrf.mxu0
      %v987 = vadd.f32 0.0, %v986
      %v988 = vpop.f32.mrf.mxu0
      %v989 = vadd.f32 0.0, %v988
      %990 = vmatmul.bf16.gmra.mxu0 %v961
      %v991 = vpop.f32.mrf.mxu0
      %v992 = vadd.f32 0.0, %v991
      %v993 = vpop.f32.mrf.mxu0
      %994 = vdwg.mxu0
      %v996 = vsel %vm950, %v830, 0
      %v999 = vsel %vm950, %v831, 0
      %v1002 = vsel %vm950, %v832, 0
      %v1005 = vsel %vm950, %v833, 0
      %v1008 = vsel %vm963, %v834, 0
      %1010 = vmatpush.bf16.msra.mxu0 0
      %1011 = vmatpush.bf16.msra.mxu0 0
      %1012 = vmatpush.bf16.msra.mxu0 0
      %1013 = vmatpush.bf16.msra.mxu0 0
      %1014 = vmatpush.bf16.msra.mxu0 0
      %1015 = vmatpush.bf16.msra.mxu0 0
      %1016 = vmatpush.bf16.msra.mxu0 0
      %1017 = vmatpush.bf16.msra.mxu0 %v1008
      %1018 = vmatmul.bf16.gmra.mxu0 %v996
      %v1019 = vpop.f32.mrf.mxu0
      %v1020 = vadd.f32 %v977, %v1019
      %v1021 = vpop.f32.mrf.mxu0
      %v1022 = vadd.f32 %v979, %v1021
      %1023 = vmatmul.bf16.gmra.mxu0 %v999
      %v1024 = vpop.f32.mrf.mxu0
      %v1025 = vadd.f32 %v982, %v1024
      %v1026 = vpop.f32.mrf.mxu0
      %v1027 = vadd.f32 %v984, %v1026
      %1028 = vmatmul.bf16.gmra.mxu0 %v1002
      %v1029 = vpop.f32.mrf.mxu0
      %v1030 = vadd.f32 %v987, %v1029
      %v1031 = vpop.f32.mrf.mxu0
      %v1032 = vadd.f32 %v989, %v1031
      %1033 = vmatmul.bf16.gmra.mxu0 %v1005
      %v1034 = vpop.f32.mrf.mxu0
      %v1035 = vadd.f32 %v992, %v1034
      %v1036 = vpop.f32.mrf.mxu0
      %1037 = vdwg.mxu0
      %s1038 = scalar_lea.vmem %s3, 112
      %v1039 = vld [vmem:[%s1038] sm:$0xff]
      %v1040 = vld [vmem:[%s1038 + $0x8] sm:$0xff]
      %v1041 = vld [vmem:[%s1038 + $0x10] sm:$0xff]
      %v1042 = vld [vmem:[%s1038 + $0x18] sm:$0xff]
      %v1043 = vld [vmem:[%s1038 + $0x20] sm:$0xff]
      %v1044 = vld [vmem:[%s1038 + $0x28] sm:$0xff]
      %v1045 = vld [vmem:[%s1038 + $0x30] sm:$0x11]
      %v1053 = vunpack.c.l.b16 %v1039
      %v1054 = vunpack.c.h.b16 %v1039
      %v1055 = vunpack.c.l.b16 %v1040
      %v1056 = vunpack.c.h.b16 %v1040
      %v1057 = vunpack.c.l.b16 %v1041
      %v1058 = vunpack.c.h.b16 %v1041
      %v1059 = vunpack.c.l.b16 %v1042
      %v1060 = vunpack.c.h.b16 %v1042
      %v1061 = vunpack.c.l.b16 %v1043
      %v1062 = vunpack.c.h.b16 %v1043
      %v1063 = vunpack.c.l.b16 %v1044
      %v1064 = vunpack.c.h.b16 %v1044
      %v1065 = vunpack.c.l.b16 %v1045
      %v1066 = vunpack.c.h.b16 %v1045
      %v1067 = vpack.c.b16 %v1055, %v1053
      %v1068 = vpack.c.b16 %v1056, %v1054
      %v1069 = vpack.c.b16 %v1059, %v1057
      %v1070 = vpack.c.b16 %v1060, %v1058
      %v1071 = vpack.c.b16 %v1063, %v1061
      %v1072 = vpack.c.b16 %v1064, %v1062
      %v1073 = vpack.c.b16 %v1065, %v1065
      %v1074 = vpack.c.b16 %v1066, %v1066
      %v1080 = vsel %vm755, %v1068, 0
      %v1083 = vsel %vm755, %v1070, 0
      %v1086 = vsel %vm755, %v1072, 0
      %v1089 = vsel %vm755, %v1074, 0
      %1091 = vmatpush.bf16.msra.mxu0 %v707
      %1092 = vmatpush.bf16.msra.mxu0 %v706
      %1093 = vmatpush.bf16.msra.mxu0 %v705
      %1094 = vmatpush.bf16.msra.mxu0 %v704
      %1095 = vmatpush.bf16.msra.mxu0 %v703
      %1096 = vmatpush.bf16.msra.mxu0 %v702
      %1097 = vmatpush.bf16.msra.mxu0 %v701
      %1098 = vmatpush.bf16.msra.mxu0 %v700
      %1099 = vmatmul.bf16.gmra.mxu0 %v1067
      %v1100 = vpop.f32.mrf.mxu0
      %v1101 = vadd.f32 0.0, %v1100
      %v1102 = vpop.f32.mrf.mxu0
      %v1103 = vadd.f32 0.0, %v1102
      %1104 = vmatmul.bf16.gmra.mxu0 %v1069
      %v1105 = vpop.f32.mrf.mxu0
      %v1106 = vadd.f32 0.0, %v1105
      %v1107 = vpop.f32.mrf.mxu0
      %v1108 = vadd.f32 0.0, %v1107
      %1109 = vmatmul.bf16.gmra.mxu0 %v1071
      %v1110 = vpop.f32.mrf.mxu0
      %v1111 = vadd.f32 0.0, %v1110
      %v1112 = vpop.f32.mrf.mxu0
      %v1113 = vadd.f32 0.0, %v1112
      %1114 = vmatmul.bf16.gmra.mxu0 %v1073
      %v1115 = vpop.f32.mrf.mxu0
      %v1116 = vadd.f32 0.0, %v1115
      %v1117 = vpop.f32.mrf.mxu0
      %1118 = vdwg.mxu0
      %1119 = vmatpush.bf16.msra.mxu0 0
      %1120 = vmatpush.bf16.msra.mxu0 %v772
      %1121 = vmatpush.bf16.msra.mxu0 %v713
      %1122 = vmatpush.bf16.msra.mxu0 %v712
      %1123 = vmatpush.bf16.msra.mxu0 %v711
      %1124 = vmatpush.bf16.msra.mxu0 %v710
      %1125 = vmatpush.bf16.msra.mxu0 %v709
      %1126 = vmatpush.bf16.msra.mxu0 %v708
      %1127 = vmatmul.bf16.gmra.mxu0 %v1080
      %v1128 = vpop.f32.mrf.mxu0
      %v1129 = vadd.f32 %v1101, %v1128
      %v1130 = vpop.f32.mrf.mxu0
      %v1131 = vadd.f32 %v1103, %v1130
      %1132 = vmatmul.bf16.gmra.mxu0 %v1083
      %v1133 = vpop.f32.mrf.mxu0
      %v1134 = vadd.f32 %v1106, %v1133
      %v1135 = vpop.f32.mrf.mxu0
      %v1136 = vadd.f32 %v1108, %v1135
      %1137 = vmatmul.bf16.gmra.mxu0 %v1086
      %v1138 = vpop.f32.mrf.mxu0
      %v1139 = vadd.f32 %v1111, %v1138
      %v1140 = vpop.f32.mrf.mxu0
      %v1141 = vadd.f32 %v1113, %v1140
      %1142 = vmatmul.bf16.gmra.mxu0 %v1089
      %v1143 = vpop.f32.mrf.mxu0
      %v1144 = vadd.f32 %v1116, %v1143
      %v1145 = vpop.f32.mrf.mxu0
      %1146 = vdwg.mxu0
      %v1147 = vpack.c.bf16 %v1131, %v1129
      %v1148 = vpack.c.bf16 %v1136, %v1134
      %v1149 = vpack.c.bf16 %v1141, %v1139
      %v1150 = vpack.c.bf16 %v1144, %v1144
      %s1151 = scalar_lea.vmem %s4, 8
      %v1152 = vld [vmem:[%s1151] sm:$0xf]
      %v1154 = vsel %vm950, %v1147, 0
      %v1157 = vsel %vm950, %v1148, 0
      %v1160 = vsel %vm950, %v1149, 0
      %v1163 = vsel %vm950, %v1150, 0
      %v1166 = vsel %vm963, %v1152, 0
      %1168 = vmatpush.bf16.msra.mxu0 0
      %1169 = vmatpush.bf16.msra.mxu0 0
      %1170 = vmatpush.bf16.msra.mxu0 0
      %1171 = vmatpush.bf16.msra.mxu0 0
      %1172 = vmatpush.bf16.msra.mxu0 0
      %1173 = vmatpush.bf16.msra.mxu0 0
      %1174 = vmatpush.bf16.msra.mxu0 0
      %1175 = vmatpush.bf16.msra.mxu0 %v1166
      %1176 = vmatmul.bf16.gmra.mxu0 %v1154
      %v1177 = vpop.f32.mrf.mxu0
      %v1178 = vadd.f32 0.0, %v1177
      %v1179 = vpop.f32.mrf.mxu0
      %v1180 = vadd.f32 0.0, %v1179
      %1181 = vmatmul.bf16.gmra.mxu0 %v1157
      %v1182 = vpop.f32.mrf.mxu0
      %v1183 = vadd.f32 0.0, %v1182
      %v1184 = vpop.f32.mrf.mxu0
      %v1185 = vadd.f32 0.0, %v1184
      %1186 = vmatmul.bf16.gmra.mxu0 %v1160
      %v1187 = vpop.f32.mrf.mxu0
      %v1188 = vadd.f32 0.0, %v1187
      %v1189 = vpop.f32.mrf.mxu0
      %v1190 = vadd.f32 0.0, %v1189
      %1191 = vmatmul.bf16.gmra.mxu0 %v1163
      %v1192 = vpop.f32.mrf.mxu0
      %v1193 = vadd.f32 0.0, %v1192
      %v1194 = vpop.f32.mrf.mxu0
      %1195 = vdwg.mxu0
      %v1196 = vadd.f32 %v1020, %v1178
      %v1197 = vadd.f32 %v1022, %v1180
      %v1198 = vadd.f32 %v1025, %v1183
      %v1199 = vadd.f32 %v1027, %v1185
      %v1200 = vadd.f32 %v1030, %v1188
      %v1201 = vadd.f32 %v1032, %v1190
      %v1202 = vadd.f32 %v1035, %v1193
      %s1203 = scalar_lea.vmem %s3, 168
      %v1204 = vld [vmem:[%s1203] sm:$0xff]
      %v1205 = vld [vmem:[%s1203 + $0x8] sm:$0xff]
      %v1206 = vld [vmem:[%s1203 + $0x10] sm:$0xff]
      %v1207 = vld [vmem:[%s1203 + $0x18] sm:$0xff]
      %v1208 = vld [vmem:[%s1203 + $0x20] sm:$0xff]
      %v1209 = vld [vmem:[%s1203 + $0x28] sm:$0xff]
      %v1210 = vld [vmem:[%s1203 + $0x30] sm:$0x11]
      %v1218 = vunpack.c.l.b16 %v1204
      %v1219 = vunpack.c.h.b16 %v1204
      %v1220 = vunpack.c.l.b16 %v1205
      %v1221 = vunpack.c.h.b16 %v1205
      %v1222 = vunpack.c.l.b16 %v1206
      %v1223 = vunpack.c.h.b16 %v1206
      %v1224 = vunpack.c.l.b16 %v1207
      %v1225 = vunpack.c.h.b16 %v1207
      %v1226 = vunpack.c.l.b16 %v1208
      %v1227 = vunpack.c.h.b16 %v1208
      %v1228 = vunpack.c.l.b16 %v1209
      %v1229 = vunpack.c.h.b16 %v1209
      %v1230 = vunpack.c.l.b16 %v1210
      %v1231 = vunpack.c.h.b16 %v1210
      %v1232 = vpack.c.b16 %v1220, %v1218
      %v1233 = vpack.c.b16 %v1221, %v1219
      %v1234 = vpack.c.b16 %v1224, %v1222
      %v1235 = vpack.c.b16 %v1225, %v1223
      %v1236 = vpack.c.b16 %v1228, %v1226
      %v1237 = vpack.c.b16 %v1229, %v1227
      %v1238 = vpack.c.b16 %v1230, %v1230
      %v1239 = vpack.c.b16 %v1231, %v1231
      %v1245 = vsel %vm755, %v1233, 0
      %v1248 = vsel %vm755, %v1235, 0
      %v1251 = vsel %vm755, %v1237, 0
      %v1254 = vsel %vm755, %v1239, 0
      %1256 = vmatpush.bf16.msra.mxu0 %v707
      %1257 = vmatpush.bf16.msra.mxu0 %v706
      %1258 = vmatpush.bf16.msra.mxu0 %v705
      %1259 = vmatpush.bf16.msra.mxu0 %v704
      %1260 = vmatpush.bf16.msra.mxu0 %v703
      %1261 = vmatpush.bf16.msra.mxu0 %v702
      %1262 = vmatpush.bf16.msra.mxu0 %v701
      %1263 = vmatpush.bf16.msra.mxu0 %v700
      %1264 = vmatmul.bf16.gmra.mxu0 %v1232
      %v1265 = vpop.f32.mrf.mxu0
      %v1266 = vadd.f32 0.0, %v1265
      %v1267 = vpop.f32.mrf.mxu0
      %v1268 = vadd.f32 0.0, %v1267
      %1269 = vmatmul.bf16.gmra.mxu0 %v1234
      %v1270 = vpop.f32.mrf.mxu0
      %v1271 = vadd.f32 0.0, %v1270
      %v1272 = vpop.f32.mrf.mxu0
      %v1273 = vadd.f32 0.0, %v1272
      %1274 = vmatmul.bf16.gmra.mxu0 %v1236
      %v1275 = vpop.f32.mrf.mxu0
      %v1276 = vadd.f32 0.0, %v1275
      %v1277 = vpop.f32.mrf.mxu0
      %v1278 = vadd.f32 0.0, %v1277
      %1279 = vmatmul.bf16.gmra.mxu0 %v1238
      %v1280 = vpop.f32.mrf.mxu0
      %v1281 = vadd.f32 0.0, %v1280
      %v1282 = vpop.f32.mrf.mxu0
      %1283 = vdwg.mxu0
      %1284 = vmatpush.bf16.msra.mxu0 0
      %1285 = vmatpush.bf16.msra.mxu0 %v772
      %1286 = vmatpush.bf16.msra.mxu0 %v713
      %1287 = vmatpush.bf16.msra.mxu0 %v712
      %1288 = vmatpush.bf16.msra.mxu0 %v711
      %1289 = vmatpush.bf16.msra.mxu0 %v710
      %1290 = vmatpush.bf16.msra.mxu0 %v709
      %1291 = vmatpush.bf16.msra.mxu0 %v708
      %1292 = vmatmul.bf16.gmra.mxu0 %v1245
      %v1293 = vpop.f32.mrf.mxu0
      %v1294 = vadd.f32 %v1266, %v1293
      %v1295 = vpop.f32.mrf.mxu0
      %v1296 = vadd.f32 %v1268, %v1295
      %1297 = vmatmul.bf16.gmra.mxu0 %v1248
      %v1298 = vpop.f32.mrf.mxu0
      %v1299 = vadd.f32 %v1271, %v1298
      %v1300 = vpop.f32.mrf.mxu0
      %v1301 = vadd.f32 %v1273, %v1300
      %1302 = vmatmul.bf16.gmra.mxu0 %v1251
      %v1303 = vpop.f32.mrf.mxu0
      %v1304 = vadd.f32 %v1276, %v1303
      %v1305 = vpop.f32.mrf.mxu0
      %v1306 = vadd.f32 %v1278, %v1305
      %1307 = vmatmul.bf16.gmra.mxu0 %v1254
      %v1308 = vpop.f32.mrf.mxu0
      %v1309 = vadd.f32 %v1281, %v1308
      %v1310 = vpop.f32.mrf.mxu0
      %1311 = vdwg.mxu0
      %v1312 = vpack.c.bf16 %v1296, %v1294
      %v1313 = vpack.c.bf16 %v1301, %v1299
      %v1314 = vpack.c.bf16 %v1306, %v1304
      %v1315 = vpack.c.bf16 %v1309, %v1309
      %s1316 = scalar_lea.vmem %s4, 12
      %v1317 = vld [vmem:[%s1316] sm:$0xf]
      %v1319 = vsel %vm950, %v1312, 0
      %v1322 = vsel %vm950, %v1313, 0
      %v1325 = vsel %vm950, %v1314, 0
      %v1328 = vsel %vm950, %v1315, 0
      %v1331 = vsel %vm963, %v1317, 0
      %1333 = vmatpush.bf16.msra.mxu0 0
      %1334 = vmatpush.bf16.msra.mxu0 0
      %1335 = vmatpush.bf16.msra.mxu0 0
      %1336 = vmatpush.bf16.msra.mxu0 0
      %1337 = vmatpush.bf16.msra.mxu0 0
      %1338 = vmatpush.bf16.msra.mxu0 0
      %1339 = vmatpush.bf16.msra.mxu0 0
      %1340 = vmatpush.bf16.msra.mxu0 %v1331
      %1341 = vmatmul.bf16.gmra.mxu0 %v1319
      %v1342 = vpop.f32.mrf.mxu0
      %v1343 = vadd.f32 0.0, %v1342
      %v1344 = vpop.f32.mrf.mxu0
      %v1345 = vadd.f32 0.0, %v1344
      %1346 = vmatmul.bf16.gmra.mxu0 %v1322
      %v1347 = vpop.f32.mrf.mxu0
      %v1348 = vadd.f32 0.0, %v1347
      %v1349 = vpop.f32.mrf.mxu0
      %v1350 = vadd.f32 0.0, %v1349
      %1351 = vmatmul.bf16.gmra.mxu0 %v1325
      %v1352 = vpop.f32.mrf.mxu0
      %v1353 = vadd.f32 0.0, %v1352
      %v1354 = vpop.f32.mrf.mxu0
      %v1355 = vadd.f32 0.0, %v1354
      %1356 = vmatmul.bf16.gmra.mxu0 %v1328
      %v1357 = vpop.f32.mrf.mxu0
      %v1358 = vadd.f32 0.0, %v1357
      %v1359 = vpop.f32.mrf.mxu0
      %1360 = vdwg.mxu0
      %v1361 = vadd.f32 %v1196, %v1343
      %v1362 = vadd.f32 %v1197, %v1345
      %v1363 = vadd.f32 %v1198, %v1348
      %v1364 = vadd.f32 %v1199, %v1350
      %v1365 = vadd.f32 %v1200, %v1353
      %v1366 = vadd.f32 %v1201, %v1355
      %v1367 = vadd.f32 %v1202, %v1358
      %s1368 = scalar_lea.vmem %s3, 224
      %v1369 = vld [vmem:[%s1368] sm:$0xff]
      %v1370 = vld [vmem:[%s1368 + $0x8] sm:$0xff]
      %v1371 = vld [vmem:[%s1368 + $0x10] sm:$0xff]
      %v1372 = vld [vmem:[%s1368 + $0x18] sm:$0xff]
      %v1373 = vld [vmem:[%s1368 + $0x20] sm:$0xff]
      %v1374 = vld [vmem:[%s1368 + $0x28] sm:$0xff]
      %v1375 = vld [vmem:[%s1368 + $0x30] sm:$0x11]
      %v1383 = vunpack.c.l.b16 %v1369
      %v1384 = vunpack.c.h.b16 %v1369
      %v1385 = vunpack.c.l.b16 %v1370
      %v1386 = vunpack.c.h.b16 %v1370
      %v1387 = vunpack.c.l.b16 %v1371
      %v1388 = vunpack.c.h.b16 %v1371
      %v1389 = vunpack.c.l.b16 %v1372
      %v1390 = vunpack.c.h.b16 %v1372
      %v1391 = vunpack.c.l.b16 %v1373
      %v1392 = vunpack.c.h.b16 %v1373
      %v1393 = vunpack.c.l.b16 %v1374
      %v1394 = vunpack.c.h.b16 %v1374
      %v1395 = vunpack.c.l.b16 %v1375
      %v1396 = vunpack.c.h.b16 %v1375
      %v1397 = vpack.c.b16 %v1385, %v1383
      %v1398 = vpack.c.b16 %v1386, %v1384
      %v1399 = vpack.c.b16 %v1389, %v1387
      %v1400 = vpack.c.b16 %v1390, %v1388
      %v1401 = vpack.c.b16 %v1393, %v1391
      %v1402 = vpack.c.b16 %v1394, %v1392
      %v1403 = vpack.c.b16 %v1395, %v1395
      %v1404 = vpack.c.b16 %v1396, %v1396
      %v1410 = vsel %vm755, %v1398, 0
      %v1413 = vsel %vm755, %v1400, 0
      %v1416 = vsel %vm755, %v1402, 0
      %v1419 = vsel %vm755, %v1404, 0
      %1421 = vmatpush.bf16.msra.mxu0 %v707
      %1422 = vmatpush.bf16.msra.mxu0 %v706
      %1423 = vmatpush.bf16.msra.mxu0 %v705
      %1424 = vmatpush.bf16.msra.mxu0 %v704
      %1425 = vmatpush.bf16.msra.mxu0 %v703
      %1426 = vmatpush.bf16.msra.mxu0 %v702
      %1427 = vmatpush.bf16.msra.mxu0 %v701
      %1428 = vmatpush.bf16.msra.mxu0 %v700
      %1429 = vmatmul.bf16.gmra.mxu0 %v1397
      %v1430 = vpop.f32.mrf.mxu0
      %v1431 = vadd.f32 0.0, %v1430
      %v1432 = vpop.f32.mrf.mxu0
      %v1433 = vadd.f32 0.0, %v1432
      %1434 = vmatmul.bf16.gmra.mxu0 %v1399
      %v1435 = vpop.f32.mrf.mxu0
      %v1436 = vadd.f32 0.0, %v1435
      %v1437 = vpop.f32.mrf.mxu0
      %v1438 = vadd.f32 0.0, %v1437
      %1439 = vmatmul.bf16.gmra.mxu0 %v1401
      %v1440 = vpop.f32.mrf.mxu0
      %v1441 = vadd.f32 0.0, %v1440
      %v1442 = vpop.f32.mrf.mxu0
      %v1443 = vadd.f32 0.0, %v1442
      %1444 = vmatmul.bf16.gmra.mxu0 %v1403
      %v1445 = vpop.f32.mrf.mxu0
      %v1446 = vadd.f32 0.0, %v1445
      %v1447 = vpop.f32.mrf.mxu0
      %1448 = vdwg.mxu0
      %1449 = vmatpush.bf16.msra.mxu0 0
      %1450 = vmatpush.bf16.msra.mxu0 %v772
      %1451 = vmatpush.bf16.msra.mxu0 %v713
      %1452 = vmatpush.bf16.msra.mxu0 %v712
      %1453 = vmatpush.bf16.msra.mxu0 %v711
      %1454 = vmatpush.bf16.msra.mxu0 %v710
      %1455 = vmatpush.bf16.msra.mxu0 %v709
      %1456 = vmatpush.bf16.msra.mxu0 %v708
      %1457 = vmatmul.bf16.gmra.mxu0 %v1410
      %v1458 = vpop.f32.mrf.mxu0
      %v1459 = vadd.f32 %v1431, %v1458
      %v1460 = vpop.f32.mrf.mxu0
      %v1461 = vadd.f32 %v1433, %v1460
      %1462 = vmatmul.bf16.gmra.mxu0 %v1413
      %v1463 = vpop.f32.mrf.mxu0
      %v1464 = vadd.f32 %v1436, %v1463
      %v1465 = vpop.f32.mrf.mxu0
      %v1466 = vadd.f32 %v1438, %v1465
      %1467 = vmatmul.bf16.gmra.mxu0 %v1416
      %v1468 = vpop.f32.mrf.mxu0
      %v1469 = vadd.f32 %v1441, %v1468
      %v1470 = vpop.f32.mrf.mxu0
      %v1471 = vadd.f32 %v1443, %v1470
      %1472 = vmatmul.bf16.gmra.mxu0 %v1419
      %v1473 = vpop.f32.mrf.mxu0
      %v1474 = vadd.f32 %v1446, %v1473
      %v1475 = vpop.f32.mrf.mxu0
      %1476 = vdwg.mxu0
      %v1477 = vpack.c.bf16 %v1461, %v1459
      %v1478 = vpack.c.bf16 %v1466, %v1464
      %v1479 = vpack.c.bf16 %v1471, %v1469
      %v1480 = vpack.c.bf16 %v1474, %v1474
      %s1481 = scalar_lea.vmem %s4, 16
      %v1482 = vld [vmem:[%s1481] sm:$0xf]
      %v1484 = vsel %vm950, %v1477, 0
      %v1487 = vsel %vm950, %v1478, 0
      %v1490 = vsel %vm950, %v1479, 0
      %v1493 = vsel %vm950, %v1480, 0
      %v1496 = vsel %vm963, %v1482, 0
      %1498 = vmatpush.bf16.msra.mxu0 0
      %1499 = vmatpush.bf16.msra.mxu0 0
      %1500 = vmatpush.bf16.msra.mxu0 0
      %1501 = vmatpush.bf16.msra.mxu0 0
      %1502 = vmatpush.bf16.msra.mxu0 0
      %1503 = vmatpush.bf16.msra.mxu0 0
      %1504 = vmatpush.bf16.msra.mxu0 0
      %1505 = vmatpush.bf16.msra.mxu0 %v1496
      %1506 = vmatmul.bf16.gmra.mxu0 %v1484
      %v1507 = vpop.f32.mrf.mxu0
      %v1508 = vadd.f32 0.0, %v1507
      %v1509 = vpop.f32.mrf.mxu0
      %v1510 = vadd.f32 0.0, %v1509
      %1511 = vmatmul.bf16.gmra.mxu0 %v1487
      %v1512 = vpop.f32.mrf.mxu0
      %v1513 = vadd.f32 0.0, %v1512
      %v1514 = vpop.f32.mrf.mxu0
      %v1515 = vadd.f32 0.0, %v1514
      %1516 = vmatmul.bf16.gmra.mxu0 %v1490
      %v1517 = vpop.f32.mrf.mxu0
      %v1518 = vadd.f32 0.0, %v1517
      %v1519 = vpop.f32.mrf.mxu0
      %v1520 = vadd.f32 0.0, %v1519
      %1521 = vmatmul.bf16.gmra.mxu0 %v1493
      %v1522 = vpop.f32.mrf.mxu0
      %v1523 = vadd.f32 0.0, %v1522
      %v1524 = vpop.f32.mrf.mxu0
      %1525 = vdwg.mxu0
      %v1526 = vadd.f32 %v1361, %v1508
      %v1527 = vadd.f32 %v1362, %v1510
      %v1528 = vadd.f32 %v1363, %v1513
      %v1529 = vadd.f32 %v1364, %v1515
      %v1530 = vadd.f32 %v1365, %v1518
      %v1531 = vadd.f32 %v1366, %v1520
      %v1532 = vadd.f32 %v1367, %v1523
      %s1533 = scalar_lea.vmem %s3, 280
      %v1534 = vld [vmem:[%s1533] sm:$0xff]
      %v1535 = vld [vmem:[%s1533 + $0x8] sm:$0xff]
      %v1536 = vld [vmem:[%s1533 + $0x10] sm:$0xff]
      %v1537 = vld [vmem:[%s1533 + $0x18] sm:$0xff]
      %v1538 = vld [vmem:[%s1533 + $0x20] sm:$0xff]
      %v1539 = vld [vmem:[%s1533 + $0x28] sm:$0xff]
      %v1540 = vld [vmem:[%s1533 + $0x30] sm:$0x11]
      %v1548 = vunpack.c.l.b16 %v1534
      %v1549 = vunpack.c.h.b16 %v1534
      %v1550 = vunpack.c.l.b16 %v1535
      %v1551 = vunpack.c.h.b16 %v1535
      %v1552 = vunpack.c.l.b16 %v1536
      %v1553 = vunpack.c.h.b16 %v1536
      %v1554 = vunpack.c.l.b16 %v1537
      %v1555 = vunpack.c.h.b16 %v1537
      %v1556 = vunpack.c.l.b16 %v1538
      %v1557 = vunpack.c.h.b16 %v1538
      %v1558 = vunpack.c.l.b16 %v1539
      %v1559 = vunpack.c.h.b16 %v1539
      %v1560 = vunpack.c.l.b16 %v1540
      %v1561 = vunpack.c.h.b16 %v1540
      %v1562 = vpack.c.b16 %v1550, %v1548
      %v1563 = vpack.c.b16 %v1551, %v1549
      %v1564 = vpack.c.b16 %v1554, %v1552
      %v1565 = vpack.c.b16 %v1555, %v1553
      %v1566 = vpack.c.b16 %v1558, %v1556
      %v1567 = vpack.c.b16 %v1559, %v1557
      %v1568 = vpack.c.b16 %v1560, %v1560
      %v1569 = vpack.c.b16 %v1561, %v1561
      %v1575 = vsel %vm755, %v1563, 0
      %v1578 = vsel %vm755, %v1565, 0
      %v1581 = vsel %vm755, %v1567, 0
      %v1584 = vsel %vm755, %v1569, 0
      %1586 = vmatpush.bf16.msra.mxu0 %v707
      %1587 = vmatpush.bf16.msra.mxu0 %v706
      %1588 = vmatpush.bf16.msra.mxu0 %v705
      %1589 = vmatpush.bf16.msra.mxu0 %v704
      %1590 = vmatpush.bf16.msra.mxu0 %v703
      %1591 = vmatpush.bf16.msra.mxu0 %v702
      %1592 = vmatpush.bf16.msra.mxu0 %v701
      %1593 = vmatpush.bf16.msra.mxu0 %v700
      %1594 = vmatmul.bf16.gmra.mxu0 %v1562
      %v1595 = vpop.f32.mrf.mxu0
      %v1596 = vadd.f32 0.0, %v1595
      %v1597 = vpop.f32.mrf.mxu0
      %v1598 = vadd.f32 0.0, %v1597
      %1599 = vmatmul.bf16.gmra.mxu0 %v1564
      %v1600 = vpop.f32.mrf.mxu0
      %v1601 = vadd.f32 0.0, %v1600
      %v1602 = vpop.f32.mrf.mxu0
      %v1603 = vadd.f32 0.0, %v1602
      %1604 = vmatmul.bf16.gmra.mxu0 %v1566
      %v1605 = vpop.f32.mrf.mxu0
      %v1606 = vadd.f32 0.0, %v1605
      %v1607 = vpop.f32.mrf.mxu0
      %v1608 = vadd.f32 0.0, %v1607
      %1609 = vmatmul.bf16.gmra.mxu0 %v1568
      %v1610 = vpop.f32.mrf.mxu0
      %v1611 = vadd.f32 0.0, %v1610
      %v1612 = vpop.f32.mrf.mxu0
      %1613 = vdwg.mxu0
      %1614 = vmatpush.bf16.msra.mxu0 0
      %1615 = vmatpush.bf16.msra.mxu0 %v772
      %1616 = vmatpush.bf16.msra.mxu0 %v713
      %1617 = vmatpush.bf16.msra.mxu0 %v712
      %1618 = vmatpush.bf16.msra.mxu0 %v711
      %1619 = vmatpush.bf16.msra.mxu0 %v710
      %1620 = vmatpush.bf16.msra.mxu0 %v709
      %1621 = vmatpush.bf16.msra.mxu0 %v708
      %1622 = vmatmul.bf16.gmra.mxu0 %v1575
      %v1623 = vpop.f32.mrf.mxu0
      %v1624 = vadd.f32 %v1596, %v1623
      %v1625 = vpop.f32.mrf.mxu0
      %v1626 = vadd.f32 %v1598, %v1625
      %1627 = vmatmul.bf16.gmra.mxu0 %v1578
      %v1628 = vpop.f32.mrf.mxu0
      %v1629 = vadd.f32 %v1601, %v1628
      %v1630 = vpop.f32.mrf.mxu0
      %v1631 = vadd.f32 %v1603, %v1630
      %1632 = vmatmul.bf16.gmra.mxu0 %v1581
      %v1633 = vpop.f32.mrf.mxu0
      %v1634 = vadd.f32 %v1606, %v1633
      %v1635 = vpop.f32.mrf.mxu0
      %v1636 = vadd.f32 %v1608, %v1635
      %1637 = vmatmul.bf16.gmra.mxu0 %v1584
      %v1638 = vpop.f32.mrf.mxu0
      %v1639 = vadd.f32 %v1611, %v1638
      %v1640 = vpop.f32.mrf.mxu0
      %1641 = vdwg.mxu0
      %v1642 = vpack.c.bf16 %v1626, %v1624
      %v1643 = vpack.c.bf16 %v1631, %v1629
      %v1644 = vpack.c.bf16 %v1636, %v1634
      %v1645 = vpack.c.bf16 %v1639, %v1639
      %s1646 = scalar_lea.vmem %s4, 20
      %v1647 = vld [vmem:[%s1646] sm:$0xf]
      %v1649 = vsel %vm950, %v1642, 0
      %v1652 = vsel %vm950, %v1643, 0
      %v1655 = vsel %vm950, %v1644, 0
      %v1658 = vsel %vm950, %v1645, 0
      %v1661 = vsel %vm963, %v1647, 0
      %1663 = vmatpush.bf16.msra.mxu0 0
      %1664 = vmatpush.bf16.msra.mxu0 0
      %1665 = vmatpush.bf16.msra.mxu0 0
      %1666 = vmatpush.bf16.msra.mxu0 0
      %1667 = vmatpush.bf16.msra.mxu0 0
      %1668 = vmatpush.bf16.msra.mxu0 0
      %1669 = vmatpush.bf16.msra.mxu0 0
      %1670 = vmatpush.bf16.msra.mxu0 %v1661
      %1671 = vmatmul.bf16.gmra.mxu0 %v1649
      %v1672 = vpop.f32.mrf.mxu0
      %v1673 = vadd.f32 0.0, %v1672
      %v1674 = vpop.f32.mrf.mxu0
      %v1675 = vadd.f32 0.0, %v1674
      %1676 = vmatmul.bf16.gmra.mxu0 %v1652
      %v1677 = vpop.f32.mrf.mxu0
      %v1678 = vadd.f32 0.0, %v1677
      %v1679 = vpop.f32.mrf.mxu0
      %v1680 = vadd.f32 0.0, %v1679
      %1681 = vmatmul.bf16.gmra.mxu0 %v1655
      %v1682 = vpop.f32.mrf.mxu0
      %v1683 = vadd.f32 0.0, %v1682
      %v1684 = vpop.f32.mrf.mxu0
      %v1685 = vadd.f32 0.0, %v1684
      %1686 = vmatmul.bf16.gmra.mxu0 %v1658
      %v1687 = vpop.f32.mrf.mxu0
      %v1688 = vadd.f32 0.0, %v1687
      %v1689 = vpop.f32.mrf.mxu0
      %1690 = vdwg.mxu0
      %v1691 = vadd.f32 %v1526, %v1673
      %v1692 = vadd.f32 %v1527, %v1675
      %v1693 = vadd.f32 %v1528, %v1678
      %v1694 = vadd.f32 %v1529, %v1680
      %v1695 = vadd.f32 %v1530, %v1683
      %v1696 = vadd.f32 %v1531, %v1685
      %v1697 = vadd.f32 %v1532, %v1688
      %s1698 = scalar_lea.vmem %s3, 336
      %v1699 = vld [vmem:[%s1698] sm:$0xff]
      %v1700 = vld [vmem:[%s1698 + $0x8] sm:$0xff]
      %v1701 = vld [vmem:[%s1698 + $0x10] sm:$0xff]
      %v1702 = vld [vmem:[%s1698 + $0x18] sm:$0xff]
      %v1703 = vld [vmem:[%s1698 + $0x20] sm:$0xff]
      %v1704 = vld [vmem:[%s1698 + $0x28] sm:$0xff]
      %v1705 = vld [vmem:[%s1698 + $0x30] sm:$0x11]
      %v1713 = vunpack.c.l.b16 %v1699
      %v1714 = vunpack.c.h.b16 %v1699
      %v1715 = vunpack.c.l.b16 %v1700
      %v1716 = vunpack.c.h.b16 %v1700
      %v1717 = vunpack.c.l.b16 %v1701
      %v1718 = vunpack.c.h.b16 %v1701
      %v1719 = vunpack.c.l.b16 %v1702
      %v1720 = vunpack.c.h.b16 %v1702
      %v1721 = vunpack.c.l.b16 %v1703
      %v1722 = vunpack.c.h.b16 %v1703
      %v1723 = vunpack.c.l.b16 %v1704
      %v1724 = vunpack.c.h.b16 %v1704
      %v1725 = vunpack.c.l.b16 %v1705
      %v1726 = vunpack.c.h.b16 %v1705
      %v1727 = vpack.c.b16 %v1715, %v1713
      %v1728 = vpack.c.b16 %v1716, %v1714
      %v1729 = vpack.c.b16 %v1719, %v1717
      %v1730 = vpack.c.b16 %v1720, %v1718
      %v1731 = vpack.c.b16 %v1723, %v1721
      %v1732 = vpack.c.b16 %v1724, %v1722
      %v1733 = vpack.c.b16 %v1725, %v1725
      %v1734 = vpack.c.b16 %v1726, %v1726
      %v1740 = vsel %vm755, %v1728, 0
      %v1743 = vsel %vm755, %v1730, 0
      %v1746 = vsel %vm755, %v1732, 0
      %v1749 = vsel %vm755, %v1734, 0
      %1751 = vmatpush.bf16.msra.mxu0 %v707
      %1752 = vmatpush.bf16.msra.mxu0 %v706
      %1753 = vmatpush.bf16.msra.mxu0 %v705
      %1754 = vmatpush.bf16.msra.mxu0 %v704
      %1755 = vmatpush.bf16.msra.mxu0 %v703
      %1756 = vmatpush.bf16.msra.mxu0 %v702
      %1757 = vmatpush.bf16.msra.mxu0 %v701
      %1758 = vmatpush.bf16.msra.mxu0 %v700
      %1759 = vmatmul.bf16.gmra.mxu0 %v1727
      %v1760 = vpop.f32.mrf.mxu0
      %v1761 = vadd.f32 0.0, %v1760
      %v1762 = vpop.f32.mrf.mxu0
      %v1763 = vadd.f32 0.0, %v1762
      %1764 = vmatmul.bf16.gmra.mxu0 %v1729
      %v1765 = vpop.f32.mrf.mxu0
      %v1766 = vadd.f32 0.0, %v1765
      %v1767 = vpop.f32.mrf.mxu0
      %v1768 = vadd.f32 0.0, %v1767
      %1769 = vmatmul.bf16.gmra.mxu0 %v1731
      %v1770 = vpop.f32.mrf.mxu0
      %v1771 = vadd.f32 0.0, %v1770
      %v1772 = vpop.f32.mrf.mxu0
      %v1773 = vadd.f32 0.0, %v1772
      %1774 = vmatmul.bf16.gmra.mxu0 %v1733
      %v1775 = vpop.f32.mrf.mxu0
      %v1776 = vadd.f32 0.0, %v1775
      %v1777 = vpop.f32.mrf.mxu0
      %1778 = vdwg.mxu0
      %1779 = vmatpush.bf16.msra.mxu0 0
      %1780 = vmatpush.bf16.msra.mxu0 %v772
      %1781 = vmatpush.bf16.msra.mxu0 %v713
      %1782 = vmatpush.bf16.msra.mxu0 %v712
      %1783 = vmatpush.bf16.msra.mxu0 %v711
      %1784 = vmatpush.bf16.msra.mxu0 %v710
      %1785 = vmatpush.bf16.msra.mxu0 %v709
      %1786 = vmatpush.bf16.msra.mxu0 %v708
      %1787 = vmatmul.bf16.gmra.mxu0 %v1740
      %v1788 = vpop.f32.mrf.mxu0
      %v1789 = vadd.f32 %v1761, %v1788
      %v1790 = vpop.f32.mrf.mxu0
      %v1791 = vadd.f32 %v1763, %v1790
      %1792 = vmatmul.bf16.gmra.mxu0 %v1743
      %v1793 = vpop.f32.mrf.mxu0
      %v1794 = vadd.f32 %v1766, %v1793
      %v1795 = vpop.f32.mrf.mxu0
      %v1796 = vadd.f32 %v1768, %v1795
      %1797 = vmatmul.bf16.gmra.mxu0 %v1746
      %v1798 = vpop.f32.mrf.mxu0
      %v1799 = vadd.f32 %v1771, %v1798
      %v1800 = vpop.f32.mrf.mxu0
      %v1801 = vadd.f32 %v1773, %v1800
      %1802 = vmatmul.bf16.gmra.mxu0 %v1749
      %v1803 = vpop.f32.mrf.mxu0
      %v1804 = vadd.f32 %v1776, %v1803
      %v1805 = vpop.f32.mrf.mxu0
      %1806 = vdwg.mxu0
      %v1807 = vpack.c.bf16 %v1791, %v1789
      %v1808 = vpack.c.bf16 %v1796, %v1794
      %v1809 = vpack.c.bf16 %v1801, %v1799
      %v1810 = vpack.c.bf16 %v1804, %v1804
      %s1811 = scalar_lea.vmem %s4, 24
      %v1812 = vld [vmem:[%s1811] sm:$0xf]
      %v1814 = vsel %vm950, %v1807, 0
      %v1817 = vsel %vm950, %v1808, 0
      %v1820 = vsel %vm950, %v1809, 0
      %v1823 = vsel %vm950, %v1810, 0
      %v1826 = vsel %vm963, %v1812, 0
      %1828 = vmatpush.bf16.msra.mxu0 0
      %1829 = vmatpush.bf16.msra.mxu0 0
      %1830 = vmatpush.bf16.msra.mxu0 0
      %1831 = vmatpush.bf16.msra.mxu0 0
      %1832 = vmatpush.bf16.msra.mxu0 0
      %1833 = vmatpush.bf16.msra.mxu0 0
      %1834 = vmatpush.bf16.msra.mxu0 0
      %1835 = vmatpush.bf16.msra.mxu0 %v1826
      %1836 = vmatmul.bf16.gmra.mxu0 %v1814
      %v1837 = vpop.f32.mrf.mxu0
      %v1838 = vadd.f32 0.0, %v1837
      %v1839 = vpop.f32.mrf.mxu0
      %v1840 = vadd.f32 0.0, %v1839
      %1841 = vmatmul.bf16.gmra.mxu0 %v1817
      %v1842 = vpop.f32.mrf.mxu0
      %v1843 = vadd.f32 0.0, %v1842
      %v1844 = vpop.f32.mrf.mxu0
      %v1845 = vadd.f32 0.0, %v1844
      %1846 = vmatmul.bf16.gmra.mxu0 %v1820
      %v1847 = vpop.f32.mrf.mxu0
      %v1848 = vadd.f32 0.0, %v1847
      %v1849 = vpop.f32.mrf.mxu0
      %v1850 = vadd.f32 0.0, %v1849
      %1851 = vmatmul.bf16.gmra.mxu0 %v1823
      %v1852 = vpop.f32.mrf.mxu0
      %v1853 = vadd.f32 0.0, %v1852
      %v1854 = vpop.f32.mrf.mxu0
      %1855 = vdwg.mxu0
      %v1856 = vadd.f32 %v1691, %v1838
      %v1857 = vadd.f32 %v1692, %v1840
      %v1858 = vadd.f32 %v1693, %v1843
      %v1859 = vadd.f32 %v1694, %v1845
      %v1860 = vadd.f32 %v1695, %v1848
      %v1861 = vadd.f32 %v1696, %v1850
      %v1862 = vadd.f32 %v1697, %v1853
      %s1863 = scalar_lea.vmem %s3, 392
      %v1864 = vld [vmem:[%s1863] sm:$0xff]
      %v1865 = vld [vmem:[%s1863 + $0x8] sm:$0xff]
      %v1866 = vld [vmem:[%s1863 + $0x10] sm:$0xff]
      %v1867 = vld [vmem:[%s1863 + $0x18] sm:$0xff]
      %v1868 = vld [vmem:[%s1863 + $0x20] sm:$0xff]
      %v1869 = vld [vmem:[%s1863 + $0x28] sm:$0xff]
      %v1870 = vld [vmem:[%s1863 + $0x30] sm:$0x11]
      %v1878 = vunpack.c.l.b16 %v1864
      %v1879 = vunpack.c.h.b16 %v1864
      %v1880 = vunpack.c.l.b16 %v1865
      %v1881 = vunpack.c.h.b16 %v1865
      %v1882 = vunpack.c.l.b16 %v1866
      %v1883 = vunpack.c.h.b16 %v1866
      %v1884 = vunpack.c.l.b16 %v1867
      %v1885 = vunpack.c.h.b16 %v1867
      %v1886 = vunpack.c.l.b16 %v1868
      %v1887 = vunpack.c.h.b16 %v1868
      %v1888 = vunpack.c.l.b16 %v1869
      %v1889 = vunpack.c.h.b16 %v1869
      %v1890 = vunpack.c.l.b16 %v1870
      %v1891 = vunpack.c.h.b16 %v1870
      %v1892 = vpack.c.b16 %v1880, %v1878
      %v1893 = vpack.c.b16 %v1881, %v1879
      %v1894 = vpack.c.b16 %v1884, %v1882
      %v1895 = vpack.c.b16 %v1885, %v1883
      %v1896 = vpack.c.b16 %v1888, %v1886
      %v1897 = vpack.c.b16 %v1889, %v1887
      %v1898 = vpack.c.b16 %v1890, %v1890
      %v1899 = vpack.c.b16 %v1891, %v1891
      %v1905 = vsel %vm755, %v1893, 0
      %v1908 = vsel %vm755, %v1895, 0
      %v1911 = vsel %vm755, %v1897, 0
      %v1914 = vsel %vm755, %v1899, 0
      %1916 = vmatpush.bf16.msra.mxu0 %v707
      %1917 = vmatpush.bf16.msra.mxu0 %v706
      %1918 = vmatpush.bf16.msra.mxu0 %v705
      %1919 = vmatpush.bf16.msra.mxu0 %v704
      %1920 = vmatpush.bf16.msra.mxu0 %v703
      %1921 = vmatpush.bf16.msra.mxu0 %v702
      %1922 = vmatpush.bf16.msra.mxu0 %v701
      %1923 = vmatpush.bf16.msra.mxu0 %v700
      %1924 = vmatmul.bf16.gmra.mxu0 %v1892
      %v1925 = vpop.f32.mrf.mxu0
      %v1926 = vadd.f32 0.0, %v1925
      %v1927 = vpop.f32.mrf.mxu0
      %v1928 = vadd.f32 0.0, %v1927
      %1929 = vmatmul.bf16.gmra.mxu0 %v1894
      %v1930 = vpop.f32.mrf.mxu0
      %v1931 = vadd.f32 0.0, %v1930
      %v1932 = vpop.f32.mrf.mxu0
      %v1933 = vadd.f32 0.0, %v1932
      %1934 = vmatmul.bf16.gmra.mxu0 %v1896
      %v1935 = vpop.f32.mrf.mxu0
      %v1936 = vadd.f32 0.0, %v1935
      %v1937 = vpop.f32.mrf.mxu0
      %v1938 = vadd.f32 0.0, %v1937
      %1939 = vmatmul.bf16.gmra.mxu0 %v1898
      %v1940 = vpop.f32.mrf.mxu0
      %v1941 = vadd.f32 0.0, %v1940
      %v1942 = vpop.f32.mrf.mxu0
      %1943 = vdwg.mxu0
      %1944 = vmatpush.bf16.msra.mxu0 0
      %1945 = vmatpush.bf16.msra.mxu0 %v772
      %1946 = vmatpush.bf16.msra.mxu0 %v713
      %1947 = vmatpush.bf16.msra.mxu0 %v712
      %1948 = vmatpush.bf16.msra.mxu0 %v711
      %1949 = vmatpush.bf16.msra.mxu0 %v710
      %1950 = vmatpush.bf16.msra.mxu0 %v709
      %1951 = vmatpush.bf16.msra.mxu0 %v708
      %1952 = vmatmul.bf16.gmra.mxu0 %v1905
      %v1953 = vpop.f32.mrf.mxu0
      %v1954 = vadd.f32 %v1926, %v1953
      %v1955 = vpop.f32.mrf.mxu0
      %v1956 = vadd.f32 %v1928, %v1955
      %1957 = vmatmul.bf16.gmra.mxu0 %v1908
      %v1958 = vpop.f32.mrf.mxu0
      %v1959 = vadd.f32 %v1931, %v1958
      %v1960 = vpop.f32.mrf.mxu0
      %v1961 = vadd.f32 %v1933, %v1960
      %1962 = vmatmul.bf16.gmra.mxu0 %v1911
      %v1963 = vpop.f32.mrf.mxu0
      %v1964 = vadd.f32 %v1936, %v1963
      %v1965 = vpop.f32.mrf.mxu0
      %v1966 = vadd.f32 %v1938, %v1965
      %1967 = vmatmul.bf16.gmra.mxu0 %v1914
      %v1968 = vpop.f32.mrf.mxu0
      %v1969 = vadd.f32 %v1941, %v1968
      %v1970 = vpop.f32.mrf.mxu0
      %1971 = vdwg.mxu0
      %v1972 = vpack.c.bf16 %v1956, %v1954
      %v1973 = vpack.c.bf16 %v1961, %v1959
      %v1974 = vpack.c.bf16 %v1966, %v1964
      %v1975 = vpack.c.bf16 %v1969, %v1969
      %s1976 = scalar_lea.vmem %s4, 28
      %v1977 = vld [vmem:[%s1976] sm:$0xf]
      %v1979 = vsel %vm950, %v1972, 0
      %v1982 = vsel %vm950, %v1973, 0
      %v1985 = vsel %vm950, %v1974, 0
      %v1988 = vsel %vm950, %v1975, 0
      %v1991 = vsel %vm963, %v1977, 0
      %1993 = vmatpush.bf16.msra.mxu0 0
      %1994 = vmatpush.bf16.msra.mxu0 0
      %1995 = vmatpush.bf16.msra.mxu0 0
      %1996 = vmatpush.bf16.msra.mxu0 0
      %1997 = vmatpush.bf16.msra.mxu0 0
      %1998 = vmatpush.bf16.msra.mxu0 0
      %1999 = vmatpush.bf16.msra.mxu0 0
      %2000 = vmatpush.bf16.msra.mxu0 %v1991
      %2001 = vmatmul.bf16.gmra.mxu0 %v1979
      %v2002 = vpop.f32.mrf.mxu0
      %v2003 = vadd.f32 0.0, %v2002
      %v2004 = vpop.f32.mrf.mxu0
      %v2005 = vadd.f32 0.0, %v2004
      %2006 = vmatmul.bf16.gmra.mxu0 %v1982
      %v2007 = vpop.f32.mrf.mxu0
      %v2008 = vadd.f32 0.0, %v2007
      %v2009 = vpop.f32.mrf.mxu0
      %v2010 = vadd.f32 0.0, %v2009
      %2011 = vmatmul.bf16.gmra.mxu0 %v1985
      %v2012 = vpop.f32.mrf.mxu0
      %v2013 = vadd.f32 0.0, %v2012
      %v2014 = vpop.f32.mrf.mxu0
      %v2015 = vadd.f32 0.0, %v2014
      %2016 = vmatmul.bf16.gmra.mxu0 %v1988
      %v2017 = vpop.f32.mrf.mxu0
      %v2018 = vadd.f32 0.0, %v2017
      %v2019 = vpop.f32.mrf.mxu0
      %2020 = vdwg.mxu0
      %v2021 = vadd.f32 %v1856, %v2003
      %v2022 = vadd.f32 %v1857, %v2005
      %v2023 = vadd.f32 %v1858, %v2008
      %v2024 = vadd.f32 %v1859, %v2010
      %v2025 = vadd.f32 %v1860, %v2013
      %v2026 = vadd.f32 %v1861, %v2015
      %v2027 = vadd.f32 %v1862, %v2018
      %s2028 = scalar_lea.vmem %s3, 448
      %v2029 = vld [vmem:[%s2028] sm:$0xff]
      %v2030 = vld [vmem:[%s2028 + $0x8] sm:$0xff]
      %v2031 = vld [vmem:[%s2028 + $0x10] sm:$0xff]
      %v2032 = vld [vmem:[%s2028 + $0x18] sm:$0xff]
      %v2033 = vld [vmem:[%s2028 + $0x20] sm:$0xff]
      %v2034 = vld [vmem:[%s2028 + $0x28] sm:$0xff]
      %v2035 = vld [vmem:[%s2028 + $0x30] sm:$0x11]
      %v2043 = vunpack.c.l.b16 %v2029
      %v2044 = vunpack.c.h.b16 %v2029
      %v2045 = vunpack.c.l.b16 %v2030
      %v2046 = vunpack.c.h.b16 %v2030
      %v2047 = vunpack.c.l.b16 %v2031
      %v2048 = vunpack.c.h.b16 %v2031
      %v2049 = vunpack.c.l.b16 %v2032
      %v2050 = vunpack.c.h.b16 %v2032
      %v2051 = vunpack.c.l.b16 %v2033
      %v2052 = vunpack.c.h.b16 %v2033
      %v2053 = vunpack.c.l.b16 %v2034
      %v2054 = vunpack.c.h.b16 %v2034
      %v2055 = vunpack.c.l.b16 %v2035
      %v2056 = vunpack.c.h.b16 %v2035
      %v2057 = vpack.c.b16 %v2045, %v2043
      %v2058 = vpack.c.b16 %v2046, %v2044
      %v2059 = vpack.c.b16 %v2049, %v2047
      %v2060 = vpack.c.b16 %v2050, %v2048
      %v2061 = vpack.c.b16 %v2053, %v2051
      %v2062 = vpack.c.b16 %v2054, %v2052
      %v2063 = vpack.c.b16 %v2055, %v2055
      %v2064 = vpack.c.b16 %v2056, %v2056
      %v2070 = vsel %vm755, %v2058, 0
      %v2073 = vsel %vm755, %v2060, 0
      %v2076 = vsel %vm755, %v2062, 0
      %v2079 = vsel %vm755, %v2064, 0
      %2081 = vmatpush.bf16.msra.mxu0 %v707
      %2082 = vmatpush.bf16.msra.mxu0 %v706
      %2083 = vmatpush.bf16.msra.mxu0 %v705
      %2084 = vmatpush.bf16.msra.mxu0 %v704
      %2085 = vmatpush.bf16.msra.mxu0 %v703
      %2086 = vmatpush.bf16.msra.mxu0 %v702
      %2087 = vmatpush.bf16.msra.mxu0 %v701
      %2088 = vmatpush.bf16.msra.mxu0 %v700
      %2089 = vmatmul.bf16.gmra.mxu0 %v2057
      %v2090 = vpop.f32.mrf.mxu0
      %v2091 = vadd.f32 0.0, %v2090
      %v2092 = vpop.f32.mrf.mxu0
      %v2093 = vadd.f32 0.0, %v2092
      %2094 = vmatmul.bf16.gmra.mxu0 %v2059
      %v2095 = vpop.f32.mrf.mxu0
      %v2096 = vadd.f32 0.0, %v2095
      %v2097 = vpop.f32.mrf.mxu0
      %v2098 = vadd.f32 0.0, %v2097
      %2099 = vmatmul.bf16.gmra.mxu0 %v2061
      %v2100 = vpop.f32.mrf.mxu0
      %v2101 = vadd.f32 0.0, %v2100
      %v2102 = vpop.f32.mrf.mxu0
      %v2103 = vadd.f32 0.0, %v2102
      %2104 = vmatmul.bf16.gmra.mxu0 %v2063
      %v2105 = vpop.f32.mrf.mxu0
      %v2106 = vadd.f32 0.0, %v2105
      %v2107 = vpop.f32.mrf.mxu0
      %2108 = vdwg.mxu0
      %2109 = vmatpush.bf16.msra.mxu0 0
      %2110 = vmatpush.bf16.msra.mxu0 %v772
      %2111 = vmatpush.bf16.msra.mxu0 %v713
      %2112 = vmatpush.bf16.msra.mxu0 %v712
      %2113 = vmatpush.bf16.msra.mxu0 %v711
      %2114 = vmatpush.bf16.msra.mxu0 %v710
      %2115 = vmatpush.bf16.msra.mxu0 %v709
      %2116 = vmatpush.bf16.msra.mxu0 %v708
      %2117 = vmatmul.bf16.gmra.mxu0 %v2070
      %v2118 = vpop.f32.mrf.mxu0
      %v2119 = vadd.f32 %v2091, %v2118
      %v2120 = vpop.f32.mrf.mxu0
      %v2121 = vadd.f32 %v2093, %v2120
      %2122 = vmatmul.bf16.gmra.mxu0 %v2073
      %v2123 = vpop.f32.mrf.mxu0
      %v2124 = vadd.f32 %v2096, %v2123
      %v2125 = vpop.f32.mrf.mxu0
      %v2126 = vadd.f32 %v2098, %v2125
      %2127 = vmatmul.bf16.gmra.mxu0 %v2076
      %v2128 = vpop.f32.mrf.mxu0
      %v2129 = vadd.f32 %v2101, %v2128
      %v2130 = vpop.f32.mrf.mxu0
      %v2131 = vadd.f32 %v2103, %v2130
      %2132 = vmatmul.bf16.gmra.mxu0 %v2079
      %v2133 = vpop.f32.mrf.mxu0
      %v2134 = vadd.f32 %v2106, %v2133
      %v2135 = vpop.f32.mrf.mxu0
      %2136 = vdwg.mxu0
      %v2137 = vpack.c.bf16 %v2121, %v2119
      %v2138 = vpack.c.bf16 %v2126, %v2124
      %v2139 = vpack.c.bf16 %v2131, %v2129
      %v2140 = vpack.c.bf16 %v2134, %v2134
      %s2141 = scalar_lea.vmem %s4, 32
      %v2142 = vld [vmem:[%s2141] sm:$0xf]
      %v2144 = vsel %vm950, %v2137, 0
      %v2147 = vsel %vm950, %v2138, 0
      %v2150 = vsel %vm950, %v2139, 0
      %v2153 = vsel %vm950, %v2140, 0
      %v2156 = vsel %vm963, %v2142, 0
      %2158 = vmatpush.bf16.msra.mxu0 0
      %2159 = vmatpush.bf16.msra.mxu0 0
      %2160 = vmatpush.bf16.msra.mxu0 0
      %2161 = vmatpush.bf16.msra.mxu0 0
      %2162 = vmatpush.bf16.msra.mxu0 0
      %2163 = vmatpush.bf16.msra.mxu0 0
      %2164 = vmatpush.bf16.msra.mxu0 0
      %2165 = vmatpush.bf16.msra.mxu0 %v2156
      %2166 = vmatmul.bf16.gmra.mxu0 %v2144
      %v2167 = vpop.f32.mrf.mxu0
      %v2168 = vadd.f32 0.0, %v2167
      %v2169 = vpop.f32.mrf.mxu0
      %v2170 = vadd.f32 0.0, %v2169
      %2171 = vmatmul.bf16.gmra.mxu0 %v2147
      %v2172 = vpop.f32.mrf.mxu0
      %v2173 = vadd.f32 0.0, %v2172
      %v2174 = vpop.f32.mrf.mxu0
      %v2175 = vadd.f32 0.0, %v2174
      %2176 = vmatmul.bf16.gmra.mxu0 %v2150
      %v2177 = vpop.f32.mrf.mxu0
      %v2178 = vadd.f32 0.0, %v2177
      %v2179 = vpop.f32.mrf.mxu0
      %v2180 = vadd.f32 0.0, %v2179
      %2181 = vmatmul.bf16.gmra.mxu0 %v2153
      %v2182 = vpop.f32.mrf.mxu0
      %v2183 = vadd.f32 0.0, %v2182
      %v2184 = vpop.f32.mrf.mxu0
      %2185 = vdwg.mxu0
      %v2186 = vadd.f32 %v2021, %v2168
      %v2187 = vadd.f32 %v2022, %v2170
      %v2188 = vadd.f32 %v2023, %v2173
      %v2189 = vadd.f32 %v2024, %v2175
      %v2190 = vadd.f32 %v2025, %v2178
      %v2191 = vadd.f32 %v2026, %v2180
      %v2192 = vadd.f32 %v2027, %v2183
      %v2193 = vld [vmem:[%s5] sm:$0x1]
      %v2195 = vperm.slane %v2193, 0
      %v2197 = vadd.f32 %v2186, %v2195
      %v2198 = vadd.f32 %v2187, %v2195
      %v2199 = vadd.f32 %v2188, %v2195
      %v2200 = vadd.f32 %v2189, %v2195
      %v2201 = vadd.f32 %v2190, %v2195
      %v2202 = vadd.f32 %v2191, %v2195
      %v2203 = vadd.f32 %v2192, %v2195
      %v2204 = vpack.c.bf16 %v2198, %v2197
      %v2205 = vpack.c.bf16 %v2200, %v2199
      %v2206 = vpack.c.bf16 %v2202, %v2201
      %v2207 = vpack.c.bf16 %v2203, %v2203
      %v2208 = vld [vmem:[%s6] sm:$0xf]
      %v2209 = vld [vmem:[%s6 + $0x4] sm:$0x1]
      %v2212 = vunpack.c.l.b16 %v2208
      %v2213 = vunpack.c.l.b16 %v2209
      %v2214 = vpack.c.b16 %v2213, %v2212
      %vm2215 = vcmask 400384
      %v2217 = vsel %vm2215, %v2214, 0
      %v2220 = vand.u32 %v2207, %v770
      %2222 = vmatpush.bf16.msra.mxu0 0
      %2223 = vmatpush.bf16.msra.mxu0 0
      %2224 = vmatpush.bf16.msra.mxu0 0
      %2225 = vmatpush.bf16.msra.mxu0 0
      %2226 = vmatpush.bf16.msra.mxu0 %v2220
      %2227 = vmatpush.bf16.msra.mxu0 %v2206
      %2228 = vmatpush.bf16.msra.mxu0 %v2205
      %2229 = vmatpush.bf16.msra.mxu0 %v2204
      %2230 = vmatmul.bf16.gmra.mxu0 %v2217
      %v2231 = vpop.f32.mrf.mxu0
      %v2232 = vadd.f32 0.0, %v2231
      %v2233 = vpop.f32.mrf.mxu0
      %v2234 = vadd.f32 0.0, %v2233
      %2235 = vdwg.mxu0
      %v2236 = vpack.c.bf16 %v2234, %v2232
      %v2237 = vld [vmem:[%s7] sm:$0xf]
      %v2238 = vld [vmem:[%s7 + $0x4] sm:$0xf]
      %s2239 = scalar_lea.vmem %s6, 8
      %v2240 = vld [vmem:[%s2239] sm:$0xf]
      %v2241 = vld [vmem:[%s2239 + $0x4] sm:$0x1]
      %v2244 = vunpack.c.l.b16 %v2240
      %v2245 = vunpack.c.l.b16 %v2241
      %v2246 = vpack.c.b16 %v2245, %v2244
      %v2248 = vsel %vm2215, %v2246, 0
      %2250 = vmatpush.bf16.msra.mxu0 0
      %2251 = vmatpush.bf16.msra.mxu0 0
      %2252 = vmatpush.bf16.msra.mxu0 0
      %2253 = vmatpush.bf16.msra.mxu0 0
      %2254 = vmatpush.bf16.msra.mxu0 %v2220
      %2255 = vmatpush.bf16.msra.mxu0 %v2206
      %2256 = vmatpush.bf16.msra.mxu0 %v2205
      %2257 = vmatpush.bf16.msra.mxu0 %v2204
      %2258 = vmatmul.bf16.gmra.mxu0 %v2248
      %v2259 = vpop.f32.mrf.mxu0
      %v2260 = vadd.f32 0.0, %v2259
      %v2261 = vpop.f32.mrf.mxu0
      %v2262 = vadd.f32 0.0, %v2261
      %2263 = vdwg.mxu0
      %v2264 = vpack.c.bf16 %v2262, %v2260
      %s2265 = scalar_lea.vmem %s7, 8
      %v2266 = vld [vmem:[%s2265] sm:$0xf]
      %v2267 = vld [vmem:[%s2265 + $0x4] sm:$0xf]
      %v2270 = vunpack.c.l.b16 %v2266
      %v2271 = vunpack.c.l.b16 %v2267
      %v2272 = vpack.c.b16 %v2271, %v2270
      %vm2274 = vcmask 130048
      %v2276 = vsel %vm2274, %v2264, 0
      %2278 = vmatpush.bf16.msra.mxu0 0
      %2279 = vmatpush.bf16.msra.mxu0 0
      %2280 = vmatpush.bf16.msra.mxu0 0
      %2281 = vmatpush.bf16.msra.mxu0 0
      %2282 = vmatpush.bf16.msra.mxu0 0
      %2283 = vmatpush.bf16.msra.mxu0 0
      %2284 = vmatpush.bf16.msra.mxu0 0
      %2285 = vmatpush.bf16.msra.mxu0 %v2272
      %2286 = vmatmul.bf16.gmra.mxu0 %v2276
      %v2287 = vpop.f32.mrf.mxu0
      %v2288 = vadd.f32 0.0, %v2287
      %v2289 = vpop.f32.mrf.mxu0
      %v2290 = vadd.f32 0.0, %v2289
      %2291 = vdwg.mxu0
      %v2294 = vunpack.c.l.b16 %v2237
      %v2295 = vunpack.c.l.b16 %v2238
      %v2296 = vpack.c.b16 %v2295, %v2294
      %v2299 = vsel %vm2274, %v2236, 0
      %2301 = vmatpush.bf16.msra.mxu0 0
      %2302 = vmatpush.bf16.msra.mxu0 0
      %2303 = vmatpush.bf16.msra.mxu0 0
      %2304 = vmatpush.bf16.msra.mxu0 0
      %2305 = vmatpush.bf16.msra.mxu0 0
      %2306 = vmatpush.bf16.msra.mxu0 0
      %2307 = vmatpush.bf16.msra.mxu0 0
      %2308 = vmatpush.bf16.msra.mxu0 %v2296
      %2309 = vmatmul.bf16.gmra.mxu0 %v2299
      %v2310 = vpop.f32.mrf.mxu0
      %v2311 = vadd.f32 %v2288, %v2310
      %v2312 = vpop.f32.mrf.mxu0
      %v2313 = vadd.f32 %v2290, %v2312
      %2314 = vdwg.mxu0
      %s2315 = scalar_lea.vmem %s6, 16
      %v2316 = vld [vmem:[%s2315] sm:$0xf]
      %v2317 = vld [vmem:[%s2315 + $0x4] sm:$0x1]
      %v2320 = vunpack.c.l.b16 %v2316
      %v2321 = vunpack.c.l.b16 %v2317
      %v2322 = vpack.c.b16 %v2321, %v2320
      %v2324 = vsel %vm2215, %v2322, 0
      %2326 = vmatpush.bf16.msra.mxu0 0
      %2327 = vmatpush.bf16.msra.mxu0 0
      %2328 = vmatpush.bf16.msra.mxu0 0
      %2329 = vmatpush.bf16.msra.mxu0 0
      %2330 = vmatpush.bf16.msra.mxu0 %v2220
      %2331 = vmatpush.bf16.msra.mxu0 %v2206
      %2332 = vmatpush.bf16.msra.mxu0 %v2205
      %2333 = vmatpush.bf16.msra.mxu0 %v2204
      %2334 = vmatmul.bf16.gmra.mxu0 %v2324
      %v2335 = vpop.f32.mrf.mxu0
      %v2336 = vadd.f32 0.0, %v2335
      %v2337 = vpop.f32.mrf.mxu0
      %v2338 = vadd.f32 0.0, %v2337
      %2339 = vdwg.mxu0
      %v2340 = vpack.c.bf16 %v2338, %v2336
      %s2341 = scalar_lea.vmem %s7, 16
      %v2342 = vld [vmem:[%s2341] sm:$0xf]
      %v2343 = vld [vmem:[%s2341 + $0x4] sm:$0xf]
      %v2346 = vunpack.c.l.b16 %v2342
      %v2347 = vunpack.c.l.b16 %v2343
      %v2348 = vpack.c.b16 %v2347, %v2346
      %v2351 = vsel %vm2274, %v2340, 0
      %2353 = vmatpush.bf16.msra.mxu0 0
      %2354 = vmatpush.bf16.msra.mxu0 0
      %2355 = vmatpush.bf16.msra.mxu0 0
      %2356 = vmatpush.bf16.msra.mxu0 0
      %2357 = vmatpush.bf16.msra.mxu0 0
      %2358 = vmatpush.bf16.msra.mxu0 0
      %2359 = vmatpush.bf16.msra.mxu0 0
      %2360 = vmatpush.bf16.msra.mxu0 %v2348
      %2361 = vmatmul.bf16.gmra.mxu0 %v2351
      %v2362 = vpop.f32.mrf.mxu0
      %v2363 = vadd.f32 0.0, %v2362
      %v2364 = vpop.f32.mrf.mxu0
      %v2365 = vadd.f32 0.0, %v2364
      %2366 = vdwg.mxu0
      %v2367 = vadd.f32 %v2311, %v2363
      %v2368 = vadd.f32 %v2313, %v2365
      %s2369 = scalar_lea.vmem %s6, 24
      %v2370 = vld [vmem:[%s2369] sm:$0xf]
      %v2371 = vld [vmem:[%s2369 + $0x4] sm:$0x1]
      %v2374 = vunpack.c.l.b16 %v2370
      %v2375 = vunpack.c.l.b16 %v2371
      %v2376 = vpack.c.b16 %v2375, %v2374
      %v2378 = vsel %vm2215, %v2376, 0
      %2380 = vmatpush.bf16.msra.mxu0 0
      %2381 = vmatpush.bf16.msra.mxu0 0
      %2382 = vmatpush.bf16.msra.mxu0 0
      %2383 = vmatpush.bf16.msra.mxu0 0
      %2384 = vmatpush.bf16.msra.mxu0 %v2220
      %2385 = vmatpush.bf16.msra.mxu0 %v2206
      %2386 = vmatpush.bf16.msra.mxu0 %v2205
      %2387 = vmatpush.bf16.msra.mxu0 %v2204
      %2388 = vmatmul.bf16.gmra.mxu0 %v2378
      %v2389 = vpop.f32.mrf.mxu0
      %v2390 = vadd.f32 0.0, %v2389
      %v2391 = vpop.f32.mrf.mxu0
      %v2392 = vadd.f32 0.0, %v2391
      %2393 = vdwg.mxu0
      %v2394 = vpack.c.bf16 %v2392, %v2390
      %s2395 = scalar_lea.vmem %s7, 24
      %v2396 = vld [vmem:[%s2395] sm:$0xf]
      %v2397 = vld [vmem:[%s2395 + $0x4] sm:$0xf]
      %v2400 = vunpack.c.l.b16 %v2396
      %v2401 = vunpack.c.l.b16 %v2397
      %v2402 = vpack.c.b16 %v2401, %v2400
      %v2405 = vsel %vm2274, %v2394, 0
      %2407 = vmatpush.bf16.msra.mxu0 0
      %2408 = vmatpush.bf16.msra.mxu0 0
      %2409 = vmatpush.bf16.msra.mxu0 0
      %2410 = vmatpush.bf16.msra.mxu0 0
      %2411 = vmatpush.bf16.msra.mxu0 0
      %2412 = vmatpush.bf16.msra.mxu0 0
      %2413 = vmatpush.bf16.msra.mxu0 0
      %2414 = vmatpush.bf16.msra.mxu0 %v2402
      %2415 = vmatmul.bf16.gmra.mxu0 %v2405
      %v2416 = vpop.f32.mrf.mxu0
      %v2417 = vadd.f32 0.0, %v2416
      %v2418 = vpop.f32.mrf.mxu0
      %v2419 = vadd.f32 0.0, %v2418
      %2420 = vdwg.mxu0
      %v2421 = vadd.f32 %v2367, %v2417
      %v2422 = vadd.f32 %v2368, %v2419
      %s2423 = scalar_lea.vmem %s6, 32
      %v2424 = vld [vmem:[%s2423] sm:$0xf]
      %v2425 = vld [vmem:[%s2423 + $0x4] sm:$0x1]
      %v2428 = vunpack.c.l.b16 %v2424
      %v2429 = vunpack.c.l.b16 %v2425
      %v2430 = vpack.c.b16 %v2429, %v2428
      %v2432 = vsel %vm2215, %v2430, 0
      %2434 = vmatpush.bf16.msra.mxu0 0
      %2435 = vmatpush.bf16.msra.mxu0 0
      %2436 = vmatpush.bf16.msra.mxu0 0
      %2437 = vmatpush.bf16.msra.mxu0 0
      %2438 = vmatpush.bf16.msra.mxu0 %v2220
      %2439 = vmatpush.bf16.msra.mxu0 %v2206
      %2440 = vmatpush.bf16.msra.mxu0 %v2205
      %2441 = vmatpush.bf16.msra.mxu0 %v2204
      %2442 = vmatmul.bf16.gmra.mxu0 %v2432
      %v2443 = vpop.f32.mrf.mxu0
      %v2444 = vadd.f32 0.0, %v2443
      %v2445 = vpop.f32.mrf.mxu0
      %v2446 = vadd.f32 0.0, %v2445
      %2447 = vdwg.mxu0
      %v2448 = vpack.c.bf16 %v2446, %v2444
      %s2449 = scalar_lea.vmem %s7, 32
      %v2450 = vld [vmem:[%s2449] sm:$0xf]
      %v2451 = vld [vmem:[%s2449 + $0x4] sm:$0xf]
      %v2454 = vunpack.c.l.b16 %v2450
      %v2455 = vunpack.c.l.b16 %v2451
      %v2456 = vpack.c.b16 %v2455, %v2454
      %v2459 = vsel %vm2274, %v2448, 0
      %2461 = vmatpush.bf16.msra.mxu0 0
      %2462 = vmatpush.bf16.msra.mxu0 0
      %2463 = vmatpush.bf16.msra.mxu0 0
      %2464 = vmatpush.bf16.msra.mxu0 0
      %2465 = vmatpush.bf16.msra.mxu0 0
      %2466 = vmatpush.bf16.msra.mxu0 0
      %2467 = vmatpush.bf16.msra.mxu0 0
      %2468 = vmatpush.bf16.msra.mxu0 %v2456
      %2469 = vmatmul.bf16.gmra.mxu0 %v2459
      %v2470 = vpop.f32.mrf.mxu0
      %v2471 = vadd.f32 0.0, %v2470
      %v2472 = vpop.f32.mrf.mxu0
      %v2473 = vadd.f32 0.0, %v2472
      %2474 = vdwg.mxu0
      %v2475 = vadd.f32 %v2421, %v2471
      %v2476 = vadd.f32 %v2422, %v2473
      %s2477 = scalar_lea.vmem %s6, 40
      %v2478 = vld [vmem:[%s2477] sm:$0xf]
      %v2479 = vld [vmem:[%s2477 + $0x4] sm:$0x1]
      %v2482 = vunpack.c.l.b16 %v2478
      %v2483 = vunpack.c.l.b16 %v2479
      %v2484 = vpack.c.b16 %v2483, %v2482
      %v2486 = vsel %vm2215, %v2484, 0
      %2488 = vmatpush.bf16.msra.mxu0 0
      %2489 = vmatpush.bf16.msra.mxu0 0
      %2490 = vmatpush.bf16.msra.mxu0 0
      %2491 = vmatpush.bf16.msra.mxu0 0
      %2492 = vmatpush.bf16.msra.mxu0 %v2220
      %2493 = vmatpush.bf16.msra.mxu0 %v2206
      %2494 = vmatpush.bf16.msra.mxu0 %v2205
      %2495 = vmatpush.bf16.msra.mxu0 %v2204
      %2496 = vmatmul.bf16.gmra.mxu0 %v2486
      %v2497 = vpop.f32.mrf.mxu0
      %v2498 = vadd.f32 0.0, %v2497
      %v2499 = vpop.f32.mrf.mxu0
      %v2500 = vadd.f32 0.0, %v2499
      %2501 = vdwg.mxu0
      %v2502 = vpack.c.bf16 %v2500, %v2498
      %s2503 = scalar_lea.vmem %s7, 40
      %v2504 = vld [vmem:[%s2503] sm:$0xf]
      %v2505 = vld [vmem:[%s2503 + $0x4] sm:$0xf]
      %v2508 = vunpack.c.l.b16 %v2504
      %v2509 = vunpack.c.l.b16 %v2505
      %v2510 = vpack.c.b16 %v2509, %v2508
      %v2513 = vsel %vm2274, %v2502, 0
      %2515 = vmatpush.bf16.msra.mxu0 0
      %2516 = vmatpush.bf16.msra.mxu0 0
      %2517 = vmatpush.bf16.msra.mxu0 0
      %2518 = vmatpush.bf16.msra.mxu0 0
      %2519 = vmatpush.bf16.msra.mxu0 0
      %2520 = vmatpush.bf16.msra.mxu0 0
      %2521 = vmatpush.bf16.msra.mxu0 0
      %2522 = vmatpush.bf16.msra.mxu0 %v2510
      %2523 = vmatmul.bf16.gmra.mxu0 %v2513
      %v2524 = vpop.f32.mrf.mxu0
      %v2525 = vadd.f32 0.0, %v2524
      %v2526 = vpop.f32.mrf.mxu0
      %v2527 = vadd.f32 0.0, %v2526
      %2528 = vdwg.mxu0
      %v2529 = vadd.f32 %v2475, %v2525
      %v2530 = vadd.f32 %v2476, %v2527
      %s2531 = scalar_lea.vmem %s6, 48
      %v2532 = vld [vmem:[%s2531] sm:$0xf]
      %v2533 = vld [vmem:[%s2531 + $0x4] sm:$0x1]
      %v2536 = vunpack.c.l.b16 %v2532
      %v2537 = vunpack.c.l.b16 %v2533
      %v2538 = vpack.c.b16 %v2537, %v2536
      %v2540 = vsel %vm2215, %v2538, 0
      %2542 = vmatpush.bf16.msra.mxu0 0
      %2543 = vmatpush.bf16.msra.mxu0 0
      %2544 = vmatpush.bf16.msra.mxu0 0
      %2545 = vmatpush.bf16.msra.mxu0 0
      %2546 = vmatpush.bf16.msra.mxu0 %v2220
      %2547 = vmatpush.bf16.msra.mxu0 %v2206
      %2548 = vmatpush.bf16.msra.mxu0 %v2205
      %2549 = vmatpush.bf16.msra.mxu0 %v2204
      %2550 = vmatmul.bf16.gmra.mxu0 %v2540
      %v2551 = vpop.f32.mrf.mxu0
      %v2552 = vadd.f32 0.0, %v2551
      %v2553 = vpop.f32.mrf.mxu0
      %v2554 = vadd.f32 0.0, %v2553
      %2555 = vdwg.mxu0
      %v2556 = vpack.c.bf16 %v2554, %v2552
      %s2557 = scalar_lea.vmem %s7, 48
      %v2558 = vld [vmem:[%s2557] sm:$0xf]
      %v2559 = vld [vmem:[%s2557 + $0x4] sm:$0xf]
      %v2562 = vunpack.c.l.b16 %v2558
      %v2563 = vunpack.c.l.b16 %v2559
      %v2564 = vpack.c.b16 %v2563, %v2562
      %v2567 = vsel %vm2274, %v2556, 0
      %2569 = vmatpush.bf16.msra.mxu0 0
      %2570 = vmatpush.bf16.msra.mxu0 0
      %2571 = vmatpush.bf16.msra.mxu0 0
      %2572 = vmatpush.bf16.msra.mxu0 0
      %2573 = vmatpush.bf16.msra.mxu0 0
      %2574 = vmatpush.bf16.msra.mxu0 0
      %2575 = vmatpush.bf16.msra.mxu0 0
      %2576 = vmatpush.bf16.msra.mxu0 %v2564
      %2577 = vmatmul.bf16.gmra.mxu0 %v2567
      %v2578 = vpop.f32.mrf.mxu0
      %v2579 = vadd.f32 0.0, %v2578
      %v2580 = vpop.f32.mrf.mxu0
      %v2581 = vadd.f32 0.0, %v2580
      %2582 = vdwg.mxu0
      %v2583 = vadd.f32 %v2529, %v2579
      %v2584 = vadd.f32 %v2530, %v2581
      %s2585 = scalar_lea.vmem %s6, 56
      %v2586 = vld [vmem:[%s2585] sm:$0xf]
      %v2587 = vld [vmem:[%s2585 + $0x4] sm:$0x1]
      %v2590 = vunpack.c.l.b16 %v2586
      %v2591 = vunpack.c.l.b16 %v2587
      %v2592 = vpack.c.b16 %v2591, %v2590
      %v2594 = vsel %vm2215, %v2592, 0
      %2596 = vmatpush.bf16.msra.mxu0 0
      %2597 = vmatpush.bf16.msra.mxu0 0
      %2598 = vmatpush.bf16.msra.mxu0 0
      %2599 = vmatpush.bf16.msra.mxu0 0
      %2600 = vmatpush.bf16.msra.mxu0 %v2220
      %2601 = vmatpush.bf16.msra.mxu0 %v2206
      %2602 = vmatpush.bf16.msra.mxu0 %v2205
      %2603 = vmatpush.bf16.msra.mxu0 %v2204
      %2604 = vmatmul.bf16.gmra.mxu0 %v2594
      %v2605 = vpop.f32.mrf.mxu0
      %v2606 = vadd.f32 0.0, %v2605
      %v2607 = vpop.f32.mrf.mxu0
      %v2608 = vadd.f32 0.0, %v2607
      %2609 = vdwg.mxu0
      %v2610 = vpack.c.bf16 %v2608, %v2606
      %s2611 = scalar_lea.vmem %s7, 56
      %v2612 = vld [vmem:[%s2611] sm:$0xf]
      %v2613 = vld [vmem:[%s2611 + $0x4] sm:$0xf]
      %v2616 = vunpack.c.l.b16 %v2612
      %v2617 = vunpack.c.l.b16 %v2613
      %v2618 = vpack.c.b16 %v2617, %v2616
      %v2621 = vsel %vm2274, %v2610, 0
      %2623 = vmatpush.bf16.msra.mxu0 0
      %2624 = vmatpush.bf16.msra.mxu0 0
      %2625 = vmatpush.bf16.msra.mxu0 0
      %2626 = vmatpush.bf16.msra.mxu0 0
      %2627 = vmatpush.bf16.msra.mxu0 0
      %2628 = vmatpush.bf16.msra.mxu0 0
      %2629 = vmatpush.bf16.msra.mxu0 0
      %2630 = vmatpush.bf16.msra.mxu0 %v2618
      %2631 = vmatmul.bf16.gmra.mxu0 %v2621
      %v2632 = vpop.f32.mrf.mxu0
      %v2633 = vadd.f32 0.0, %v2632
      %v2634 = vpop.f32.mrf.mxu0
      %v2635 = vadd.f32 0.0, %v2634
      %2636 = vdwg.mxu0
      %v2637 = vadd.f32 %v2583, %v2633
      %v2638 = vadd.f32 %v2584, %v2635
      %s2639 = scalar_lea.vmem %s6, 64
      %v2640 = vld [vmem:[%s2639] sm:$0xf]
      %v2641 = vld [vmem:[%s2639 + $0x4] sm:$0x1]
      %v2644 = vunpack.c.l.b16 %v2640
      %v2645 = vunpack.c.l.b16 %v2641
      %v2646 = vpack.c.b16 %v2645, %v2644
      %v2648 = vsel %vm2215, %v2646, 0
      %2650 = vmatpush.bf16.msra.mxu0 0
      %2651 = vmatpush.bf16.msra.mxu0 0
      %2652 = vmatpush.bf16.msra.mxu0 0
      %2653 = vmatpush.bf16.msra.mxu0 0
      %2654 = vmatpush.bf16.msra.mxu0 %v2220
      %2655 = vmatpush.bf16.msra.mxu0 %v2206
      %2656 = vmatpush.bf16.msra.mxu0 %v2205
      %2657 = vmatpush.bf16.msra.mxu0 %v2204
      %2658 = vmatmul.bf16.gmra.mxu0 %v2648
      %v2659 = vpop.f32.mrf.mxu0
      %v2660 = vadd.f32 0.0, %v2659
      %v2661 = vpop.f32.mrf.mxu0
      %v2662 = vadd.f32 0.0, %v2661
      %2663 = vdwg.mxu0
      %v2664 = vpack.c.bf16 %v2662, %v2660
      %s2665 = scalar_lea.vmem %s7, 64
      %v2666 = vld [vmem:[%s2665] sm:$0xf]
      %v2667 = vld [vmem:[%s2665 + $0x4] sm:$0xf]
      %v2670 = vunpack.c.l.b16 %v2666
      %v2671 = vunpack.c.l.b16 %v2667
      %v2672 = vpack.c.b16 %v2671, %v2670
      %v2675 = vsel %vm2274, %v2664, 0
      %2677 = vmatpush.bf16.msra.mxu0 0
      %2678 = vmatpush.bf16.msra.mxu0 0
      %2679 = vmatpush.bf16.msra.mxu0 0
      %2680 = vmatpush.bf16.msra.mxu0 0
      %2681 = vmatpush.bf16.msra.mxu0 0
      %2682 = vmatpush.bf16.msra.mxu0 0
      %2683 = vmatpush.bf16.msra.mxu0 0
      %2684 = vmatpush.bf16.msra.mxu0 %v2672
      %2685 = vmatmul.bf16.gmra.mxu0 %v2675
      %v2686 = vpop.f32.mrf.mxu0
      %v2687 = vadd.f32 0.0, %v2686
      %v2688 = vpop.f32.mrf.mxu0
      %v2689 = vadd.f32 0.0, %v2688
      %2690 = vdwg.mxu0
      %v2691 = vadd.f32 %v2637, %v2687
      %v2692 = vadd.f32 %v2638, %v2689
      %v2693 = vld [vmem:[%s8] sm:$0x1]
      %v2695 = vperm.slane %v2693, 0
      %v2697 = vadd.f32 %v2691, %v2695
      %v2698 = vadd.f32 %v2692, %v2695
      %v2699 = vpack.c.bf16 %v2698, %v2697
      %v2700 = vld [vmem:[%s9] sm:$0xf]
      %v2701 = vld [vmem:[%s9 + $0x4] sm:$0xf]
      %v2702 = vld [vmem:[%s9 + $0x8] sm:$0xf]
      %v2703 = vld [vmem:[%s9 + $0xc] sm:$0xf]
      %v2704 = vld [vmem:[%s10] sm:$0x1]
      %v2706 = vperm.slane %v2704, 0
      %v2712 = vunpack.c.l.b16 %v2700
      %v2713 = vunpack.c.l.b16 %v2701
      %v2714 = vunpack.c.l.b16 %v2702
      %v2715 = vunpack.c.l.b16 %v2703
      %v2716 = vpack.c.b16 %v2713, %v2712
      %v2717 = vpack.c.b16 %v2715, %v2714
      %vm2720 = vcmask 261120
      %v2722 = vsel %vm2720, %v2699, 0
      %2724 = vmatpush.bf16.msra.mxu0 0
      %2725 = vmatpush.bf16.msra.mxu0 0
      %2726 = vmatpush.bf16.msra.mxu0 0
      %2727 = vmatpush.bf16.msra.mxu0 0
      %2728 = vmatpush.bf16.msra.mxu0 0
      %2729 = vmatpush.bf16.msra.mxu0 0
      %2730 = vmatpush.bf16.msra.mxu0 %v2717
      %2731 = vmatpush.bf16.msra.mxu0 %v2716
      %2732 = vmatmul.bf16.gmra.mxu0 %v2722
      %v2733 = vpop.f32.mrf.mxu0
      %v2734 = vadd.f32 %v2706, %v2733
      %v2735 = vpop.f32.mrf.mxu0
      %v2736 = vadd.f32 %v2706, %v2735
      %2737 = vdwg.mxu0
      %v2738 = vld [vmem:[%s428] sm:$0xff]
      %v2739 = vld [vmem:[%s428 + $0x8] sm:$0x1]
      %v2740 = vmul.f32 %v2734, 0.5
      %v2741 = vmul.f32 %v2736, 0.5
      %v2742 = vmul.f32 %v2740, 1.442695
      %v2743 = vpow.pop %v2742
      %v2744 = vmul.f32 %v2741, 1.442695
      %v2745 = vpow.pop %v2744
      %2748 = vrot.lane.b32.xlu0 %v2743, 127
      %v2749 = vpop.permute.xlu0 %2748
      %2750 = vrot.lane.b32.xlu0 %v2745, 127
      %v2751 = vpop.permute.xlu0 %2750
      %v2754 = vmul.f32 %v2738, %v2749
      %v2755 = vmul.f32 %v2739, %v2751
      %v2756 = vadd.f32 %v2734, %v2754
      %v2757 = vadd.f32 %v2736, %v2755
      %v2758 = vlaneseq
      %v2759 = vand.u32 %v2758, 127
      %vm2760 = vcmp.eq.s32.totalorder %v2759, 2
      %2762 = vset.pattern.permute.xlu0 0
      %2763 = vperm.xlu0 %2762, %v2756
      %v2764 = vpop.permute.xlu0 %2763
      %2767 = vset.pattern.permute.xlu0 0
      %2768 = vperm.xlu0 %2767, %v2757
      %v2769 = vpop.permute.xlu0 %2768
      %v2771 = vsel %vm2760, %v2764, 0.0
      %v2772 = vsel %vm2760, %v2769, 0.0
      %v2773 = vadd.f32 %v2734, %v2771
      %v2774 = vadd.f32 %v2736, %v2772
      %2775 = vst [vmem:[%s433] sm:$0xff] %v2773
      %2776 = vst [vmem:[%s433 + $0x8] sm:$0x1] %v2774
      %p2777 = scmp.lt.s32.totalorder %s23, 1
      %s2778 = scalar_select %p2777, %s23, 1
      %s2779 = smul.addr %s2778, 2
      %s2780 = smul.addr %s2779, 8
      %s2781 = scalar_lea.vmem %s12, %s2780
      // Predicated region
      $region69: #{stochastic_inference_forward.1} parent=67 // pred_check
        %p2782 = pneg %p303
      $region70: #{stochastic_inference_forward.1} parent=67 // pred_check_branch
        %2784 = sbr.rel (%p2782) target = $region72
      $region71: #{stochastic_inference_forward.1} parent=67 // pred_region
        _
      $region72: #{stochastic_inference_forward.1} parent=67 // pred_fallthru
        _
    $region68: #{stochastic_inference_forward.1} parent=5 // pred_fallthru
      _
    %p2785 = scmp.le.s32.totalorder 2, %s18
    // Predicated region
    $region73: #{stochastic_inference_forward.1} parent=5 // pred_check
      %p2786 = pneg %p2785
    $region74: #{stochastic_inference_forward.1} parent=5 // pred_check_branch
      %2788 = sbr.rel (%p2786) target = $region76
    $region75: #{stochastic_inference_forward.1} parent=5 // pred_region
      %s2789 = ssub.s32 %s18, 2
      // Predicated region
      $region77: #{stochastic_inference_forward.1} parent=75 // pred_check
        %p2790 = pneg %p309
      $region78: #{stochastic_inference_forward.1} parent=75 // pred_check_branch
        %2792 = sbr.rel (%p2790) target = $region80
      $region79: #{stochastic_inference_forward.1} parent=75 // pred_region
        %p2793 = scmp.lt.s32.totalorder %s24, 1
        %s2794 = scalar_select %p2793, %s24, 1
        %s2795 = smul.addr %s2794, 2
        %s2796 = smul.addr %s2795, 8
        %s2797 = scalar_lea.vmem %s12, %s2796
      $region80: #{stochastic_inference_forward.1} parent=75 // pred_fallthru
        _
    $region76: #{stochastic_inference_forward.1} parent=5 // pred_fallthru
      _
  $region6: #{stochastic_inference_forward.1} parent=0 // loop_footer
    %s22 = sadd.s32 1, %s18
  $region7: #{stochastic_inference_forward.1} parent=0 // loop_footer_branch
    %17 = sbr.rel target = $region3
  $region8: #{stochastic_inference_forward.1} parent=0 // loop_exit
    _

</llo_original>
